<compile_context>
chip_gen: v5e
topology: v5e:2x2
jax: 0.10.0
libtpu: 0.0.40
codegen_flags: <defaults>
</compile_context>

<pallas_src>
import jax
import jax.numpy as jnp
from jax.experimental import pallas as pl
from jax.experimental.pallas import tpu as pltpu

EPS = 1e-5  # nn.InstanceNorm2d default eps, affine=False, no running stats


def _conv3x3_taps(xp, w_taps, H, W, C):
    """3x3 'VALID' conv over a reflect-padded (H+2, W+2, C) f32 slab.

    One sublane-window slice (+ bf16 cast) per kw, free leading-axis slices
    per kh, 9 bf16 MXU matmuls accumulated into a single f32 accumulator.
    """
    acc = jnp.zeros((H * W, C), jnp.float32)
    for kw in range(3):
        xk = xp[:, kw:kw + W, :].astype(jnp.bfloat16)          # (H+2, W, C)
        for kh in range(3):
            patch = xk[kh:kh + H, :, :].reshape(H * W, C)      # layout-free
            acc = acc + jnp.dot(patch, w_taps[kh][kw],
                                preferred_element_type=jnp.float32)
    return acc


def _instance_norm(h):
    """InstanceNorm2d(affine=False) over (H*W, C): fused sum / sum-of-squares."""
    n = h.shape[0]
    s = jnp.sum(h, axis=0, keepdims=True)
    s2 = jnp.sum(h * h, axis=0, keepdims=True)
    mean = s * (1.0 / n)
    var = s2 * (1.0 / n) - mean * mean
    return (h - mean) * jax.lax.rsqrt(var + EPS)


def residual_block_kernel(xpad_ref, w1_ref, w2_ref, o_ref, pad_ref):
    H, W, C = o_ref.shape
    xpf = xpad_ref[...]                                        # (H+2, W+2, C) f32

    # Hoisted weight-tap loads (tiny VMEM-resident (C, C) bf16 blocks).
    w1 = [[w1_ref[kh, kw] for kw in range(3)] for kh in range(3)]
    w2 = [[w2_ref[kh, kw] for kw in range(3)] for kh in range(3)]

    # --- conv1 (bias dropped: affine-free InstanceNorm cancels it) + IN + ReLU
    h = _conv3x3_taps(xpf, w1, H, W, C)
    h = jnp.maximum(_instance_norm(h), 0.0)

    # --- reflect-pad h into the persistent VMEM scratch:
    #     interior + left/right columns, then top/bottom rows copied from
    #     already-padded rows (this also fills the corners correctly).
    hb = h.reshape(H, W, C)
    pad_ref[1:H + 1, 1:W + 1, :] = hb
    pad_ref[1:H + 1, 0:1, :] = hb[:, 1:2, :]
    pad_ref[1:H + 1, W + 1:W + 2, :] = hb[:, W - 2:W - 1, :]
    pad_ref[0:1, :, :] = pad_ref[2:3, :, :]
    pad_ref[H + 1:H + 2, :, :] = pad_ref[H - 1:H, :, :]

    # --- conv2 + IN (bias dropped for the same reason)
    h2 = _instance_norm(_conv3x3_taps(pad_ref[...], w2, H, W, C))

    # --- residual add: x is the interior of the padded input (no extra DMA)
    o_ref[...] = xpf[1:H + 1, 1:W + 1, :] + h2.reshape(H, W, C)


def residual_block(x_nchw, w1, b1, w2, b2):
    """x_nchw: (N, C, H, W) float32.  w*: (3,3,Cin,Cout), b*: (C,).

    b1/b2 are accepted for API parity with the PyTorch module but not used:
    conv bias followed by InstanceNorm2d(affine=False) cancels exactly.
    """
    del b1, b2
    N, C, H, W = x_nchw.shape
    assert H >= 2 and W >= 2, "reflect padding requires H, W >= 2"

    x = jnp.transpose(x_nchw, (0, 2, 3, 1))                    # NHWC
    xpad = jnp.pad(x, ((0, 0), (1, 1), (1, 1), (0, 0)), mode="reflect")
    w1b = w1.astype(jnp.bfloat16)
    w2b = w2.astype(jnp.bfloat16)

    out = pl.pallas_call(
        residual_block_kernel,
        out_shape=jax.ShapeDtypeStruct((N, H, W, C), x.dtype),
        grid=(N,),
        in_specs=[
            pl.BlockSpec((None, H + 2, W + 2, C), lambda n: (n, 0, 0, 0)),
            pl.BlockSpec((3, 3, C, C), lambda n: (0, 0, 0, 0)),
            pl.BlockSpec((3, 3, C, C), lambda n: (0, 0, 0, 0)),
        ],
        out_specs=pl.BlockSpec((None, H, W, C), lambda n: (n, 0, 0, 0)),
        scratch_shapes=[pltpu.VMEM((H + 2, W + 2, C), jnp.float32)],
        compiler_params=pltpu.CompilerParams(
            dimension_semantics=("parallel",),
            vmem_limit_bytes=64 * 1024 * 1024),
    )(xpad, w1b, w2b)

    return jnp.transpose(out, (0, 3, 1, 2))                    # back to NCHW


# ----------------------------- pure-JAX reference -----------------------------
def residual_block_ref(x, w1, b1, w2, b2):
    # x: NCHW; w*: (3,3,Cin,Cout); full f32, biases included (PyTorch semantics)
    def conv(h, w, b):
        hp = jnp.pad(h, ((0, 0), (0, 0), (1, 1), (1, 1)), mode="reflect")
        wk = jnp.transpose(w, (3, 2, 0, 1))                    # -> OIHW
        y = jax.lax.conv_general_dilated(
            hp, wk, (1, 1), "VALID",
            dimension_numbers=("NCHW", "OIHW", "NCHW"))
        return y + b[None, :, None, None]

    def inorm(h):
        m = jnp.mean(h, axis=(2, 3), keepdims=True)
        v = jnp.mean((h - m) ** 2, axis=(2, 3), keepdims=True)
        return (h - m) * jax.lax.rsqrt(v + EPS)

    h = jnp.maximum(inorm(conv(x, w1, b1)), 0.0)
    h = inorm(conv(h, w2, b2))
    return x + h


if __name__ == "__main__":
    N, C, H, W = 2, 4, 16, 16

    key = jax.random.PRNGKey(0)
    k1, k2, k3, k4, k5 = jax.random.split(key, 5)

    x = jax.random.normal(k1, (N, C, H, W), jnp.float32)

    # Deterministic synthetic init (PyTorch-like uniform bound 1/sqrt(fan_in)).
    bound = 1.0 / (C * 3 * 3) ** 0.5
    w1_oihw = jax.random.uniform(k2, (C, C, 3, 3), jnp.float32, -bound, bound)
    b1 = jax.random.uniform(k3, (C,), jnp.float32, -bound, bound)
    w2_oihw = jax.random.uniform(k4, (C, C, 3, 3), jnp.float32, -bound, bound)
    b2 = jax.random.uniform(k5, (C,), jnp.float32, -bound, bound)

    # (Cout, Cin, kh, kw) -> (kh, kw, Cin, Cout) for the kernel
    w1 = jnp.transpose(w1_oihw, (2, 3, 1, 0))
    w2 = jnp.transpose(w2_oihw, (2, 3, 1, 0))

    out = residual_block(x, w1, b1, w2, b2)
    out = jax.block_until_ready(out)

    ref = residual_block_ref(x, w1, b1, w2, b2)
    assert out.shape == (N, C, H, W)
    # Kernel uses bf16 MXU operands with f32 accumulation (vs f32 reference),
    # so compare with a bf16-appropriate tolerance.
    assert jnp.allclose(out, ref, atol=3e-2, rtol=3e-2), "mismatch vs reference"

    print("KERNEL_OK")
</pallas_src>

<mosaic_0001>
module attributes {stable_mosaic.version = 11 : i64} {
  func.func @residual_block_kernel(%arg0: i32, %arg1: memref<1x18x18x4xf32, #tpu.memory_space<vmem>>, %arg2: memref<3x3x4x4xbf16, #tpu.memory_space<vmem>>, %arg3: memref<3x3x4x4xbf16, #tpu.memory_space<vmem>>, %arg4: memref<1x16x16x4xf32, #tpu.memory_space<vmem>>, %arg5: memref<18x18x4xf32, #tpu.memory_space<vmem>>) attributes {dimension_semantics = [#tpu.dimension_semantics<parallel>], iteration_bounds = array<i64: 2>, scalar_prefetch = 0 : i64, scratch_operands = 1 : i64, tpu.core_type = #tpu.core_type<tc>, window_params = [{transform_indices = @transform_0, window_bounds = array<i64: 1, 18, 18, 4>}, {pipeline_mode = #tpu.pipeline_mode<synchronous>, transform_indices = @transform_1, window_bounds = array<i64: 3, 3, 4, 4>}, {pipeline_mode = #tpu.pipeline_mode<synchronous>, transform_indices = @transform_2, window_bounds = array<i64: 3, 3, 4, 4>}, {transform_indices = @transform_3, window_bounds = array<i64: 1, 16, 16, 4>}]} {
    %c0 = arith.constant 0 : index
    %c0_0 = arith.constant 0 : index
    %c0_1 = arith.constant 0 : index
    %c0_2 = arith.constant 0 : index
    %0 = vector.load %arg1[%c0, %c0_0, %c0_1, %c0_2] : memref<1x18x18x4xf32, #tpu.memory_space<vmem>>, vector<1x18x18x4xf32>
    %1 = vector.shape_cast %0 : vector<1x18x18x4xf32> to vector<18x18x4xf32>
    %c0_3 = arith.constant 0 : index
    %c0_4 = arith.constant 0 : index
    %c0_5 = arith.constant 0 : index
    %c0_6 = arith.constant 0 : index
    %2 = vector.load %arg2[%c0_3, %c0_4, %c0_5, %c0_6] : memref<3x3x4x4xbf16, #tpu.memory_space<vmem>>, vector<1x1x4x4xbf16>
    %3 = vector.shape_cast %2 : vector<1x1x4x4xbf16> to vector<4x4xbf16>
    %c0_7 = arith.constant 0 : index
    %c1 = arith.constant 1 : index
    %c0_8 = arith.constant 0 : index
    %c0_9 = arith.constant 0 : index
    %4 = vector.load %arg2[%c0_7, %c1, %c0_8, %c0_9] : memref<3x3x4x4xbf16, #tpu.memory_space<vmem>>, vector<1x1x4x4xbf16>
    %5 = vector.shape_cast %4 : vector<1x1x4x4xbf16> to vector<4x4xbf16>
    %c0_10 = arith.constant 0 : index
    %c2 = arith.constant 2 : index
    %c0_11 = arith.constant 0 : index
    %c0_12 = arith.constant 0 : index
    %6 = vector.load %arg2[%c0_10, %c2, %c0_11, %c0_12] : memref<3x3x4x4xbf16, #tpu.memory_space<vmem>>, vector<1x1x4x4xbf16>
    %7 = vector.shape_cast %6 : vector<1x1x4x4xbf16> to vector<4x4xbf16>
    %c1_13 = arith.constant 1 : index
    %c0_14 = arith.constant 0 : index
    %c0_15 = arith.constant 0 : index
    %c0_16 = arith.constant 0 : index
    %8 = vector.load %arg2[%c1_13, %c0_14, %c0_15, %c0_16] : memref<3x3x4x4xbf16, #tpu.memory_space<vmem>>, vector<1x1x4x4xbf16>
    %9 = vector.shape_cast %8 : vector<1x1x4x4xbf16> to vector<4x4xbf16>
    %c1_17 = arith.constant 1 : index
    %c1_18 = arith.constant 1 : index
    %c0_19 = arith.constant 0 : index
    %c0_20 = arith.constant 0 : index
    %10 = vector.load %arg2[%c1_17, %c1_18, %c0_19, %c0_20] : memref<3x3x4x4xbf16, #tpu.memory_space<vmem>>, vector<1x1x4x4xbf16>
    %11 = vector.shape_cast %10 : vector<1x1x4x4xbf16> to vector<4x4xbf16>
    %c1_21 = arith.constant 1 : index
    %c2_22 = arith.constant 2 : index
    %c0_23 = arith.constant 0 : index
    %c0_24 = arith.constant 0 : index
    %12 = vector.load %arg2[%c1_21, %c2_22, %c0_23, %c0_24] : memref<3x3x4x4xbf16, #tpu.memory_space<vmem>>, vector<1x1x4x4xbf16>
    %13 = vector.shape_cast %12 : vector<1x1x4x4xbf16> to vector<4x4xbf16>
    %c2_25 = arith.constant 2 : index
    %c0_26 = arith.constant 0 : index
    %c0_27 = arith.constant 0 : index
    %c0_28 = arith.constant 0 : index
    %14 = vector.load %arg2[%c2_25, %c0_26, %c0_27, %c0_28] : memref<3x3x4x4xbf16, #tpu.memory_space<vmem>>, vector<1x1x4x4xbf16>
    %15 = vector.shape_cast %14 : vector<1x1x4x4xbf16> to vector<4x4xbf16>
    %c2_29 = arith.constant 2 : index
    %c1_30 = arith.constant 1 : index
    %c0_31 = arith.constant 0 : index
    %c0_32 = arith.constant 0 : index
    %16 = vector.load %arg2[%c2_29, %c1_30, %c0_31, %c0_32] : memref<3x3x4x4xbf16, #tpu.memory_space<vmem>>, vector<1x1x4x4xbf16>
    %17 = vector.shape_cast %16 : vector<1x1x4x4xbf16> to vector<4x4xbf16>
    %c2_33 = arith.constant 2 : index
    %c2_34 = arith.constant 2 : index
    %c0_35 = arith.constant 0 : index
    %c0_36 = arith.constant 0 : index
    %18 = vector.load %arg2[%c2_33, %c2_34, %c0_35, %c0_36] : memref<3x3x4x4xbf16, #tpu.memory_space<vmem>>, vector<1x1x4x4xbf16>
    %19 = vector.shape_cast %18 : vector<1x1x4x4xbf16> to vector<4x4xbf16>
    %c0_37 = arith.constant 0 : index
    %c0_38 = arith.constant 0 : index
    %c0_39 = arith.constant 0 : index
    %c0_40 = arith.constant 0 : index
    %20 = vector.load %arg3[%c0_37, %c0_38, %c0_39, %c0_40] : memref<3x3x4x4xbf16, #tpu.memory_space<vmem>>, vector<1x1x4x4xbf16>
    %21 = vector.shape_cast %20 : vector<1x1x4x4xbf16> to vector<4x4xbf16>
    %c0_41 = arith.constant 0 : index
    %c1_42 = arith.constant 1 : index
    %c0_43 = arith.constant 0 : index
    %c0_44 = arith.constant 0 : index
    %22 = vector.load %arg3[%c0_41, %c1_42, %c0_43, %c0_44] : memref<3x3x4x4xbf16, #tpu.memory_space<vmem>>, vector<1x1x4x4xbf16>
    %23 = vector.shape_cast %22 : vector<1x1x4x4xbf16> to vector<4x4xbf16>
    %c0_45 = arith.constant 0 : index
    %c2_46 = arith.constant 2 : index
    %c0_47 = arith.constant 0 : index
    %c0_48 = arith.constant 0 : index
    %24 = vector.load %arg3[%c0_45, %c2_46, %c0_47, %c0_48] : memref<3x3x4x4xbf16, #tpu.memory_space<vmem>>, vector<1x1x4x4xbf16>
    %25 = vector.shape_cast %24 : vector<1x1x4x4xbf16> to vector<4x4xbf16>
    %c1_49 = arith.constant 1 : index
    %c0_50 = arith.constant 0 : index
    %c0_51 = arith.constant 0 : index
    %c0_52 = arith.constant 0 : index
    %26 = vector.load %arg3[%c1_49, %c0_50, %c0_51, %c0_52] : memref<3x3x4x4xbf16, #tpu.memory_space<vmem>>, vector<1x1x4x4xbf16>
    %27 = vector.shape_cast %26 : vector<1x1x4x4xbf16> to vector<4x4xbf16>
    %c1_53 = arith.constant 1 : index
    %c1_54 = arith.constant 1 : index
    %c0_55 = arith.constant 0 : index
    %c0_56 = arith.constant 0 : index
    %28 = vector.load %arg3[%c1_53, %c1_54, %c0_55, %c0_56] : memref<3x3x4x4xbf16, #tpu.memory_space<vmem>>, vector<1x1x4x4xbf16>
    %29 = vector.shape_cast %28 : vector<1x1x4x4xbf16> to vector<4x4xbf16>
    %c1_57 = arith.constant 1 : index
    %c2_58 = arith.constant 2 : index
    %c0_59 = arith.constant 0 : index
    %c0_60 = arith.constant 0 : index
    %30 = vector.load %arg3[%c1_57, %c2_58, %c0_59, %c0_60] : memref<3x3x4x4xbf16, #tpu.memory_space<vmem>>, vector<1x1x4x4xbf16>
    %31 = vector.shape_cast %30 : vector<1x1x4x4xbf16> to vector<4x4xbf16>
    %c2_61 = arith.constant 2 : index
    %c0_62 = arith.constant 0 : index
    %c0_63 = arith.constant 0 : index
    %c0_64 = arith.constant 0 : index
    %32 = vector.load %arg3[%c2_61, %c0_62, %c0_63, %c0_64] : memref<3x3x4x4xbf16, #tpu.memory_space<vmem>>, vector<1x1x4x4xbf16>
    %33 = vector.shape_cast %32 : vector<1x1x4x4xbf16> to vector<4x4xbf16>
    %c2_65 = arith.constant 2 : index
    %c1_66 = arith.constant 1 : index
    %c0_67 = arith.constant 0 : index
    %c0_68 = arith.constant 0 : index
    %34 = vector.load %arg3[%c2_65, %c1_66, %c0_67, %c0_68] : memref<3x3x4x4xbf16, #tpu.memory_space<vmem>>, vector<1x1x4x4xbf16>
    %35 = vector.shape_cast %34 : vector<1x1x4x4xbf16> to vector<4x4xbf16>
    %c2_69 = arith.constant 2 : index
    %c2_70 = arith.constant 2 : index
    %c0_71 = arith.constant 0 : index
    %c0_72 = arith.constant 0 : index
    %36 = vector.load %arg3[%c2_69, %c2_70, %c0_71, %c0_72] : memref<3x3x4x4xbf16, #tpu.memory_space<vmem>>, vector<1x1x4x4xbf16>
    %37 = vector.shape_cast %36 : vector<1x1x4x4xbf16> to vector<4x4xbf16>
    %cst = arith.constant 0.000000e+00 : f32
    %38 = vector.broadcast %cst : f32 to vector<256x4xf32>
    %39 = vector.extract_strided_slice %1 {offsets = [0, 0, 0], sizes = [18, 16, 4], strides = [1, 1, 1]} : vector<18x18x4xf32> to vector<18x16x4xf32>
    %40 = arith.truncf %39 : vector<18x16x4xf32> to vector<18x16x4xbf16>
    %41 = vector.extract_strided_slice %40 {offsets = [0, 0, 0], sizes = [16, 16, 4], strides = [1, 1, 1]} : vector<18x16x4xbf16> to vector<16x16x4xbf16>
    %42 = vector.shape_cast %41 : vector<16x16x4xbf16> to vector<256x4xbf16>
    %cst_73 = arith.constant dense<0.000000e+00> : vector<256x4xf32>
    %43 = tpu.matmul %42, %3, %cst_73 {dimension_numbers = #tpu.dot_dimension_numbers<[1], [0], [0], [1], [0, 0, 1, 1], [], []>} : vector<256x4xbf16>, vector<4x4xbf16>, vector<256x4xf32> -> vector<256x4xf32>
    %44 = arith.addf %38, %43 : vector<256x4xf32>
    %45 = vector.extract_strided_slice %40 {offsets = [1, 0, 0], sizes = [16, 16, 4], strides = [1, 1, 1]} : vector<18x16x4xbf16> to vector<16x16x4xbf16>
    %46 = vector.shape_cast %45 : vector<16x16x4xbf16> to vector<256x4xbf16>
    %cst_74 = arith.constant dense<0.000000e+00> : vector<256x4xf32>
    %47 = tpu.matmul %46, %9, %cst_74 {dimension_numbers = #tpu.dot_dimension_numbers<[1], [0], [0], [1], [0, 0, 1, 1], [], []>} : vector<256x4xbf16>, vector<4x4xbf16>, vector<256x4xf32> -> vector<256x4xf32>
    %48 = arith.addf %44, %47 : vector<256x4xf32>
    %49 = vector.extract_strided_slice %40 {offsets = [2, 0, 0], sizes = [16, 16, 4], strides = [1, 1, 1]} : vector<18x16x4xbf16> to vector<16x16x4xbf16>
    %50 = vector.shape_cast %49 : vector<16x16x4xbf16> to vector<256x4xbf16>
    %cst_75 = arith.constant dense<0.000000e+00> : vector<256x4xf32>
    %51 = tpu.matmul %50, %15, %cst_75 {dimension_numbers = #tpu.dot_dimension_numbers<[1], [0], [0], [1], [0, 0, 1, 1], [], []>} : vector<256x4xbf16>, vector<4x4xbf16>, vector<256x4xf32> -> vector<256x4xf32>
    %52 = arith.addf %48, %51 : vector<256x4xf32>
    %53 = vector.extract_strided_slice %1 {offsets = [0, 1, 0], sizes = [18, 16, 4], strides = [1, 1, 1]} : vector<18x18x4xf32> to vector<18x16x4xf32>
    %54 = arith.truncf %53 : vector<18x16x4xf32> to vector<18x16x4xbf16>
    %55 = vector.extract_strided_slice %54 {offsets = [0, 0, 0], sizes = [16, 16, 4], strides = [1, 1, 1]} : vector<18x16x4xbf16> to vector<16x16x4xbf16>
    %56 = vector.shape_cast %55 : vector<16x16x4xbf16> to vector<256x4xbf16>
    %cst_76 = arith.constant dense<0.000000e+00> : vector<256x4xf32>
    %57 = tpu.matmul %56, %5, %cst_76 {dimension_numbers = #tpu.dot_dimension_numbers<[1], [0], [0], [1], [0, 0, 1, 1], [], []>} : vector<256x4xbf16>, vector<4x4xbf16>, vector<256x4xf32> -> vector<256x4xf32>
    %58 = arith.addf %52, %57 : vector<256x4xf32>
    %59 = vector.extract_strided_slice %54 {offsets = [1, 0, 0], sizes = [16, 16, 4], strides = [1, 1, 1]} : vector<18x16x4xbf16> to vector<16x16x4xbf16>
    %60 = vector.shape_cast %59 : vector<16x16x4xbf16> to vector<256x4xbf16>
    %cst_77 = arith.constant dense<0.000000e+00> : vector<256x4xf32>
    %61 = tpu.matmul %60, %11, %cst_77 {dimension_numbers = #tpu.dot_dimension_numbers<[1], [0], [0], [1], [0, 0, 1, 1], [], []>} : vector<256x4xbf16>, vector<4x4xbf16>, vector<256x4xf32> -> vector<256x4xf32>
    %62 = arith.addf %58, %61 : vector<256x4xf32>
    %63 = vector.extract_strided_slice %54 {offsets = [2, 0, 0], sizes = [16, 16, 4], strides = [1, 1, 1]} : vector<18x16x4xbf16> to vector<16x16x4xbf16>
    %64 = vector.shape_cast %63 : vector<16x16x4xbf16> to vector<256x4xbf16>
    %cst_78 = arith.constant dense<0.000000e+00> : vector<256x4xf32>
    %65 = tpu.matmul %64, %17, %cst_78 {dimension_numbers = #tpu.dot_dimension_numbers<[1], [0], [0], [1], [0, 0, 1, 1], [], []>} : vector<256x4xbf16>, vector<4x4xbf16>, vector<256x4xf32> -> vector<256x4xf32>
    %66 = arith.addf %62, %65 : vector<256x4xf32>
    %67 = vector.extract_strided_slice %1 {offsets = [0, 2, 0], sizes = [18, 16, 4], strides = [1, 1, 1]} : vector<18x18x4xf32> to vector<18x16x4xf32>
    %68 = arith.truncf %67 : vector<18x16x4xf32> to vector<18x16x4xbf16>
    %69 = vector.extract_strided_slice %68 {offsets = [0, 0, 0], sizes = [16, 16, 4], strides = [1, 1, 1]} : vector<18x16x4xbf16> to vector<16x16x4xbf16>
    %70 = vector.shape_cast %69 : vector<16x16x4xbf16> to vector<256x4xbf16>
    %cst_79 = arith.constant dense<0.000000e+00> : vector<256x4xf32>
    %71 = tpu.matmul %70, %7, %cst_79 {dimension_numbers = #tpu.dot_dimension_numbers<[1], [0], [0], [1], [0, 0, 1, 1], [], []>} : vector<256x4xbf16>, vector<4x4xbf16>, vector<256x4xf32> -> vector<256x4xf32>
    %72 = arith.addf %66, %71 : vector<256x4xf32>
    %73 = vector.extract_strided_slice %68 {offsets = [1, 0, 0], sizes = [16, 16, 4], strides = [1, 1, 1]} : vector<18x16x4xbf16> to vector<16x16x4xbf16>
    %74 = vector.shape_cast %73 : vector<16x16x4xbf16> to vector<256x4xbf16>
    %cst_80 = arith.constant dense<0.000000e+00> : vector<256x4xf32>
    %75 = tpu.matmul %74, %13, %cst_80 {dimension_numbers = #tpu.dot_dimension_numbers<[1], [0], [0], [1], [0, 0, 1, 1], [], []>} : vector<256x4xbf16>, vector<4x4xbf16>, vector<256x4xf32> -> vector<256x4xf32>
    %76 = arith.addf %72, %75 : vector<256x4xf32>
    %77 = vector.extract_strided_slice %68 {offsets = [2, 0, 0], sizes = [16, 16, 4], strides = [1, 1, 1]} : vector<18x16x4xbf16> to vector<16x16x4xbf16>
    %78 = vector.shape_cast %77 : vector<16x16x4xbf16> to vector<256x4xbf16>
    %cst_81 = arith.constant dense<0.000000e+00> : vector<256x4xf32>
    %79 = tpu.matmul %78, %19, %cst_81 {dimension_numbers = #tpu.dot_dimension_numbers<[1], [0], [0], [1], [0, 0, 1, 1], [], []>} : vector<256x4xbf16>, vector<4x4xbf16>, vector<256x4xf32> -> vector<256x4xf32>
    %80 = arith.addf %76, %79 : vector<256x4xf32>
    %cst_82 = arith.constant dense<0.000000e+00> : vector<4xf32>
    %81 = vector.multi_reduction <add>, %80, %cst_82 [0] : vector<256x4xf32> to vector<4xf32>
    %82 = vector.shape_cast %81 : vector<4xf32> to vector<1x4xf32>
    %83 = arith.mulf %80, %80 : vector<256x4xf32>
    %cst_83 = arith.constant dense<0.000000e+00> : vector<4xf32>
    %84 = vector.multi_reduction <add>, %83, %cst_83 [0] : vector<256x4xf32> to vector<4xf32>
    %85 = vector.shape_cast %84 : vector<4xf32> to vector<1x4xf32>
    %cst_84 = arith.constant 3.906250e-03 : f32
    %86 = vector.broadcast %cst_84 : f32 to vector<1x4xf32>
    %87 = arith.mulf %82, %86 : vector<1x4xf32>
    %cst_85 = arith.constant 3.906250e-03 : f32
    %88 = vector.broadcast %cst_85 : f32 to vector<1x4xf32>
    %89 = arith.mulf %85, %88 : vector<1x4xf32>
    %90 = arith.mulf %87, %87 : vector<1x4xf32>
    %91 = arith.subf %89, %90 : vector<1x4xf32>
    %92 = vector.broadcast %87 : vector<1x4xf32> to vector<256x4xf32>
    %93 = arith.subf %80, %92 : vector<256x4xf32>
    %cst_86 = arith.constant 9.99999974E-6 : f32
    %94 = vector.broadcast %cst_86 : f32 to vector<1x4xf32>
    %95 = arith.addf %91, %94 : vector<1x4xf32>
    %96 = math.rsqrt %95 : vector<1x4xf32>
    %97 = vector.broadcast %96 : vector<1x4xf32> to vector<256x4xf32>
    %98 = arith.mulf %93, %97 : vector<256x4xf32>
    %cst_87 = arith.constant 0.000000e+00 : f32
    %99 = vector.broadcast %cst_87 : f32 to vector<256x4xf32>
    %100 = arith.maximumf %98, %99 : vector<256x4xf32>
    %101 = vector.shape_cast %100 : vector<256x4xf32> to vector<16x16x4xf32>
    %c1_88 = arith.constant 1 : index
    %c1_89 = arith.constant 1 : index
    %c0_90 = arith.constant 0 : index
    %102 = vector.load %arg5[%c1_88, %c1_89, %c0_90] : memref<18x18x4xf32, #tpu.memory_space<vmem>>, vector<16x16x4xf32>
    tpu.vector_store %arg5[%c1_88, %c1_89, %c0_90], %101 {strides = array<i32>} : memref<18x18x4xf32, #tpu.memory_space<vmem>>, vector<16x16x4xf32>,
    %103 = vector.extract_strided_slice %101 {offsets = [0, 1, 0], sizes = [16, 1, 4], strides = [1, 1, 1]} : vector<16x16x4xf32> to vector<16x1x4xf32>
    %c1_91 = arith.constant 1 : index
    %c0_92 = arith.constant 0 : index
    %c0_93 = arith.constant 0 : index
    %104 = vector.load %arg5[%c1_91, %c0_92, %c0_93] : memref<18x18x4xf32, #tpu.memory_space<vmem>>, vector<16x1x4xf32>
    tpu.vector_store %arg5[%c1_91, %c0_92, %c0_93], %103 {strides = array<i32>} : memref<18x18x4xf32, #tpu.memory_space<vmem>>, vector<16x1x4xf32>,
    %105 = vector.extract_strided_slice %101 {offsets = [0, 14, 0], sizes = [16, 1, 4], strides = [1, 1, 1]} : vector<16x16x4xf32> to vector<16x1x4xf32>
    %c1_94 = arith.constant 1 : index
    %c17 = arith.constant 17 : index
    %c0_95 = arith.constant 0 : index
    %106 = vector.load %arg5[%c1_94, %c17, %c0_95] : memref<18x18x4xf32, #tpu.memory_space<vmem>>, vector<16x1x4xf32>
    tpu.vector_store %arg5[%c1_94, %c17, %c0_95], %105 {strides = array<i32>} : memref<18x18x4xf32, #tpu.memory_space<vmem>>, vector<16x1x4xf32>,
    %c2_96 = arith.constant 2 : index
    %c0_97 = arith.constant 0 : index
    %c0_98 = arith.constant 0 : index
    %107 = vector.load %arg5[%c2_96, %c0_97, %c0_98] : memref<18x18x4xf32, #tpu.memory_space<vmem>>, vector<1x18x4xf32>
    %c0_99 = arith.constant 0 : index
    %c0_100 = arith.constant 0 : index
    %c0_101 = arith.constant 0 : index
    %108 = vector.load %arg5[%c0_99, %c0_100, %c0_101] : memref<18x18x4xf32, #tpu.memory_space<vmem>>, vector<1x18x4xf32>
    tpu.vector_store %arg5[%c0_99, %c0_100, %c0_101], %107 {strides = array<i32>} : memref<18x18x4xf32, #tpu.memory_space<vmem>>, vector<1x18x4xf32>,
    %c15 = arith.constant 15 : index
    %c0_102 = arith.constant 0 : index
    %c0_103 = arith.constant 0 : index
    %109 = vector.load %arg5[%c15, %c0_102, %c0_103] : memref<18x18x4xf32, #tpu.memory_space<vmem>>, vector<1x18x4xf32>
    %c17_104 = arith.constant 17 : index
    %c0_105 = arith.constant 0 : index
    %c0_106 = arith.constant 0 : index
    %110 = vector.load %arg5[%c17_104, %c0_105, %c0_106] : memref<18x18x4xf32, #tpu.memory_space<vmem>>, vector<1x18x4xf32>
    tpu.vector_store %arg5[%c17_104, %c0_105, %c0_106], %109 {strides = array<i32>} : memref<18x18x4xf32, #tpu.memory_space<vmem>>, vector<1x18x4xf32>,
    %c0_107 = arith.constant 0 : index
    %c0_108 = arith.constant 0 : index
    %c0_109 = arith.constant 0 : index
    %111 = vector.load %arg5[%c0_107, %c0_108, %c0_109] : memref<18x18x4xf32, #tpu.memory_space<vmem>>, vector<18x18x4xf32>
    %cst_110 = arith.constant 0.000000e+00 : f32
    %112 = vector.broadcast %cst_110 : f32 to vector<256x4xf32>
    %113 = vector.extract_strided_slice %111 {offsets = [0, 0, 0], sizes = [18, 16, 4], strides = [1, 1, 1]} : vector<18x18x4xf32> to vector<18x16x4xf32>
    %114 = arith.truncf %113 : vector<18x16x4xf32> to vector<18x16x4xbf16>
    %115 = vector.extract_strided_slice %114 {offsets = [0, 0, 0], sizes = [16, 16, 4], strides = [1, 1, 1]} : vector<18x16x4xbf16> to vector<16x16x4xbf16>
    %116 = vector.shape_cast %115 : vector<16x16x4xbf16> to vector<256x4xbf16>
    %cst_111 = arith.constant dense<0.000000e+00> : vector<256x4xf32>
    %117 = tpu.matmul %116, %21, %cst_111 {dimension_numbers = #tpu.dot_dimension_numbers<[1], [0], [0], [1], [0, 0, 1, 1], [], []>} : vector<256x4xbf16>, vector<4x4xbf16>, vector<256x4xf32> -> vector<256x4xf32>
    %118 = arith.addf %112, %117 : vector<256x4xf32>
    %119 = vector.extract_strided_slice %114 {offsets = [1, 0, 0], sizes = [16, 16, 4], strides = [1, 1, 1]} : vector<18x16x4xbf16> to vector<16x16x4xbf16>
    %120 = vector.shape_cast %119 : vector<16x16x4xbf16> to vector<256x4xbf16>
    %cst_112 = arith.constant dense<0.000000e+00> : vector<256x4xf32>
    %121 = tpu.matmul %120, %27, %cst_112 {dimension_numbers = #tpu.dot_dimension_numbers<[1], [0], [0], [1], [0, 0, 1, 1], [], []>} : vector<256x4xbf16>, vector<4x4xbf16>, vector<256x4xf32> -> vector<256x4xf32>
    %122 = arith.addf %118, %121 : vector<256x4xf32>
    %123 = vector.extract_strided_slice %114 {offsets = [2, 0, 0], sizes = [16, 16, 4], strides = [1, 1, 1]} : vector<18x16x4xbf16> to vector<16x16x4xbf16>
    %124 = vector.shape_cast %123 : vector<16x16x4xbf16> to vector<256x4xbf16>
    %cst_113 = arith.constant dense<0.000000e+00> : vector<256x4xf32>
    %125 = tpu.matmul %124, %33, %cst_113 {dimension_numbers = #tpu.dot_dimension_numbers<[1], [0], [0], [1], [0, 0, 1, 1], [], []>} : vector<256x4xbf16>, vector<4x4xbf16>, vector<256x4xf32> -> vector<256x4xf32>
    %126 = arith.addf %122, %125 : vector<256x4xf32>
    %127 = vector.extract_strided_slice %111 {offsets = [0, 1, 0], sizes = [18, 16, 4], strides = [1, 1, 1]} : vector<18x18x4xf32> to vector<18x16x4xf32>
    %128 = arith.truncf %127 : vector<18x16x4xf32> to vector<18x16x4xbf16>
    %129 = vector.extract_strided_slice %128 {offsets = [0, 0, 0], sizes = [16, 16, 4], strides = [1, 1, 1]} : vector<18x16x4xbf16> to vector<16x16x4xbf16>
    %130 = vector.shape_cast %129 : vector<16x16x4xbf16> to vector<256x4xbf16>
    %cst_114 = arith.constant dense<0.000000e+00> : vector<256x4xf32>
    %131 = tpu.matmul %130, %23, %cst_114 {dimension_numbers = #tpu.dot_dimension_numbers<[1], [0], [0], [1], [0, 0, 1, 1], [], []>} : vector<256x4xbf16>, vector<4x4xbf16>, vector<256x4xf32> -> vector<256x4xf32>
    %132 = arith.addf %126, %131 : vector<256x4xf32>
    %133 = vector.extract_strided_slice %128 {offsets = [1, 0, 0], sizes = [16, 16, 4], strides = [1, 1, 1]} : vector<18x16x4xbf16> to vector<16x16x4xbf16>
    %134 = vector.shape_cast %133 : vector<16x16x4xbf16> to vector<256x4xbf16>
    %cst_115 = arith.constant dense<0.000000e+00> : vector<256x4xf32>
    %135 = tpu.matmul %134, %29, %cst_115 {dimension_numbers = #tpu.dot_dimension_numbers<[1], [0], [0], [1], [0, 0, 1, 1], [], []>} : vector<256x4xbf16>, vector<4x4xbf16>, vector<256x4xf32> -> vector<256x4xf32>
    %136 = arith.addf %132, %135 : vector<256x4xf32>
    %137 = vector.extract_strided_slice %128 {offsets = [2, 0, 0], sizes = [16, 16, 4], strides = [1, 1, 1]} : vector<18x16x4xbf16> to vector<16x16x4xbf16>
    %138 = vector.shape_cast %137 : vector<16x16x4xbf16> to vector<256x4xbf16>
    %cst_116 = arith.constant dense<0.000000e+00> : vector<256x4xf32>
    %139 = tpu.matmul %138, %35, %cst_116 {dimension_numbers = #tpu.dot_dimension_numbers<[1], [0], [0], [1], [0, 0, 1, 1], [], []>} : vector<256x4xbf16>, vector<4x4xbf16>, vector<256x4xf32> -> vector<256x4xf32>
    %140 = arith.addf %136, %139 : vector<256x4xf32>
    %141 = vector.extract_strided_slice %111 {offsets = [0, 2, 0], sizes = [18, 16, 4], strides = [1, 1, 1]} : vector<18x18x4xf32> to vector<18x16x4xf32>
    %142 = arith.truncf %141 : vector<18x16x4xf32> to vector<18x16x4xbf16>
    %143 = vector.extract_strided_slice %142 {offsets = [0, 0, 0], sizes = [16, 16, 4], strides = [1, 1, 1]} : vector<18x16x4xbf16> to vector<16x16x4xbf16>
    %144 = vector.shape_cast %143 : vector<16x16x4xbf16> to vector<256x4xbf16>
    %cst_117 = arith.constant dense<0.000000e+00> : vector<256x4xf32>
    %145 = tpu.matmul %144, %25, %cst_117 {dimension_numbers = #tpu.dot_dimension_numbers<[1], [0], [0], [1], [0, 0, 1, 1], [], []>} : vector<256x4xbf16>, vector<4x4xbf16>, vector<256x4xf32> -> vector<256x4xf32>
    %146 = arith.addf %140, %145 : vector<256x4xf32>
    %147 = vector.extract_strided_slice %142 {offsets = [1, 0, 0], sizes = [16, 16, 4], strides = [1, 1, 1]} : vector<18x16x4xbf16> to vector<16x16x4xbf16>
    %148 = vector.shape_cast %147 : vector<16x16x4xbf16> to vector<256x4xbf16>
    %cst_118 = arith.constant dense<0.000000e+00> : vector<256x4xf32>
    %149 = tpu.matmul %148, %31, %cst_118 {dimension_numbers = #tpu.dot_dimension_numbers<[1], [0], [0], [1], [0, 0, 1, 1], [], []>} : vector<256x4xbf16>, vector<4x4xbf16>, vector<256x4xf32> -> vector<256x4xf32>
    %150 = arith.addf %146, %149 : vector<256x4xf32>
    %151 = vector.extract_strided_slice %142 {offsets = [2, 0, 0], sizes = [16, 16, 4], strides = [1, 1, 1]} : vector<18x16x4xbf16> to vector<16x16x4xbf16>
    %152 = vector.shape_cast %151 : vector<16x16x4xbf16> to vector<256x4xbf16>
    %cst_119 = arith.constant dense<0.000000e+00> : vector<256x4xf32>
    %153 = tpu.matmul %152, %37, %cst_119 {dimension_numbers = #tpu.dot_dimension_numbers<[1], [0], [0], [1], [0, 0, 1, 1], [], []>} : vector<256x4xbf16>, vector<4x4xbf16>, vector<256x4xf32> -> vector<256x4xf32>
    %154 = arith.addf %150, %153 : vector<256x4xf32>
    %cst_120 = arith.constant dense<0.000000e+00> : vector<4xf32>
    %155 = vector.multi_reduction <add>, %154, %cst_120 [0] : vector<256x4xf32> to vector<4xf32>
    %156 = vector.shape_cast %155 : vector<4xf32> to vector<1x4xf32>
    %157 = arith.mulf %154, %154 : vector<256x4xf32>
    %cst_121 = arith.constant dense<0.000000e+00> : vector<4xf32>
    %158 = vector.multi_reduction <add>, %157, %cst_121 [0] : vector<256x4xf32> to vector<4xf32>
    %159 = vector.shape_cast %158 : vector<4xf32> to vector<1x4xf32>
    %cst_122 = arith.constant 3.906250e-03 : f32
    %160 = vector.broadcast %cst_122 : f32 to vector<1x4xf32>
    %161 = arith.mulf %156, %160 : vector<1x4xf32>
    %cst_123 = arith.constant 3.906250e-03 : f32
    %162 = vector.broadcast %cst_123 : f32 to vector<1x4xf32>
    %163 = arith.mulf %159, %162 : vector<1x4xf32>
    %164 = arith.mulf %161, %161 : vector<1x4xf32>
    %165 = arith.subf %163, %164 : vector<1x4xf32>
    %166 = vector.broadcast %161 : vector<1x4xf32> to vector<256x4xf32>
    %167 = arith.subf %154, %166 : vector<256x4xf32>
    %cst_124 = arith.constant 9.99999974E-6 : f32
    %168 = vector.broadcast %cst_124 : f32 to vector<1x4xf32>
    %169 = arith.addf %165, %168 : vector<1x4xf32>
    %170 = math.rsqrt %169 : vector<1x4xf32>
    %171 = vector.broadcast %170 : vector<1x4xf32> to vector<256x4xf32>
    %172 = arith.mulf %167, %171 : vector<256x4xf32>
    %173 = vector.extract_strided_slice %1 {offsets = [1, 1, 0], sizes = [16, 16, 4], strides = [1, 1, 1]} : vector<18x18x4xf32> to vector<16x16x4xf32>
    %174 = vector.shape_cast %172 : vector<256x4xf32> to vector<16x16x4xf32>
    %175 = arith.addf %173, %174 : vector<16x16x4xf32>
    %c0_125 = arith.constant 0 : index
    %c0_126 = arith.constant 0 : index
    %c0_127 = arith.constant 0 : index
    %c0_128 = arith.constant 0 : index
    %176 = vector.load %arg4[%c0_125, %c0_126, %c0_127, %c0_128] : memref<1x16x16x4xf32, #tpu.memory_space<vmem>>, vector<1x16x16x4xf32>
    %177 = vector.shape_cast %176 : vector<1x16x16x4xf32> to vector<16x16x4xf32>
    %178 = vector.shape_cast %175 : vector<16x16x4xf32> to vector<1x16x16x4xf32>
    tpu.vector_store %arg4[%c0_125, %c0_126, %c0_127, %c0_128], %178 {strides = array<i32>} : memref<1x16x16x4xf32, #tpu.memory_space<vmem>>, vector<1x16x16x4xf32>,
    return
  }
  func.func @transform_0(%arg0: i32) -> (i32, i32, i32, i32) {
    %c0_i32 = arith.constant 0 : i32
    %c0_i32_0 = arith.constant 0 : i32
    %c0_i32_1 = arith.constant 0 : i32
    %c0_i32_2 = arith.constant 0 : i32
    return %arg0, %c0_i32, %c0_i32_0, %c0_i32_1 : i32, i32, i32, i32
  }
  func.func @transform_1(%arg0: i32) -> (i32, i32, i32, i32) {
    %c0_i32 = arith.constant 0 : i32
    %c0_i32_0 = arith.constant 0 : i32
    %c0_i32_1 = arith.constant 0 : i32
    %c0_i32_2 = arith.constant 0 : i32
    %c0_i32_3 = arith.constant 0 : i32
    return %c0_i32, %c0_i32_0, %c0_i32_1, %c0_i32_2 : i32, i32, i32, i32
  }
  func.func @transform_2(%arg0: i32) -> (i32, i32, i32, i32) {
    %c0_i32 = arith.constant 0 : i32
    %c0_i32_0 = arith.constant 0 : i32
    %c0_i32_1 = arith.constant 0 : i32
    %c0_i32_2 = arith.constant 0 : i32
    %c0_i32_3 = arith.constant 0 : i32
    return %c0_i32, %c0_i32_0, %c0_i32_1, %c0_i32_2 : i32, i32, i32, i32
  }
  func.func @transform_3(%arg0: i32) -> (i32, i32, i32, i32) {
    %c0_i32 = arith.constant 0 : i32
    %c0_i32_0 = arith.constant 0 : i32
    %c0_i32_1 = arith.constant 0 : i32
    %c0_i32_2 = arith.constant 0 : i32
    return %arg0, %c0_i32, %c0_i32_0, %c0_i32_1 : i32, i32, i32, i32
  }
}

</mosaic_0001>

<llo_original>
// kernel: tpu_custom_call.1
$region0: #{tpu_custom_call.1}
  #allocation0 [shape = 'u32[]', space=smem, size = 0x4, offset = 0x4, fixed_abs, tag = 'smem constant byte address 0x4 - core index']
  #allocation1 [shape = 'u32[72,128]{1,0:T(1,128)}', space=vmem, size = 0x9000, scoped, tag = 'internal scratch']
  #allocation2 [shape = 'f32[18,18,4]{2,1,0:T(8,128)}', space=vmem, size = 0x36000, scoped, tag = 'scratch operand']
  %s0 = inlined_call_operand.vmem [shape: f32[2,18,18,4], index: 0, kind: input, shape index: {}]
  %s1 = inlined_call_operand.vmem [shape: bf16[3,3,4,4], index: 1, kind: input, shape index: {}]
  %s2 = inlined_call_operand.vmem [shape: bf16[3,3,4,4], index: 2, kind: input, shape index: {}]
  %s3 = inlined_call_operand.vmem [shape: f32[2,16,16,4], index: 3, kind: output, shape index: {}]
  %s4 = sld [smem:[#allocation0]]
  $region45: #{tpu_custom_call.1} parent=0
    _
  %s6 = ssub.s32 1, %s4
  %s7 = scalar_select 0, %s6, %s4
  loop: start=0, step=1, limit=4
  $region2: #{tpu_custom_call.1} parent=0 // loop_pre_header
    _
  $region3: #{tpu_custom_call.1} parent=0 // loop_header
    %s9 = sphi 0, %s13
    %p10 = scmp.ge.s32.totalorder %s9, 4
    %s19 = sphi 0, %s21
    %s22 = sphi 0, %s19
    %s23 = sphi 0, %s22
    %s39 = sphi 0, %s23
    %s43 = sphi 0, %s43
    %s45 = sphi 0, %s43
    %s46 = sphi 0, %s45
    %s60 = sphi 0, %s46
    %s64 = sphi 0, %s64
    %s66 = sphi 0, %s64
    %s67 = sphi 0, %s66
    %s81 = sphi 0, %s67
    %s87 = sphi 0, %s89
    %s90 = sphi 0, %s87
    %s91 = sphi 0, %s90
    %s107 = sphi 0, %s91
  $region4: #{tpu_custom_call.1} parent=0 // loop_header_branch
    %12 = sbr.rel (%p10) target = $region8
  $region5: #{tpu_custom_call.1} parent=0 // loop_body
    %s14 = ssub.s32 %s9, 1
    %s15 = ssub.s32 %s9, 2
    %s16 = sadd.s32 %s9, 1
    %s17 = ssub.s32 %s9, %s16
    %p18 = scmp.eq.s32.totalorder %s17, 0
    %s20 = sadd.s32 %s19, 1
    %s21 = scalar_select %p18, %s19, %s20
    %p24 = pneg %p18
    %p25 = scmp.eq.s32.totalorder %s9, 1
    %p26 = por %p24, %p25
    %p27 = scmp.ne.s32.totalorder %s19, %s22
    %p28 = scmp.eq.s32.totalorder %s9, 0
    %p29 = por %p27, %p28
    %p30 = scmp.ne.s32.totalorder %s19, %s22
    %p31 = scmp.eq.s32.totalorder %s14, 1
    %p32 = por %p30, %p31
    %p33 = scmp.ne.s32.totalorder %s22, %s23
    %p34 = scmp.eq.s32.totalorder %s14, 0
    %p35 = por %p33, %p34
    %p36 = scmp.ne.s32.totalorder %s22, %s23
    %p37 = scmp.eq.s32.totalorder %s15, 1
    %p38 = por %p36, %p37
    %p40 = scmp.ne.s32.totalorder %s23, %s39
    %p41 = scmp.eq.s32.totalorder %s15, 0
    %p42 = por %p40, %p41
    %s44 = sadd.s32 %s43, 1
    %p47 = scmp.eq.s32.totalorder %s9, 1
    %p48 = scmp.ne.s32.totalorder %s43, %s45
    %p49 = scmp.eq.s32.totalorder %s9, 0
    %p50 = por %p48, %p49
    %p51 = scmp.ne.s32.totalorder %s43, %s45
    %p52 = scmp.eq.s32.totalorder %s14, 1
    %p53 = por %p51, %p52
    %p54 = scmp.ne.s32.totalorder %s45, %s46
    %p55 = scmp.eq.s32.totalorder %s14, 0
    %p56 = por %p54, %p55
    %p57 = scmp.ne.s32.totalorder %s45, %s46
    %p58 = scmp.eq.s32.totalorder %s15, 1
    %p59 = por %p57, %p58
    %p61 = scmp.ne.s32.totalorder %s46, %s60
    %p62 = scmp.eq.s32.totalorder %s15, 0
    %p63 = por %p61, %p62
    %s65 = sadd.s32 %s64, 1
    %p68 = scmp.eq.s32.totalorder %s9, 1
    %p69 = scmp.ne.s32.totalorder %s64, %s66
    %p70 = scmp.eq.s32.totalorder %s9, 0
    %p71 = por %p69, %p70
    %p72 = scmp.ne.s32.totalorder %s64, %s66
    %p73 = scmp.eq.s32.totalorder %s14, 1
    %p74 = por %p72, %p73
    %p75 = scmp.ne.s32.totalorder %s66, %s67
    %p76 = scmp.eq.s32.totalorder %s14, 0
    %p77 = por %p75, %p76
    %p78 = scmp.ne.s32.totalorder %s66, %s67
    %p79 = scmp.eq.s32.totalorder %s15, 1
    %p80 = por %p78, %p79
    %p82 = scmp.ne.s32.totalorder %s67, %s81
    %p83 = scmp.eq.s32.totalorder %s15, 0
    %p84 = por %p82, %p83
    %s85 = ssub.s32 %s9, %s16
    %p86 = scmp.eq.s32.totalorder %s85, 0
    %s88 = sadd.s32 %s87, 1
    %s89 = scalar_select %p86, %s87, %s88
    %p92 = pneg %p86
    %p93 = scmp.eq.s32.totalorder %s9, 1
    %p94 = por %p92, %p93
    %p95 = scmp.ne.s32.totalorder %s87, %s90
    %p96 = scmp.eq.s32.totalorder %s9, 0
    %p97 = por %p95, %p96
    %p98 = scmp.ne.s32.totalorder %s87, %s90
    %p99 = scmp.eq.s32.totalorder %s14, 1
    %p100 = por %p98, %p99
    %p101 = scmp.ne.s32.totalorder %s90, %s91
    %p102 = scmp.eq.s32.totalorder %s14, 0
    %p103 = por %p101, %p102
    %p104 = scmp.ne.s32.totalorder %s90, %s91
    %p105 = scmp.eq.s32.totalorder %s15, 1
    %p106 = por %p104, %p105
    %p108 = scmp.ne.s32.totalorder %s91, %s107
    %p109 = scmp.eq.s32.totalorder %s15, 0
    %p110 = por %p108, %p109
    %p111 = scmp.le.s32.totalorder 1, %s9
    %p112 = scmp.lt.s32.totalorder %s9, 3
    %p113 = pnand %p111, %p112
    %p114 = pneg %p113
    // Predicated region
    $region9: #{tpu_custom_call.1} parent=5 // pred_check
      _
    $region10: #{tpu_custom_call.1} parent=5 // pred_check_branch
      %116 = sbr.rel (%p113) target = $region12
    $region11: #{tpu_custom_call.1} parent=5 // pred_region
      %s117 = ssub.s32 %s9, 1
      // Predicated region
      $region13: #{tpu_custom_call.1} parent=11 // pred_check
        %p118 = pneg %p56
      $region14: #{tpu_custom_call.1} parent=11 // pred_check_branch
        %120 = sbr.rel (%p118) target = $region16
      $region15: #{tpu_custom_call.1} parent=11 // pred_region
        _
      $region16: #{tpu_custom_call.1} parent=11 // pred_fallthru
        _
      // Predicated region
      $region17: #{tpu_custom_call.1} parent=11 // pred_check
        %p121 = pneg %p77
      $region18: #{tpu_custom_call.1} parent=11 // pred_check_branch
        %123 = sbr.rel (%p121) target = $region20
      $region19: #{tpu_custom_call.1} parent=11 // pred_region
        _
      $region20: #{tpu_custom_call.1} parent=11 // pred_fallthru
        _
    $region12: #{tpu_custom_call.1} parent=5 // pred_fallthru
      _
    %p124 = scmp.lt.s32.totalorder %s9, 2
    // Predicated region
    $region21: #{tpu_custom_call.1} parent=5 // pred_check
      %p125 = pneg %p124
    $region22: #{tpu_custom_call.1} parent=5 // pred_check_branch
      %127 = sbr.rel (%p125) target = $region24
    $region23: #{tpu_custom_call.1} parent=5 // pred_region
      // Predicated region
      $region25: #{tpu_custom_call.1} parent=23 // pred_check
        %p128 = pneg %p29
      $region26: #{tpu_custom_call.1} parent=23 // pred_check_branch
        %130 = sbr.rel (%p128) target = $region28
      $region27: #{tpu_custom_call.1} parent=23 // pred_region
        %p131 = scmp.lt.s32.totalorder %s9, 1
        %s132 = scalar_select %p131, %s9, 1
        %s133 = smul.addr %s132, 54
        %s134 = smul.addr %s133, 8
        %s135 = scalar_lea.vmem %s0, %s134
      $region28: #{tpu_custom_call.1} parent=23 // pred_fallthru
        _
    $region24: #{tpu_custom_call.1} parent=5 // pred_fallthru
      _
    %p136 = scmp.le.s32.totalorder 1, %s9
    %p137 = scmp.lt.s32.totalorder %s9, 3
    %p138 = pnand %p136, %p137
    %p139 = pneg %p138
    // Predicated region
    $region29: #{tpu_custom_call.1} parent=5 // pred_check
      _
    $region30: #{tpu_custom_call.1} parent=5 // pred_check_branch
      %141 = sbr.rel (%p138) target = $region32
    $region31: #{tpu_custom_call.1} parent=5 // pred_region
      %s142 = ssub.s32 %s9, 1
      %p143 = scmp.lt.s32.totalorder %s14, 1
      %s144 = scalar_select %p143, %s14, 1
      %s145 = smul.addr %s144, 54
      %s146 = smul.addr %s145, 8
      %s147 = scalar_lea.vmem %s0, %s146
      %p148 = pneg %p35
      %p149 = pneg %p32
      %p150 = pneg %p56
      %p151 = pneg %p53
      %p152 = pneg %p77
      %p153 = pneg %p74
      %p154 = pneg %p103
      %p155 = pneg %p100
      %p156 = scmp.lt.s32.totalorder %s14, 1
      %s157 = scalar_select %p156, %s14, 1
      %s158 = smul.addr %s157, 32
      %s159 = smul.addr %s158, 8
      %s160 = scalar_lea.vmem %s3, %s159
      %p161 = scmp.lt.s32.totalorder %s14, 1
      %s162 = scalar_select %p161, %s14, 1
      %s163 = smul.addr %s162, 54
      %s164 = smul.addr %s163, 8
      %s165 = scalar_lea.vmem %s0, %s164
      %p166 = scmp.lt.s32.totalorder %s14, 1
      %s167 = scalar_select %p166, %s14, 1
      %s168 = smul.addr %s167, 32
      %s169 = smul.addr %s168, 8
      %s170 = scalar_lea.vmem %s3, %s169
      %v172 = vld [vmem:[%s165] sm:$0xff]
      %v173 = vld [vmem:[%s165 + $0x8] sm:$0xff]
      %v174 = vld [vmem:[%s165 + $0x10] sm:$0x3]
      %v175 = vld [vmem:[%s165 + $0x18] sm:$0xff]
      %v176 = vld [vmem:[%s165 + $0x20] sm:$0xff]
      %v177 = vld [vmem:[%s165 + $0x28] sm:$0x3]
      %v178 = vld [vmem:[%s165 + $0x30] sm:$0xff]
      %v179 = vld [vmem:[%s165 + $0x38] sm:$0xff]
      %v180 = vld [vmem:[%s165 + $0x40] sm:$0x3]
      %v181 = vld [vmem:[%s165 + $0x48] sm:$0xff]
      %v182 = vld [vmem:[%s165 + $0x50] sm:$0xff]
      %v183 = vld [vmem:[%s165 + $0x58] sm:$0x3]
      %v184 = vld [vmem:[%s165 + $0x60] sm:$0xff]
      %v185 = vld [vmem:[%s165 + $0x68] sm:$0xff]
      %v186 = vld [vmem:[%s165 + $0x70] sm:$0x3]
      %v187 = vld [vmem:[%s165 + $0x78] sm:$0xff]
      %v188 = vld [vmem:[%s165 + $0x80] sm:$0xff]
      %v189 = vld [vmem:[%s165 + $0x88] sm:$0x3]
      %v190 = vld [vmem:[%s165 + $0x90] sm:$0xff]
      %v191 = vld [vmem:[%s165 + $0x98] sm:$0xff]
      %v192 = vld [vmem:[%s165 + $0xa0] sm:$0x3]
      %v193 = vld [vmem:[%s165 + $0xa8] sm:$0xff]
      %v194 = vld [vmem:[%s165 + $0xb0] sm:$0xff]
      %v195 = vld [vmem:[%s165 + $0xb8] sm:$0x3]
      %v196 = vld [vmem:[%s165 + $0xc0] sm:$0xff]
      %v197 = vld [vmem:[%s165 + $0xc8] sm:$0xff]
      %v198 = vld [vmem:[%s165 + $0xd0] sm:$0x3]
      %v199 = vld [vmem:[%s165 + $0xd8] sm:$0xff]
      %v200 = vld [vmem:[%s165 + $0xe0] sm:$0xff]
      %v201 = vld [vmem:[%s165 + $0xe8] sm:$0x3]
      %v202 = vld [vmem:[%s165 + $0xf0] sm:$0xff]
      %v203 = vld [vmem:[%s165 + $0xf8] sm:$0xff]
      %v204 = vld [vmem:[%s165 + $0x100] sm:$0x3]
      %v205 = vld [vmem:[%s165 + $0x108] sm:$0xff]
      %v206 = vld [vmem:[%s165 + $0x110] sm:$0xff]
      %v207 = vld [vmem:[%s165 + $0x118] sm:$0x3]
      %v208 = vld [vmem:[%s165 + $0x120] sm:$0xff]
      %v209 = vld [vmem:[%s165 + $0x128] sm:$0xff]
      %v210 = vld [vmem:[%s165 + $0x130] sm:$0x3]
      %v211 = vld [vmem:[%s165 + $0x138] sm:$0xff]
      %v212 = vld [vmem:[%s165 + $0x140] sm:$0xff]
      %v213 = vld [vmem:[%s165 + $0x148] sm:$0x3]
      %v214 = vld [vmem:[%s165 + $0x150] sm:$0xff]
      %v215 = vld [vmem:[%s165 + $0x158] sm:$0xff]
      %v216 = vld [vmem:[%s165 + $0x160] sm:$0x3]
      %v217 = vld [vmem:[%s165 + $0x168] sm:$0xff]
      %v218 = vld [vmem:[%s165 + $0x170] sm:$0xff]
      %v219 = vld [vmem:[%s165 + $0x178] sm:$0x3]
      %v220 = vld [vmem:[%s165 + $0x180] sm:$0xff]
      %v221 = vld [vmem:[%s165 + $0x188] sm:$0xff]
      %v222 = vld [vmem:[%s165 + $0x190] sm:$0x3]
      %v223 = vld [vmem:[%s165 + $0x198] sm:$0xff]
      %v224 = vld [vmem:[%s165 + $0x1a0] sm:$0xff]
      %v225 = vld [vmem:[%s165 + $0x1a8] sm:$0x3]
      %v226 = vld [vmem:[%s1] sm:$0x3]
      %s227 = scalar_lea.vmem %s1, 2
      %v228 = vld [vmem:[%s227] sm:$0x3]
      %s229 = scalar_lea.vmem %s1, 4
      %v230 = vld [vmem:[%s229] sm:$0x3]
      %s231 = scalar_lea.vmem %s1, 6
      %v232 = vld [vmem:[%s231] sm:$0x3]
      %s233 = scalar_lea.vmem %s1, 8
      %v234 = vld [vmem:[%s233] sm:$0x3]
      %s235 = scalar_lea.vmem %s1, 10
      %v236 = vld [vmem:[%s235] sm:$0x3]
      %s237 = scalar_lea.vmem %s1, 12
      %v238 = vld [vmem:[%s237] sm:$0x3]
      %s239 = scalar_lea.vmem %s1, 14
      %v240 = vld [vmem:[%s239] sm:$0x3]
      %s241 = scalar_lea.vmem %s1, 16
      %v242 = vld [vmem:[%s241] sm:$0x3]
      %v243 = vld [vmem:[%s2] sm:$0x3]
      %s244 = scalar_lea.vmem %s2, 2
      %v245 = vld [vmem:[%s244] sm:$0x3]
      %s246 = scalar_lea.vmem %s2, 4
      %v247 = vld [vmem:[%s246] sm:$0x3]
      %s248 = scalar_lea.vmem %s2, 6
      %v249 = vld [vmem:[%s248] sm:$0x3]
      %s250 = scalar_lea.vmem %s2, 8
      %v251 = vld [vmem:[%s250] sm:$0x3]
      %s252 = scalar_lea.vmem %s2, 10
      %v253 = vld [vmem:[%s252] sm:$0x3]
      %s254 = scalar_lea.vmem %s2, 12
      %v255 = vld [vmem:[%s254] sm:$0x3]
      %s256 = scalar_lea.vmem %s2, 14
      %v257 = vld [vmem:[%s256] sm:$0x3]
      %s258 = scalar_lea.vmem %s2, 16
      %v259 = vld [vmem:[%s258] sm:$0x3]
      %v260 = vpack.c.bf16 %v172, %v172
      %v261 = vpack.c.bf16 %v173, %v173
      %v262 = vpack.c.bf16 %v175, %v175
      %v263 = vpack.c.bf16 %v176, %v176
      %v264 = vpack.c.bf16 %v178, %v178
      %v265 = vpack.c.bf16 %v179, %v179
      %v266 = vpack.c.bf16 %v181, %v181
      %v267 = vpack.c.bf16 %v182, %v182
      %v268 = vpack.c.bf16 %v184, %v184
      %v269 = vpack.c.bf16 %v185, %v185
      %v270 = vpack.c.bf16 %v187, %v187
      %v271 = vpack.c.bf16 %v188, %v188
      %v272 = vpack.c.bf16 %v190, %v190
      %v273 = vpack.c.bf16 %v191, %v191
      %v274 = vpack.c.bf16 %v193, %v193
      %v275 = vpack.c.bf16 %v194, %v194
      %v276 = vpack.c.bf16 %v196, %v196
      %v277 = vpack.c.bf16 %v197, %v197
      %v278 = vpack.c.bf16 %v199, %v199
      %v279 = vpack.c.bf16 %v200, %v200
      %v280 = vpack.c.bf16 %v202, %v202
      %v281 = vpack.c.bf16 %v203, %v203
      %v282 = vpack.c.bf16 %v205, %v205
      %v283 = vpack.c.bf16 %v206, %v206
      %v284 = vpack.c.bf16 %v208, %v208
      %v285 = vpack.c.bf16 %v209, %v209
      %v286 = vpack.c.bf16 %v211, %v211
      %v287 = vpack.c.bf16 %v212, %v212
      %v288 = vpack.c.bf16 %v214, %v214
      %v289 = vpack.c.bf16 %v215, %v215
      %v290 = vpack.c.bf16 %v217, %v217
      %v291 = vpack.c.bf16 %v218, %v218
      %v292 = vpack.c.bf16 %v220, %v220
      %v293 = vpack.c.bf16 %v221, %v221
      %v294 = vpack.c.bf16 %v223, %v223
      %v295 = vpack.c.bf16 %v224, %v224
      %v328 = vunpack.c.l.b16 %v262
      %v329 = vunpack.c.l.b16 %v263
      %v330 = vunpack.c.l.b16 %v264
      %v331 = vunpack.c.l.b16 %v265
      %v332 = vunpack.c.l.b16 %v266
      %v333 = vunpack.c.l.b16 %v267
      %v334 = vunpack.c.l.b16 %v268
      %v335 = vunpack.c.l.b16 %v269
      %v336 = vunpack.c.l.b16 %v270
      %v337 = vunpack.c.l.b16 %v271
      %v338 = vunpack.c.l.b16 %v272
      %v339 = vunpack.c.l.b16 %v273
      %v340 = vunpack.c.l.b16 %v274
      %v341 = vunpack.c.l.b16 %v275
      %v342 = vunpack.c.l.b16 %v276
      %v343 = vunpack.c.l.b16 %v277
      %v344 = vunpack.c.l.b16 %v278
      %v345 = vunpack.c.l.b16 %v279
      %v346 = vunpack.c.l.b16 %v280
      %v347 = vunpack.c.l.b16 %v281
      %v348 = vunpack.c.l.b16 %v282
      %v349 = vunpack.c.l.b16 %v283
      %v350 = vunpack.c.l.b16 %v284
      %v351 = vunpack.c.l.b16 %v285
      %v352 = vunpack.c.l.b16 %v286
      %v353 = vunpack.c.l.b16 %v287
      %v354 = vunpack.c.l.b16 %v288
      %v355 = vunpack.c.l.b16 %v289
      %v356 = vunpack.c.l.b16 %v290
      %v357 = vunpack.c.l.b16 %v291
      %v358 = vunpack.c.l.b16 %v292
      %v359 = vunpack.c.l.b16 %v293
      %v360 = vpack.c.b16 %v329, %v328
      %v361 = vpack.c.b16 %v331, %v330
      %v362 = vpack.c.b16 %v333, %v332
      %v363 = vpack.c.b16 %v335, %v334
      %v364 = vpack.c.b16 %v337, %v336
      %v365 = vpack.c.b16 %v339, %v338
      %v366 = vpack.c.b16 %v341, %v340
      %v367 = vpack.c.b16 %v343, %v342
      %v368 = vpack.c.b16 %v345, %v344
      %v369 = vpack.c.b16 %v347, %v346
      %v370 = vpack.c.b16 %v349, %v348
      %v371 = vpack.c.b16 %v351, %v350
      %v372 = vpack.c.b16 %v353, %v352
      %v373 = vpack.c.b16 %v355, %v354
      %v374 = vpack.c.b16 %v357, %v356
      %v375 = vpack.c.b16 %v359, %v358
      %vm376 = vcmask 31744
      %v378 = vsel %vm376, %v360, 0
      %v381 = vsel %vm376, %v361, 0
      %v384 = vsel %vm376, %v362, 0
      %v387 = vsel %vm376, %v363, 0
      %v390 = vsel %vm376, %v364, 0
      %v393 = vsel %vm376, %v365, 0
      %v396 = vsel %vm376, %v366, 0
      %v399 = vsel %vm376, %v367, 0
      %v402 = vsel %vm376, %v368, 0
      %v405 = vsel %vm376, %v369, 0
      %v408 = vsel %vm376, %v370, 0
      %v411 = vsel %vm376, %v371, 0
      %v414 = vsel %vm376, %v372, 0
      %v417 = vsel %vm376, %v373, 0
      %v420 = vsel %vm376, %v374, 0
      %v423 = vsel %vm376, %v375, 0
      %vm425 = vcmask 1041408
      %v427 = vsel %vm425, %v232, 0
      %429 = vmatpush.bf16.msra.mxu0 0
      %430 = vmatpush.bf16.msra.mxu0 0
      %431 = vmatpush.bf16.msra.mxu0 0
      %432 = vmatpush.bf16.msra.mxu0 0
      %433 = vmatpush.bf16.msra.mxu0 0
      %434 = vmatpush.bf16.msra.mxu0 0
      %435 = vmatpush.bf16.msra.mxu0 0
      %436 = vmatpush.bf16.msra.mxu0 %v427
      %437 = vmatmul.bf16.gmra.mxu0 %v378
      %v438 = vpop.f32.mrf.mxu0
      %v439 = vadd.f32 0.0, %v438
      %v440 = vpop.f32.mrf.mxu0
      %v441 = vadd.f32 0.0, %v440
      %442 = vmatmul.bf16.gmra.mxu0 %v381
      %v443 = vpop.f32.mrf.mxu0
      %v444 = vadd.f32 0.0, %v443
      %v445 = vpop.f32.mrf.mxu0
      %v446 = vadd.f32 0.0, %v445
      %447 = vmatmul.bf16.gmra.mxu0 %v384
      %v448 = vpop.f32.mrf.mxu0
      %v449 = vadd.f32 0.0, %v448
      %v450 = vpop.f32.mrf.mxu0
      %v451 = vadd.f32 0.0, %v450
      %452 = vmatmul.bf16.gmra.mxu0 %v387
      %v453 = vpop.f32.mrf.mxu0
      %v454 = vadd.f32 0.0, %v453
      %v455 = vpop.f32.mrf.mxu0
      %v456 = vadd.f32 0.0, %v455
      %457 = vmatmul.bf16.gmra.mxu0 %v390
      %v458 = vpop.f32.mrf.mxu0
      %v459 = vadd.f32 0.0, %v458
      %v460 = vpop.f32.mrf.mxu0
      %v461 = vadd.f32 0.0, %v460
      %462 = vmatmul.bf16.gmra.mxu0 %v393
      %v463 = vpop.f32.mrf.mxu0
      %v464 = vadd.f32 0.0, %v463
      %v465 = vpop.f32.mrf.mxu0
      %v466 = vadd.f32 0.0, %v465
      %467 = vmatmul.bf16.gmra.mxu0 %v396
      %v468 = vpop.f32.mrf.mxu0
      %v469 = vadd.f32 0.0, %v468
      %v470 = vpop.f32.mrf.mxu0
      %v471 = vadd.f32 0.0, %v470
      %472 = vmatmul.bf16.gmra.mxu0 %v399
      %v473 = vpop.f32.mrf.mxu0
      %v474 = vadd.f32 0.0, %v473
      %v475 = vpop.f32.mrf.mxu0
      %v476 = vadd.f32 0.0, %v475
      %477 = vmatmul.bf16.gmra.mxu0 %v402
      %v478 = vpop.f32.mrf.mxu0
      %v479 = vadd.f32 0.0, %v478
      %v480 = vpop.f32.mrf.mxu0
      %v481 = vadd.f32 0.0, %v480
      %482 = vmatmul.bf16.gmra.mxu0 %v405
      %v483 = vpop.f32.mrf.mxu0
      %v484 = vadd.f32 0.0, %v483
      %v485 = vpop.f32.mrf.mxu0
      %v486 = vadd.f32 0.0, %v485
      %487 = vmatmul.bf16.gmra.mxu0 %v408
      %v488 = vpop.f32.mrf.mxu0
      %v489 = vadd.f32 0.0, %v488
      %v490 = vpop.f32.mrf.mxu0
      %v491 = vadd.f32 0.0, %v490
      %492 = vmatmul.bf16.gmra.mxu0 %v411
      %v493 = vpop.f32.mrf.mxu0
      %v494 = vadd.f32 0.0, %v493
      %v495 = vpop.f32.mrf.mxu0
      %v496 = vadd.f32 0.0, %v495
      %497 = vmatmul.bf16.gmra.mxu0 %v414
      %v498 = vpop.f32.mrf.mxu0
      %v499 = vadd.f32 0.0, %v498
      %v500 = vpop.f32.mrf.mxu0
      %v501 = vadd.f32 0.0, %v500
      %502 = vmatmul.bf16.gmra.mxu0 %v417
      %v503 = vpop.f32.mrf.mxu0
      %v504 = vadd.f32 0.0, %v503
      %v505 = vpop.f32.mrf.mxu0
      %v506 = vadd.f32 0.0, %v505
      %507 = vmatmul.bf16.gmra.mxu0 %v420
      %v508 = vpop.f32.mrf.mxu0
      %v509 = vadd.f32 0.0, %v508
      %v510 = vpop.f32.mrf.mxu0
      %v511 = vadd.f32 0.0, %v510
      %512 = vmatmul.bf16.gmra.mxu0 %v423
      %v513 = vpop.f32.mrf.mxu0
      %v514 = vadd.f32 0.0, %v513
      %v515 = vpop.f32.mrf.mxu0
      %v516 = vadd.f32 0.0, %v515
      %517 = vdwg.mxu0
      %v520 = vunpack.c.l.b16 %v260
      %v521 = vunpack.c.l.b16 %v261
      %v522 = vpack.c.b16 %v521, %v520
      %v524 = vsel %vm376, %v522, 0
      %v527 = vsel %vm425, %v226, 0
      %529 = vmatpush.bf16.msra.mxu0 0
      %530 = vmatpush.bf16.msra.mxu0 0
      %531 = vmatpush.bf16.msra.mxu0 0
      %532 = vmatpush.bf16.msra.mxu0 0
      %533 = vmatpush.bf16.msra.mxu0 0
      %534 = vmatpush.bf16.msra.mxu0 0
      %535 = vmatpush.bf16.msra.mxu0 0
      %536 = vmatpush.bf16.msra.mxu0 %v527
      %537 = vmatmul.bf16.gmra.mxu0 %v524
      %v538 = vpop.f32.mrf.mxu0
      %v539 = vadd.f32 %v439, %v538
      %v540 = vpop.f32.mrf.mxu0
      %v541 = vadd.f32 %v441, %v540
      %542 = vmatmul.bf16.gmra.mxu0 %v378
      %v543 = vpop.f32.mrf.mxu0
      %v544 = vadd.f32 %v444, %v543
      %v545 = vpop.f32.mrf.mxu0
      %v546 = vadd.f32 %v446, %v545
      %547 = vmatmul.bf16.gmra.mxu0 %v381
      %v548 = vpop.f32.mrf.mxu0
      %v549 = vadd.f32 %v449, %v548
      %v550 = vpop.f32.mrf.mxu0
      %v551 = vadd.f32 %v451, %v550
      %552 = vmatmul.bf16.gmra.mxu0 %v384
      %v553 = vpop.f32.mrf.mxu0
      %v554 = vadd.f32 %v454, %v553
      %v555 = vpop.f32.mrf.mxu0
      %v556 = vadd.f32 %v456, %v555
      %557 = vmatmul.bf16.gmra.mxu0 %v387
      %v558 = vpop.f32.mrf.mxu0
      %v559 = vadd.f32 %v459, %v558
      %v560 = vpop.f32.mrf.mxu0
      %v561 = vadd.f32 %v461, %v560
      %562 = vmatmul.bf16.gmra.mxu0 %v390
      %v563 = vpop.f32.mrf.mxu0
      %v564 = vadd.f32 %v464, %v563
      %v565 = vpop.f32.mrf.mxu0
      %v566 = vadd.f32 %v466, %v565
      %567 = vmatmul.bf16.gmra.mxu0 %v393
      %v568 = vpop.f32.mrf.mxu0
      %v569 = vadd.f32 %v469, %v568
      %v570 = vpop.f32.mrf.mxu0
      %v571 = vadd.f32 %v471, %v570
      %572 = vmatmul.bf16.gmra.mxu0 %v396
      %v573 = vpop.f32.mrf.mxu0
      %v574 = vadd.f32 %v474, %v573
      %v575 = vpop.f32.mrf.mxu0
      %v576 = vadd.f32 %v476, %v575
      %577 = vmatmul.bf16.gmra.mxu0 %v399
      %v578 = vpop.f32.mrf.mxu0
      %v579 = vadd.f32 %v479, %v578
      %v580 = vpop.f32.mrf.mxu0
      %v581 = vadd.f32 %v481, %v580
      %582 = vmatmul.bf16.gmra.mxu0 %v402
      %v583 = vpop.f32.mrf.mxu0
      %v584 = vadd.f32 %v484, %v583
      %v585 = vpop.f32.mrf.mxu0
      %v586 = vadd.f32 %v486, %v585
      %587 = vmatmul.bf16.gmra.mxu0 %v405
      %v588 = vpop.f32.mrf.mxu0
      %v589 = vadd.f32 %v489, %v588
      %v590 = vpop.f32.mrf.mxu0
      %v591 = vadd.f32 %v491, %v590
      %592 = vmatmul.bf16.gmra.mxu0 %v408
      %v593 = vpop.f32.mrf.mxu0
      %v594 = vadd.f32 %v494, %v593
      %v595 = vpop.f32.mrf.mxu0
      %v596 = vadd.f32 %v496, %v595
      %597 = vmatmul.bf16.gmra.mxu0 %v411
      %v598 = vpop.f32.mrf.mxu0
      %v599 = vadd.f32 %v499, %v598
      %v600 = vpop.f32.mrf.mxu0
      %v601 = vadd.f32 %v501, %v600
      %602 = vmatmul.bf16.gmra.mxu0 %v414
      %v603 = vpop.f32.mrf.mxu0
      %v604 = vadd.f32 %v504, %v603
      %v605 = vpop.f32.mrf.mxu0
      %v606 = vadd.f32 %v506, %v605
      %607 = vmatmul.bf16.gmra.mxu0 %v417
      %v608 = vpop.f32.mrf.mxu0
      %v609 = vadd.f32 %v509, %v608
      %v610 = vpop.f32.mrf.mxu0
      %v611 = vadd.f32 %v511, %v610
      %612 = vmatmul.bf16.gmra.mxu0 %v420
      %v613 = vpop.f32.mrf.mxu0
      %v614 = vadd.f32 %v514, %v613
      %v615 = vpop.f32.mrf.mxu0
      %v616 = vadd.f32 %v516, %v615
      %617 = vdwg.mxu0
      %v620 = vunpack.c.l.b16 %v294
      %v621 = vunpack.c.l.b16 %v295
      %v622 = vpack.c.b16 %v621, %v620
      %v624 = vsel %vm376, %v622, 0
      %v627 = vsel %vm425, %v238, 0
      %629 = vmatpush.bf16.msra.mxu0 0
      %630 = vmatpush.bf16.msra.mxu0 0
      %631 = vmatpush.bf16.msra.mxu0 0
      %632 = vmatpush.bf16.msra.mxu0 0
      %633 = vmatpush.bf16.msra.mxu0 0
      %634 = vmatpush.bf16.msra.mxu0 0
      %635 = vmatpush.bf16.msra.mxu0 0
      %636 = vmatpush.bf16.msra.mxu0 %v627
      %637 = vmatmul.bf16.gmra.mxu0 %v381
      %v638 = vpop.f32.mrf.mxu0
      %v639 = vadd.f32 0.0, %v638
      %v640 = vpop.f32.mrf.mxu0
      %v641 = vadd.f32 0.0, %v640
      %642 = vmatmul.bf16.gmra.mxu0 %v384
      %v643 = vpop.f32.mrf.mxu0
      %v644 = vadd.f32 0.0, %v643
      %v645 = vpop.f32.mrf.mxu0
      %v646 = vadd.f32 0.0, %v645
      %647 = vmatmul.bf16.gmra.mxu0 %v387
      %v648 = vpop.f32.mrf.mxu0
      %v649 = vadd.f32 0.0, %v648
      %v650 = vpop.f32.mrf.mxu0
      %v651 = vadd.f32 0.0, %v650
      %652 = vmatmul.bf16.gmra.mxu0 %v390
      %v653 = vpop.f32.mrf.mxu0
      %v654 = vadd.f32 0.0, %v653
      %v655 = vpop.f32.mrf.mxu0
      %v656 = vadd.f32 0.0, %v655
      %657 = vmatmul.bf16.gmra.mxu0 %v393
      %v658 = vpop.f32.mrf.mxu0
      %v659 = vadd.f32 0.0, %v658
      %v660 = vpop.f32.mrf.mxu0
      %v661 = vadd.f32 0.0, %v660
      %662 = vmatmul.bf16.gmra.mxu0 %v396
      %v663 = vpop.f32.mrf.mxu0
      %v664 = vadd.f32 0.0, %v663
      %v665 = vpop.f32.mrf.mxu0
      %v666 = vadd.f32 0.0, %v665
      %667 = vmatmul.bf16.gmra.mxu0 %v399
      %v668 = vpop.f32.mrf.mxu0
      %v669 = vadd.f32 0.0, %v668
      %v670 = vpop.f32.mrf.mxu0
      %v671 = vadd.f32 0.0, %v670
      %672 = vmatmul.bf16.gmra.mxu0 %v402
      %v673 = vpop.f32.mrf.mxu0
      %v674 = vadd.f32 0.0, %v673
      %v675 = vpop.f32.mrf.mxu0
      %v676 = vadd.f32 0.0, %v675
      %677 = vmatmul.bf16.gmra.mxu0 %v405
      %v678 = vpop.f32.mrf.mxu0
      %v679 = vadd.f32 0.0, %v678
      %v680 = vpop.f32.mrf.mxu0
      %v681 = vadd.f32 0.0, %v680
      %682 = vmatmul.bf16.gmra.mxu0 %v408
      %v683 = vpop.f32.mrf.mxu0
      %v684 = vadd.f32 0.0, %v683
      %v685 = vpop.f32.mrf.mxu0
      %v686 = vadd.f32 0.0, %v685
      %687 = vmatmul.bf16.gmra.mxu0 %v411
      %v688 = vpop.f32.mrf.mxu0
      %v689 = vadd.f32 0.0, %v688
      %v690 = vpop.f32.mrf.mxu0
      %v691 = vadd.f32 0.0, %v690
      %692 = vmatmul.bf16.gmra.mxu0 %v414
      %v693 = vpop.f32.mrf.mxu0
      %v694 = vadd.f32 0.0, %v693
      %v695 = vpop.f32.mrf.mxu0
      %v696 = vadd.f32 0.0, %v695
      %697 = vmatmul.bf16.gmra.mxu0 %v417
      %v698 = vpop.f32.mrf.mxu0
      %v699 = vadd.f32 0.0, %v698
      %v700 = vpop.f32.mrf.mxu0
      %v701 = vadd.f32 0.0, %v700
      %702 = vmatmul.bf16.gmra.mxu0 %v420
      %v703 = vpop.f32.mrf.mxu0
      %v704 = vadd.f32 0.0, %v703
      %v705 = vpop.f32.mrf.mxu0
      %v706 = vadd.f32 0.0, %v705
      %707 = vmatmul.bf16.gmra.mxu0 %v423
      %v708 = vpop.f32.mrf.mxu0
      %v709 = vadd.f32 0.0, %v708
      %v710 = vpop.f32.mrf.mxu0
      %v711 = vadd.f32 0.0, %v710
      %712 = vmatmul.bf16.gmra.mxu0 %v624
      %v713 = vpop.f32.mrf.mxu0
      %v714 = vadd.f32 0.0, %v713
      %v715 = vpop.f32.mrf.mxu0
      %v716 = vadd.f32 0.0, %v715
      %717 = vdwg.mxu0
      %v718 = vadd.f32 %v539, %v639
      %v719 = vadd.f32 %v541, %v641
      %v720 = vadd.f32 %v544, %v644
      %v721 = vadd.f32 %v546, %v646
      %v722 = vadd.f32 %v549, %v649
      %v723 = vadd.f32 %v551, %v651
      %v724 = vadd.f32 %v554, %v654
      %v725 = vadd.f32 %v556, %v656
      %v726 = vadd.f32 %v559, %v659
      %v727 = vadd.f32 %v561, %v661
      %v728 = vadd.f32 %v564, %v664
      %v729 = vadd.f32 %v566, %v666
      %v730 = vadd.f32 %v569, %v669
      %v731 = vadd.f32 %v571, %v671
      %v732 = vadd.f32 %v574, %v674
      %v733 = vadd.f32 %v576, %v676
      %v734 = vadd.f32 %v579, %v679
      %v735 = vadd.f32 %v581, %v681
      %v736 = vadd.f32 %v584, %v684
      %v737 = vadd.f32 %v586, %v686
      %v738 = vadd.f32 %v589, %v689
      %v739 = vadd.f32 %v591, %v691
      %v740 = vadd.f32 %v594, %v694
      %v741 = vadd.f32 %v596, %v696
      %v742 = vadd.f32 %v599, %v699
      %v743 = vadd.f32 %v601, %v701
      %v744 = vadd.f32 %v604, %v704
      %v745 = vadd.f32 %v606, %v706
      %v746 = vadd.f32 %v609, %v709
      %v747 = vadd.f32 %v611, %v711
      %v748 = vadd.f32 %v614, %v714
      %v749 = vadd.f32 %v616, %v716
      %v750 = vpack.c.bf16 %v174, %v174
      %v751 = vpack.c.bf16 %v177, %v177
      %v752 = vpack.c.bf16 %v180, %v180
      %v753 = vpack.c.bf16 %v183, %v183
      %v754 = vpack.c.bf16 %v186, %v186
      %v755 = vpack.c.bf16 %v189, %v189
      %v756 = vpack.c.bf16 %v192, %v192
      %v757 = vpack.c.bf16 %v195, %v195
      %v758 = vpack.c.bf16 %v198, %v198
      %v759 = vpack.c.bf16 %v201, %v201
      %v760 = vpack.c.bf16 %v204, %v204
      %v761 = vpack.c.bf16 %v207, %v207
      %v762 = vpack.c.bf16 %v210, %v210
      %v763 = vpack.c.bf16 %v213, %v213
      %v764 = vpack.c.bf16 %v216, %v216
      %v765 = vpack.c.bf16 %v219, %v219
      %v766 = vpack.c.bf16 %v222, %v222
      %v767 = vpack.c.bf16 %v225, %v225
      %vm768 = vsmask.f32 3328
      %vm769 = vsmask.f32 7440
      %vm770 = vmor %vm768, %vm769
      %v772 = vshrl.u32 %v260, 16
      %v774 = vrot.slane %v772, 4
      %v775 = vshll.u32 %v260, 16
      %v777 = vrot.slane %v775, 5
      %v778 = vor.u32 %v774, %v777
      %v779 = vrot.slane %v778, 4
      %v781 = vshll.u32 %v261, 16
      %v783 = vrot.slane %v781, 5
      %v784 = vsel %vm770, %v779, %v783
      %v785 = vshrl.u32 %v261, 16
      %v787 = vrot.slane %v785, 4
      %v788 = vor.u32 %v787, %v783
      %v789 = vrot.slane %v788, 4
      %v791 = vshll.u32 %v750, 16
      %v793 = vrot.slane %v791, 5
      %v794 = vsel %vm770, %v789, %v793
      %v796 = vshrl.u32 %v262, 16
      %v798 = vrot.slane %v796, 4
      %v799 = vshll.u32 %v262, 16
      %v801 = vrot.slane %v799, 5
      %v802 = vor.u32 %v798, %v801
      %v803 = vrot.slane %v802, 4
      %v805 = vshll.u32 %v263, 16
      %v807 = vrot.slane %v805, 5
      %v808 = vsel %vm770, %v803, %v807
      %v809 = vshrl.u32 %v263, 16
      %v811 = vrot.slane %v809, 4
      %v812 = vor.u32 %v811, %v807
      %v813 = vrot.slane %v812, 4
      %v815 = vshll.u32 %v751, 16
      %v817 = vrot.slane %v815, 5
      %v818 = vsel %vm770, %v813, %v817
      %v820 = vshrl.u32 %v264, 16
      %v822 = vrot.slane %v820, 4
      %v823 = vshll.u32 %v264, 16
      %v825 = vrot.slane %v823, 5
      %v826 = vor.u32 %v822, %v825
      %v827 = vrot.slane %v826, 4
      %v829 = vshll.u32 %v265, 16
      %v831 = vrot.slane %v829, 5
      %v832 = vsel %vm770, %v827, %v831
      %v833 = vshrl.u32 %v265, 16
      %v835 = vrot.slane %v833, 4
      %v836 = vor.u32 %v835, %v831
      %v837 = vrot.slane %v836, 4
      %v839 = vshll.u32 %v752, 16
      %v841 = vrot.slane %v839, 5
      %v842 = vsel %vm770, %v837, %v841
      %v844 = vshrl.u32 %v266, 16
      %v846 = vrot.slane %v844, 4
      %v847 = vshll.u32 %v266, 16
      %v849 = vrot.slane %v847, 5
      %v850 = vor.u32 %v846, %v849
      %v851 = vrot.slane %v850, 4
      %v853 = vshll.u32 %v267, 16
      %v855 = vrot.slane %v853, 5
      %v856 = vsel %vm770, %v851, %v855
      %v857 = vshrl.u32 %v267, 16
      %v859 = vrot.slane %v857, 4
      %v860 = vor.u32 %v859, %v855
      %v861 = vrot.slane %v860, 4
      %v863 = vshll.u32 %v753, 16
      %v865 = vrot.slane %v863, 5
      %v866 = vsel %vm770, %v861, %v865
      %v868 = vshrl.u32 %v268, 16
      %v870 = vrot.slane %v868, 4
      %v871 = vshll.u32 %v268, 16
      %v873 = vrot.slane %v871, 5
      %v874 = vor.u32 %v870, %v873
      %v875 = vrot.slane %v874, 4
      %v877 = vshll.u32 %v269, 16
      %v879 = vrot.slane %v877, 5
      %v880 = vsel %vm770, %v875, %v879
      %v881 = vshrl.u32 %v269, 16
      %v883 = vrot.slane %v881, 4
      %v884 = vor.u32 %v883, %v879
      %v885 = vrot.slane %v884, 4
      %v887 = vshll.u32 %v754, 16
      %v889 = vrot.slane %v887, 5
      %v890 = vsel %vm770, %v885, %v889
      %v892 = vshrl.u32 %v270, 16
      %v894 = vrot.slane %v892, 4
      %v895 = vshll.u32 %v270, 16
      %v897 = vrot.slane %v895, 5
      %v898 = vor.u32 %v894, %v897
      %v899 = vrot.slane %v898, 4
      %v901 = vshll.u32 %v271, 16
      %v903 = vrot.slane %v901, 5
      %v904 = vsel %vm770, %v899, %v903
      %v905 = vshrl.u32 %v271, 16
      %v907 = vrot.slane %v905, 4
      %v908 = vor.u32 %v907, %v903
      %v909 = vrot.slane %v908, 4
      %v911 = vshll.u32 %v755, 16
      %v913 = vrot.slane %v911, 5
      %v914 = vsel %vm770, %v909, %v913
      %v916 = vshrl.u32 %v272, 16
      %v918 = vrot.slane %v916, 4
      %v919 = vshll.u32 %v272, 16
      %v921 = vrot.slane %v919, 5
      %v922 = vor.u32 %v918, %v921
      %v923 = vrot.slane %v922, 4
      %v925 = vshll.u32 %v273, 16
      %v927 = vrot.slane %v925, 5
      %v928 = vsel %vm770, %v923, %v927
      %v929 = vshrl.u32 %v273, 16
      %v931 = vrot.slane %v929, 4
      %v932 = vor.u32 %v931, %v927
      %v933 = vrot.slane %v932, 4
      %v935 = vshll.u32 %v756, 16
      %v937 = vrot.slane %v935, 5
      %v938 = vsel %vm770, %v933, %v937
      %v940 = vshrl.u32 %v274, 16
      %v942 = vrot.slane %v940, 4
      %v943 = vshll.u32 %v274, 16
      %v945 = vrot.slane %v943, 5
      %v946 = vor.u32 %v942, %v945
      %v947 = vrot.slane %v946, 4
      %v949 = vshll.u32 %v275, 16
      %v951 = vrot.slane %v949, 5
      %v952 = vsel %vm770, %v947, %v951
      %v953 = vshrl.u32 %v275, 16
      %v955 = vrot.slane %v953, 4
      %v956 = vor.u32 %v955, %v951
      %v957 = vrot.slane %v956, 4
      %v959 = vshll.u32 %v757, 16
      %v961 = vrot.slane %v959, 5
      %v962 = vsel %vm770, %v957, %v961
      %v964 = vshrl.u32 %v276, 16
      %v966 = vrot.slane %v964, 4
      %v967 = vshll.u32 %v276, 16
      %v969 = vrot.slane %v967, 5
      %v970 = vor.u32 %v966, %v969
      %v971 = vrot.slane %v970, 4
      %v973 = vshll.u32 %v277, 16
      %v975 = vrot.slane %v973, 5
      %v976 = vsel %vm770, %v971, %v975
      %v977 = vshrl.u32 %v277, 16
      %v979 = vrot.slane %v977, 4
      %v980 = vor.u32 %v979, %v975
      %v981 = vrot.slane %v980, 4
      %v983 = vshll.u32 %v758, 16
      %v985 = vrot.slane %v983, 5
      %v986 = vsel %vm770, %v981, %v985
      %v988 = vshrl.u32 %v278, 16
      %v990 = vrot.slane %v988, 4
      %v991 = vshll.u32 %v278, 16
      %v993 = vrot.slane %v991, 5
      %v994 = vor.u32 %v990, %v993
      %v995 = vrot.slane %v994, 4
      %v997 = vshll.u32 %v279, 16
      %v999 = vrot.slane %v997, 5
      %v1000 = vsel %vm770, %v995, %v999
      %v1001 = vshrl.u32 %v279, 16
      %v1003 = vrot.slane %v1001, 4
      %v1004 = vor.u32 %v1003, %v999
      %v1005 = vrot.slane %v1004, 4
      %v1007 = vshll.u32 %v759, 16
      %v1009 = vrot.slane %v1007, 5
      %v1010 = vsel %vm770, %v1005, %v1009
      %v1012 = vshrl.u32 %v280, 16
      %v1014 = vrot.slane %v1012, 4
      %v1015 = vshll.u32 %v280, 16
      %v1017 = vrot.slane %v1015, 5
      %v1018 = vor.u32 %v1014, %v1017
      %v1019 = vrot.slane %v1018, 4
      %v1021 = vshll.u32 %v281, 16
      %v1023 = vrot.slane %v1021, 5
      %v1024 = vsel %vm770, %v1019, %v1023
      %v1025 = vshrl.u32 %v281, 16
      %v1027 = vrot.slane %v1025, 4
      %v1028 = vor.u32 %v1027, %v1023
      %v1029 = vrot.slane %v1028, 4
      %v1031 = vshll.u32 %v760, 16
      %v1033 = vrot.slane %v1031, 5
      %v1034 = vsel %vm770, %v1029, %v1033
      %v1036 = vshrl.u32 %v282, 16
      %v1038 = vrot.slane %v1036, 4
      %v1039 = vshll.u32 %v282, 16
      %v1041 = vrot.slane %v1039, 5
      %v1042 = vor.u32 %v1038, %v1041
      %v1043 = vrot.slane %v1042, 4
      %v1045 = vshll.u32 %v283, 16
      %v1047 = vrot.slane %v1045, 5
      %v1048 = vsel %vm770, %v1043, %v1047
      %v1049 = vshrl.u32 %v283, 16
      %v1051 = vrot.slane %v1049, 4
      %v1052 = vor.u32 %v1051, %v1047
      %v1053 = vrot.slane %v1052, 4
      %v1055 = vshll.u32 %v761, 16
      %v1057 = vrot.slane %v1055, 5
      %v1058 = vsel %vm770, %v1053, %v1057
      %v1060 = vshrl.u32 %v284, 16
      %v1062 = vrot.slane %v1060, 4
      %v1063 = vshll.u32 %v284, 16
      %v1065 = vrot.slane %v1063, 5
      %v1066 = vor.u32 %v1062, %v1065
      %v1067 = vrot.slane %v1066, 4
      %v1069 = vshll.u32 %v285, 16
      %v1071 = vrot.slane %v1069, 5
      %v1072 = vsel %vm770, %v1067, %v1071
      %v1073 = vshrl.u32 %v285, 16
      %v1075 = vrot.slane %v1073, 4
      %v1076 = vor.u32 %v1075, %v1071
      %v1077 = vrot.slane %v1076, 4
      %v1079 = vshll.u32 %v762, 16
      %v1081 = vrot.slane %v1079, 5
      %v1082 = vsel %vm770, %v1077, %v1081
      %v1084 = vshrl.u32 %v286, 16
      %v1086 = vrot.slane %v1084, 4
      %v1087 = vshll.u32 %v286, 16
      %v1089 = vrot.slane %v1087, 5
      %v1090 = vor.u32 %v1086, %v1089
      %v1091 = vrot.slane %v1090, 4
      %v1093 = vshll.u32 %v287, 16
      %v1095 = vrot.slane %v1093, 5
      %v1096 = vsel %vm770, %v1091, %v1095
      %v1097 = vshrl.u32 %v287, 16
      %v1099 = vrot.slane %v1097, 4
      %v1100 = vor.u32 %v1099, %v1095
      %v1101 = vrot.slane %v1100, 4
      %v1103 = vshll.u32 %v763, 16
      %v1105 = vrot.slane %v1103, 5
      %v1106 = vsel %vm770, %v1101, %v1105
      %v1108 = vshrl.u32 %v288, 16
      %v1110 = vrot.slane %v1108, 4
      %v1111 = vshll.u32 %v288, 16
      %v1113 = vrot.slane %v1111, 5
      %v1114 = vor.u32 %v1110, %v1113
      %v1115 = vrot.slane %v1114, 4
      %v1117 = vshll.u32 %v289, 16
      %v1119 = vrot.slane %v1117, 5
      %v1120 = vsel %vm770, %v1115, %v1119
      %v1121 = vshrl.u32 %v289, 16
      %v1123 = vrot.slane %v1121, 4
      %v1124 = vor.u32 %v1123, %v1119
      %v1125 = vrot.slane %v1124, 4
      %v1127 = vshll.u32 %v764, 16
      %v1129 = vrot.slane %v1127, 5
      %v1130 = vsel %vm770, %v1125, %v1129
      %v1132 = vshrl.u32 %v290, 16
      %v1134 = vrot.slane %v1132, 4
      %v1135 = vshll.u32 %v290, 16
      %v1137 = vrot.slane %v1135, 5
      %v1138 = vor.u32 %v1134, %v1137
      %v1139 = vrot.slane %v1138, 4
      %v1141 = vshll.u32 %v291, 16
      %v1143 = vrot.slane %v1141, 5
      %v1144 = vsel %vm770, %v1139, %v1143
      %v1145 = vshrl.u32 %v291, 16
      %v1147 = vrot.slane %v1145, 4
      %v1148 = vor.u32 %v1147, %v1143
      %v1149 = vrot.slane %v1148, 4
      %v1151 = vshll.u32 %v765, 16
      %v1153 = vrot.slane %v1151, 5
      %v1154 = vsel %vm770, %v1149, %v1153
      %v1155 = vunpack.c.l.b16 %v784
      %v1156 = vunpack.c.l.b16 %v794
      %v1157 = vunpack.c.l.b16 %v808
      %v1158 = vunpack.c.l.b16 %v818
      %v1159 = vunpack.c.l.b16 %v832
      %v1160 = vunpack.c.l.b16 %v842
      %v1161 = vunpack.c.l.b16 %v856
      %v1162 = vunpack.c.l.b16 %v866
      %v1163 = vunpack.c.l.b16 %v880
      %v1164 = vunpack.c.l.b16 %v890
      %v1165 = vunpack.c.l.b16 %v904
      %v1166 = vunpack.c.l.b16 %v914
      %v1167 = vunpack.c.l.b16 %v928
      %v1168 = vunpack.c.l.b16 %v938
      %v1169 = vunpack.c.l.b16 %v952
      %v1170 = vunpack.c.l.b16 %v962
      %v1171 = vunpack.c.l.b16 %v976
      %v1172 = vunpack.c.l.b16 %v986
      %v1173 = vunpack.c.l.b16 %v1000
      %v1174 = vunpack.c.l.b16 %v1010
      %v1175 = vunpack.c.l.b16 %v1024
      %v1176 = vunpack.c.l.b16 %v1034
      %v1177 = vunpack.c.l.b16 %v1048
      %v1178 = vunpack.c.l.b16 %v1058
      %v1179 = vunpack.c.l.b16 %v1072
      %v1180 = vunpack.c.l.b16 %v1082
      %v1181 = vunpack.c.l.b16 %v1096
      %v1182 = vunpack.c.l.b16 %v1106
      %v1183 = vunpack.c.l.b16 %v1120
      %v1184 = vunpack.c.l.b16 %v1130
      %v1185 = vunpack.c.l.b16 %v1144
      %v1186 = vunpack.c.l.b16 %v1154
      %v1187 = vpack.c.b16 %v1156, %v1155
      %v1188 = vpack.c.b16 %v1158, %v1157
      %v1189 = vpack.c.b16 %v1160, %v1159
      %v1190 = vpack.c.b16 %v1162, %v1161
      %v1191 = vpack.c.b16 %v1164, %v1163
      %v1192 = vpack.c.b16 %v1166, %v1165
      %v1193 = vpack.c.b16 %v1168, %v1167
      %v1194 = vpack.c.b16 %v1170, %v1169
      %v1195 = vpack.c.b16 %v1172, %v1171
      %v1196 = vpack.c.b16 %v1174, %v1173
      %v1197 = vpack.c.b16 %v1176, %v1175
      %v1198 = vpack.c.b16 %v1178, %v1177
      %v1199 = vpack.c.b16 %v1180, %v1179
      %v1200 = vpack.c.b16 %v1182, %v1181
      %v1201 = vpack.c.b16 %v1184, %v1183
      %v1202 = vpack.c.b16 %v1186, %v1185
      %v1204 = vsel %vm376, %v1187, 0
      %v1207 = vsel %vm376, %v1188, 0
      %v1210 = vsel %vm376, %v1189, 0
      %v1213 = vsel %vm376, %v1190, 0
      %v1216 = vsel %vm376, %v1191, 0
      %v1219 = vsel %vm376, %v1192, 0
      %v1222 = vsel %vm376, %v1193, 0
      %v1225 = vsel %vm376, %v1194, 0
      %v1228 = vsel %vm376, %v1195, 0
      %v1231 = vsel %vm376, %v1196, 0
      %v1234 = vsel %vm376, %v1197, 0
      %v1237 = vsel %vm376, %v1198, 0
      %v1240 = vsel %vm376, %v1199, 0
      %v1243 = vsel %vm376, %v1200, 0
      %v1246 = vsel %vm376, %v1201, 0
      %v1249 = vsel %vm376, %v1202, 0
      %v1252 = vsel %vm425, %v228, 0
      %1254 = vmatpush.bf16.msra.mxu0 0
      %1255 = vmatpush.bf16.msra.mxu0 0
      %1256 = vmatpush.bf16.msra.mxu0 0
      %1257 = vmatpush.bf16.msra.mxu0 0
      %1258 = vmatpush.bf16.msra.mxu0 0
      %1259 = vmatpush.bf16.msra.mxu0 0
      %1260 = vmatpush.bf16.msra.mxu0 0
      %1261 = vmatpush.bf16.msra.mxu0 %v1252
      %1262 = vmatmul.bf16.gmra.mxu0 %v1204
      %v1263 = vpop.f32.mrf.mxu0
      %v1264 = vadd.f32 0.0, %v1263
      %v1265 = vpop.f32.mrf.mxu0
      %v1266 = vadd.f32 0.0, %v1265
      %1267 = vmatmul.bf16.gmra.mxu0 %v1207
      %v1268 = vpop.f32.mrf.mxu0
      %v1269 = vadd.f32 0.0, %v1268
      %v1270 = vpop.f32.mrf.mxu0
      %v1271 = vadd.f32 0.0, %v1270
      %1272 = vmatmul.bf16.gmra.mxu0 %v1210
      %v1273 = vpop.f32.mrf.mxu0
      %v1274 = vadd.f32 0.0, %v1273
      %v1275 = vpop.f32.mrf.mxu0
      %v1276 = vadd.f32 0.0, %v1275
      %1277 = vmatmul.bf16.gmra.mxu0 %v1213
      %v1278 = vpop.f32.mrf.mxu0
      %v1279 = vadd.f32 0.0, %v1278
      %v1280 = vpop.f32.mrf.mxu0
      %v1281 = vadd.f32 0.0, %v1280
      %1282 = vmatmul.bf16.gmra.mxu0 %v1216
      %v1283 = vpop.f32.mrf.mxu0
      %v1284 = vadd.f32 0.0, %v1283
      %v1285 = vpop.f32.mrf.mxu0
      %v1286 = vadd.f32 0.0, %v1285
      %1287 = vmatmul.bf16.gmra.mxu0 %v1219
      %v1288 = vpop.f32.mrf.mxu0
      %v1289 = vadd.f32 0.0, %v1288
      %v1290 = vpop.f32.mrf.mxu0
      %v1291 = vadd.f32 0.0, %v1290
      %1292 = vmatmul.bf16.gmra.mxu0 %v1222
      %v1293 = vpop.f32.mrf.mxu0
      %v1294 = vadd.f32 0.0, %v1293
      %v1295 = vpop.f32.mrf.mxu0
      %v1296 = vadd.f32 0.0, %v1295
      %1297 = vmatmul.bf16.gmra.mxu0 %v1225
      %v1298 = vpop.f32.mrf.mxu0
      %v1299 = vadd.f32 0.0, %v1298
      %v1300 = vpop.f32.mrf.mxu0
      %v1301 = vadd.f32 0.0, %v1300
      %1302 = vmatmul.bf16.gmra.mxu0 %v1228
      %v1303 = vpop.f32.mrf.mxu0
      %v1304 = vadd.f32 0.0, %v1303
      %v1305 = vpop.f32.mrf.mxu0
      %v1306 = vadd.f32 0.0, %v1305
      %1307 = vmatmul.bf16.gmra.mxu0 %v1231
      %v1308 = vpop.f32.mrf.mxu0
      %v1309 = vadd.f32 0.0, %v1308
      %v1310 = vpop.f32.mrf.mxu0
      %v1311 = vadd.f32 0.0, %v1310
      %1312 = vmatmul.bf16.gmra.mxu0 %v1234
      %v1313 = vpop.f32.mrf.mxu0
      %v1314 = vadd.f32 0.0, %v1313
      %v1315 = vpop.f32.mrf.mxu0
      %v1316 = vadd.f32 0.0, %v1315
      %1317 = vmatmul.bf16.gmra.mxu0 %v1237
      %v1318 = vpop.f32.mrf.mxu0
      %v1319 = vadd.f32 0.0, %v1318
      %v1320 = vpop.f32.mrf.mxu0
      %v1321 = vadd.f32 0.0, %v1320
      %1322 = vmatmul.bf16.gmra.mxu0 %v1240
      %v1323 = vpop.f32.mrf.mxu0
      %v1324 = vadd.f32 0.0, %v1323
      %v1325 = vpop.f32.mrf.mxu0
      %v1326 = vadd.f32 0.0, %v1325
      %1327 = vmatmul.bf16.gmra.mxu0 %v1243
      %v1328 = vpop.f32.mrf.mxu0
      %v1329 = vadd.f32 0.0, %v1328
      %v1330 = vpop.f32.mrf.mxu0
      %v1331 = vadd.f32 0.0, %v1330
      %1332 = vmatmul.bf16.gmra.mxu0 %v1246
      %v1333 = vpop.f32.mrf.mxu0
      %v1334 = vadd.f32 0.0, %v1333
      %v1335 = vpop.f32.mrf.mxu0
      %v1336 = vadd.f32 0.0, %v1335
      %1337 = vmatmul.bf16.gmra.mxu0 %v1249
      %v1338 = vpop.f32.mrf.mxu0
      %v1339 = vadd.f32 0.0, %v1338
      %v1340 = vpop.f32.mrf.mxu0
      %v1341 = vadd.f32 0.0, %v1340
      %1342 = vdwg.mxu0
      %v1343 = vadd.f32 %v718, %v1264
      %v1344 = vadd.f32 %v719, %v1266
      %v1345 = vadd.f32 %v720, %v1269
      %v1346 = vadd.f32 %v721, %v1271
      %v1347 = vadd.f32 %v722, %v1274
      %v1348 = vadd.f32 %v723, %v1276
      %v1349 = vadd.f32 %v724, %v1279
      %v1350 = vadd.f32 %v725, %v1281
      %v1351 = vadd.f32 %v726, %v1284
      %v1352 = vadd.f32 %v727, %v1286
      %v1353 = vadd.f32 %v728, %v1289
      %v1354 = vadd.f32 %v729, %v1291
      %v1355 = vadd.f32 %v730, %v1294
      %v1356 = vadd.f32 %v731, %v1296
      %v1357 = vadd.f32 %v732, %v1299
      %v1358 = vadd.f32 %v733, %v1301
      %v1359 = vadd.f32 %v734, %v1304
      %v1360 = vadd.f32 %v735, %v1306
      %v1361 = vadd.f32 %v736, %v1309
      %v1362 = vadd.f32 %v737, %v1311
      %v1363 = vadd.f32 %v738, %v1314
      %v1364 = vadd.f32 %v739, %v1316
      %v1365 = vadd.f32 %v740, %v1319
      %v1366 = vadd.f32 %v741, %v1321
      %v1367 = vadd.f32 %v742, %v1324
      %v1368 = vadd.f32 %v743, %v1326
      %v1369 = vadd.f32 %v744, %v1329
      %v1370 = vadd.f32 %v745, %v1331
      %v1371 = vadd.f32 %v746, %v1334
      %v1372 = vadd.f32 %v747, %v1336
      %v1373 = vadd.f32 %v748, %v1339
      %v1374 = vadd.f32 %v749, %v1341
      %v1376 = vshrl.u32 %v292, 16
      %v1378 = vrot.slane %v1376, 4
      %v1379 = vshll.u32 %v292, 16
      %v1381 = vrot.slane %v1379, 5
      %v1382 = vor.u32 %v1378, %v1381
      %v1383 = vrot.slane %v1382, 4
      %v1385 = vshll.u32 %v293, 16
      %v1387 = vrot.slane %v1385, 5
      %v1388 = vsel %vm770, %v1383, %v1387
      %v1389 = vshrl.u32 %v293, 16
      %v1391 = vrot.slane %v1389, 4
      %v1392 = vor.u32 %v1391, %v1387
      %v1393 = vrot.slane %v1392, 4
      %v1395 = vshll.u32 %v766, 16
      %v1397 = vrot.slane %v1395, 5
      %v1398 = vsel %vm770, %v1393, %v1397
      %v1399 = vunpack.c.l.b16 %v1388
      %v1400 = vunpack.c.l.b16 %v1398
      %v1401 = vpack.c.b16 %v1400, %v1399
      %v1403 = vsel %vm376, %v1401, 0
      %v1406 = vsel %vm425, %v234, 0
      %1408 = vmatpush.bf16.msra.mxu0 0
      %1409 = vmatpush.bf16.msra.mxu0 0
      %1410 = vmatpush.bf16.msra.mxu0 0
      %1411 = vmatpush.bf16.msra.mxu0 0
      %1412 = vmatpush.bf16.msra.mxu0 0
      %1413 = vmatpush.bf16.msra.mxu0 0
      %1414 = vmatpush.bf16.msra.mxu0 0
      %1415 = vmatpush.bf16.msra.mxu0 %v1406
      %1416 = vmatmul.bf16.gmra.mxu0 %v1207
      %v1417 = vpop.f32.mrf.mxu0
      %v1418 = vadd.f32 0.0, %v1417
      %v1419 = vpop.f32.mrf.mxu0
      %v1420 = vadd.f32 0.0, %v1419
      %1421 = vmatmul.bf16.gmra.mxu0 %v1210
      %v1422 = vpop.f32.mrf.mxu0
      %v1423 = vadd.f32 0.0, %v1422
      %v1424 = vpop.f32.mrf.mxu0
      %v1425 = vadd.f32 0.0, %v1424
      %1426 = vmatmul.bf16.gmra.mxu0 %v1213
      %v1427 = vpop.f32.mrf.mxu0
      %v1428 = vadd.f32 0.0, %v1427
      %v1429 = vpop.f32.mrf.mxu0
      %v1430 = vadd.f32 0.0, %v1429
      %1431 = vmatmul.bf16.gmra.mxu0 %v1216
      %v1432 = vpop.f32.mrf.mxu0
      %v1433 = vadd.f32 0.0, %v1432
      %v1434 = vpop.f32.mrf.mxu0
      %v1435 = vadd.f32 0.0, %v1434
      %1436 = vmatmul.bf16.gmra.mxu0 %v1219
      %v1437 = vpop.f32.mrf.mxu0
      %v1438 = vadd.f32 0.0, %v1437
      %v1439 = vpop.f32.mrf.mxu0
      %v1440 = vadd.f32 0.0, %v1439
      %1441 = vmatmul.bf16.gmra.mxu0 %v1222
      %v1442 = vpop.f32.mrf.mxu0
      %v1443 = vadd.f32 0.0, %v1442
      %v1444 = vpop.f32.mrf.mxu0
      %v1445 = vadd.f32 0.0, %v1444
      %1446 = vmatmul.bf16.gmra.mxu0 %v1225
      %v1447 = vpop.f32.mrf.mxu0
      %v1448 = vadd.f32 0.0, %v1447
      %v1449 = vpop.f32.mrf.mxu0
      %v1450 = vadd.f32 0.0, %v1449
      %1451 = vmatmul.bf16.gmra.mxu0 %v1228
      %v1452 = vpop.f32.mrf.mxu0
      %v1453 = vadd.f32 0.0, %v1452
      %v1454 = vpop.f32.mrf.mxu0
      %v1455 = vadd.f32 0.0, %v1454
      %1456 = vmatmul.bf16.gmra.mxu0 %v1231
      %v1457 = vpop.f32.mrf.mxu0
      %v1458 = vadd.f32 0.0, %v1457
      %v1459 = vpop.f32.mrf.mxu0
      %v1460 = vadd.f32 0.0, %v1459
      %1461 = vmatmul.bf16.gmra.mxu0 %v1234
      %v1462 = vpop.f32.mrf.mxu0
      %v1463 = vadd.f32 0.0, %v1462
      %v1464 = vpop.f32.mrf.mxu0
      %v1465 = vadd.f32 0.0, %v1464
      %1466 = vmatmul.bf16.gmra.mxu0 %v1237
      %v1467 = vpop.f32.mrf.mxu0
      %v1468 = vadd.f32 0.0, %v1467
      %v1469 = vpop.f32.mrf.mxu0
      %v1470 = vadd.f32 0.0, %v1469
      %1471 = vmatmul.bf16.gmra.mxu0 %v1240
      %v1472 = vpop.f32.mrf.mxu0
      %v1473 = vadd.f32 0.0, %v1472
      %v1474 = vpop.f32.mrf.mxu0
      %v1475 = vadd.f32 0.0, %v1474
      %1476 = vmatmul.bf16.gmra.mxu0 %v1243
      %v1477 = vpop.f32.mrf.mxu0
      %v1478 = vadd.f32 0.0, %v1477
      %v1479 = vpop.f32.mrf.mxu0
      %v1480 = vadd.f32 0.0, %v1479
      %1481 = vmatmul.bf16.gmra.mxu0 %v1246
      %v1482 = vpop.f32.mrf.mxu0
      %v1483 = vadd.f32 0.0, %v1482
      %v1484 = vpop.f32.mrf.mxu0
      %v1485 = vadd.f32 0.0, %v1484
      %1486 = vmatmul.bf16.gmra.mxu0 %v1249
      %v1487 = vpop.f32.mrf.mxu0
      %v1488 = vadd.f32 0.0, %v1487
      %v1489 = vpop.f32.mrf.mxu0
      %v1490 = vadd.f32 0.0, %v1489
      %1491 = vmatmul.bf16.gmra.mxu0 %v1403
      %v1492 = vpop.f32.mrf.mxu0
      %v1493 = vadd.f32 0.0, %v1492
      %v1494 = vpop.f32.mrf.mxu0
      %v1495 = vadd.f32 0.0, %v1494
      %1496 = vdwg.mxu0
      %v1497 = vadd.f32 %v1343, %v1418
      %v1498 = vadd.f32 %v1344, %v1420
      %v1499 = vadd.f32 %v1345, %v1423
      %v1500 = vadd.f32 %v1346, %v1425
      %v1501 = vadd.f32 %v1347, %v1428
      %v1502 = vadd.f32 %v1348, %v1430
      %v1503 = vadd.f32 %v1349, %v1433
      %v1504 = vadd.f32 %v1350, %v1435
      %v1505 = vadd.f32 %v1351, %v1438
      %v1506 = vadd.f32 %v1352, %v1440
      %v1507 = vadd.f32 %v1353, %v1443
      %v1508 = vadd.f32 %v1354, %v1445
      %v1509 = vadd.f32 %v1355, %v1448
      %v1510 = vadd.f32 %v1356, %v1450
      %v1511 = vadd.f32 %v1357, %v1453
      %v1512 = vadd.f32 %v1358, %v1455
      %v1513 = vadd.f32 %v1359, %v1458
      %v1514 = vadd.f32 %v1360, %v1460
      %v1515 = vadd.f32 %v1361, %v1463
      %v1516 = vadd.f32 %v1362, %v1465
      %v1517 = vadd.f32 %v1363, %v1468
      %v1518 = vadd.f32 %v1364, %v1470
      %v1519 = vadd.f32 %v1365, %v1473
      %v1520 = vadd.f32 %v1366, %v1475
      %v1521 = vadd.f32 %v1367, %v1478
      %v1522 = vadd.f32 %v1368, %v1480
      %v1523 = vadd.f32 %v1369, %v1483
      %v1524 = vadd.f32 %v1370, %v1485
      %v1525 = vadd.f32 %v1371, %v1488
      %v1526 = vadd.f32 %v1372, %v1490
      %v1527 = vadd.f32 %v1373, %v1493
      %v1528 = vadd.f32 %v1374, %v1495
      %v1530 = vshrl.u32 %v294, 16
      %v1532 = vrot.slane %v1530, 4
      %v1533 = vshll.u32 %v294, 16
      %v1535 = vrot.slane %v1533, 5
      %v1536 = vor.u32 %v1532, %v1535
      %v1537 = vrot.slane %v1536, 4
      %v1539 = vshll.u32 %v295, 16
      %v1541 = vrot.slane %v1539, 5
      %v1542 = vsel %vm770, %v1537, %v1541
      %v1543 = vshrl.u32 %v295, 16
      %v1545 = vrot.slane %v1543, 4
      %v1546 = vor.u32 %v1545, %v1541
      %v1547 = vrot.slane %v1546, 4
      %v1549 = vshll.u32 %v767, 16
      %v1551 = vrot.slane %v1549, 5
      %v1552 = vsel %vm770, %v1547, %v1551
      %v1553 = vunpack.c.l.b16 %v1542
      %v1554 = vunpack.c.l.b16 %v1552
      %v1555 = vpack.c.b16 %v1554, %v1553
      %v1557 = vsel %vm376, %v1555, 0
      %v1560 = vsel %vm425, %v240, 0
      %1562 = vmatpush.bf16.msra.mxu0 0
      %1563 = vmatpush.bf16.msra.mxu0 0
      %1564 = vmatpush.bf16.msra.mxu0 0
      %1565 = vmatpush.bf16.msra.mxu0 0
      %1566 = vmatpush.bf16.msra.mxu0 0
      %1567 = vmatpush.bf16.msra.mxu0 0
      %1568 = vmatpush.bf16.msra.mxu0 0
      %1569 = vmatpush.bf16.msra.mxu0 %v1560
      %1570 = vmatmul.bf16.gmra.mxu0 %v1210
      %v1571 = vpop.f32.mrf.mxu0
      %v1572 = vadd.f32 0.0, %v1571
      %v1573 = vpop.f32.mrf.mxu0
      %v1574 = vadd.f32 0.0, %v1573
      %1575 = vmatmul.bf16.gmra.mxu0 %v1213
      %v1576 = vpop.f32.mrf.mxu0
      %v1577 = vadd.f32 0.0, %v1576
      %v1578 = vpop.f32.mrf.mxu0
      %v1579 = vadd.f32 0.0, %v1578
      %1580 = vmatmul.bf16.gmra.mxu0 %v1216
      %v1581 = vpop.f32.mrf.mxu0
      %v1582 = vadd.f32 0.0, %v1581
      %v1583 = vpop.f32.mrf.mxu0
      %v1584 = vadd.f32 0.0, %v1583
      %1585 = vmatmul.bf16.gmra.mxu0 %v1219
      %v1586 = vpop.f32.mrf.mxu0
      %v1587 = vadd.f32 0.0, %v1586
      %v1588 = vpop.f32.mrf.mxu0
      %v1589 = vadd.f32 0.0, %v1588
      %1590 = vmatmul.bf16.gmra.mxu0 %v1222
      %v1591 = vpop.f32.mrf.mxu0
      %v1592 = vadd.f32 0.0, %v1591
      %v1593 = vpop.f32.mrf.mxu0
      %v1594 = vadd.f32 0.0, %v1593
      %1595 = vmatmul.bf16.gmra.mxu0 %v1225
      %v1596 = vpop.f32.mrf.mxu0
      %v1597 = vadd.f32 0.0, %v1596
      %v1598 = vpop.f32.mrf.mxu0
      %v1599 = vadd.f32 0.0, %v1598
      %1600 = vmatmul.bf16.gmra.mxu0 %v1228
      %v1601 = vpop.f32.mrf.mxu0
      %v1602 = vadd.f32 0.0, %v1601
      %v1603 = vpop.f32.mrf.mxu0
      %v1604 = vadd.f32 0.0, %v1603
      %1605 = vmatmul.bf16.gmra.mxu0 %v1231
      %v1606 = vpop.f32.mrf.mxu0
      %v1607 = vadd.f32 0.0, %v1606
      %v1608 = vpop.f32.mrf.mxu0
      %v1609 = vadd.f32 0.0, %v1608
      %1610 = vmatmul.bf16.gmra.mxu0 %v1234
      %v1611 = vpop.f32.mrf.mxu0
      %v1612 = vadd.f32 0.0, %v1611
      %v1613 = vpop.f32.mrf.mxu0
      %v1614 = vadd.f32 0.0, %v1613
      %1615 = vmatmul.bf16.gmra.mxu0 %v1237
      %v1616 = vpop.f32.mrf.mxu0
      %v1617 = vadd.f32 0.0, %v1616
      %v1618 = vpop.f32.mrf.mxu0
      %v1619 = vadd.f32 0.0, %v1618
      %1620 = vmatmul.bf16.gmra.mxu0 %v1240
      %v1621 = vpop.f32.mrf.mxu0
      %v1622 = vadd.f32 0.0, %v1621
      %v1623 = vpop.f32.mrf.mxu0
      %v1624 = vadd.f32 0.0, %v1623
      %1625 = vmatmul.bf16.gmra.mxu0 %v1243
      %v1626 = vpop.f32.mrf.mxu0
      %v1627 = vadd.f32 0.0, %v1626
      %v1628 = vpop.f32.mrf.mxu0
      %v1629 = vadd.f32 0.0, %v1628
      %1630 = vmatmul.bf16.gmra.mxu0 %v1246
      %v1631 = vpop.f32.mrf.mxu0
      %v1632 = vadd.f32 0.0, %v1631
      %v1633 = vpop.f32.mrf.mxu0
      %v1634 = vadd.f32 0.0, %v1633
      %1635 = vmatmul.bf16.gmra.mxu0 %v1249
      %v1636 = vpop.f32.mrf.mxu0
      %v1637 = vadd.f32 0.0, %v1636
      %v1638 = vpop.f32.mrf.mxu0
      %v1639 = vadd.f32 0.0, %v1638
      %1640 = vmatmul.bf16.gmra.mxu0 %v1403
      %v1641 = vpop.f32.mrf.mxu0
      %v1642 = vadd.f32 0.0, %v1641
      %v1643 = vpop.f32.mrf.mxu0
      %v1644 = vadd.f32 0.0, %v1643
      %1645 = vmatmul.bf16.gmra.mxu0 %v1557
      %v1646 = vpop.f32.mrf.mxu0
      %v1647 = vadd.f32 0.0, %v1646
      %v1648 = vpop.f32.mrf.mxu0
      %v1649 = vadd.f32 0.0, %v1648
      %1650 = vdwg.mxu0
      %v1651 = vadd.f32 %v1497, %v1572
      %v1652 = vadd.f32 %v1498, %v1574
      %v1653 = vadd.f32 %v1499, %v1577
      %v1654 = vadd.f32 %v1500, %v1579
      %v1655 = vadd.f32 %v1501, %v1582
      %v1656 = vadd.f32 %v1502, %v1584
      %v1657 = vadd.f32 %v1503, %v1587
      %v1658 = vadd.f32 %v1504, %v1589
      %v1659 = vadd.f32 %v1505, %v1592
      %v1660 = vadd.f32 %v1506, %v1594
      %v1661 = vadd.f32 %v1507, %v1597
      %v1662 = vadd.f32 %v1508, %v1599
      %v1663 = vadd.f32 %v1509, %v1602
      %v1664 = vadd.f32 %v1510, %v1604
      %v1665 = vadd.f32 %v1511, %v1607
      %v1666 = vadd.f32 %v1512, %v1609
      %v1667 = vadd.f32 %v1513, %v1612
      %v1668 = vadd.f32 %v1514, %v1614
      %v1669 = vadd.f32 %v1515, %v1617
      %v1670 = vadd.f32 %v1516, %v1619
      %v1671 = vadd.f32 %v1517, %v1622
      %v1672 = vadd.f32 %v1518, %v1624
      %v1673 = vadd.f32 %v1519, %v1627
      %v1674 = vadd.f32 %v1520, %v1629
      %v1675 = vadd.f32 %v1521, %v1632
      %v1676 = vadd.f32 %v1522, %v1634
      %v1677 = vadd.f32 %v1523, %v1637
      %v1678 = vadd.f32 %v1524, %v1639
      %v1679 = vadd.f32 %v1525, %v1642
      %v1680 = vadd.f32 %v1526, %v1644
      %v1681 = vadd.f32 %v1527, %v1647
      %v1682 = vadd.f32 %v1528, %v1649
      %vm1699 = vcmask 1042432
      %vm1700 = vcmask 1046532
      %vm1701 = vmor %vm1699, %vm1700
      %v1702 = vrot.slane %v260, 5
      %v1703 = vrot.slane %v1702, 4
      %v1704 = vrot.slane %v261, 5
      %v1705 = vsel %vm1701, %v1703, %v1704
      %v1706 = vrot.slane %v1704, 4
      %v1707 = vrot.slane %v750, 5
      %v1708 = vsel %vm1701, %v1706, %v1707
      %v1709 = vrot.slane %v262, 5
      %v1710 = vrot.slane %v1709, 4
      %v1711 = vrot.slane %v263, 5
      %v1712 = vsel %vm1701, %v1710, %v1711
      %v1713 = vrot.slane %v1711, 4
      %v1714 = vrot.slane %v751, 5
      %v1715 = vsel %vm1701, %v1713, %v1714
      %v1716 = vrot.slane %v264, 5
      %v1717 = vrot.slane %v1716, 4
      %v1718 = vrot.slane %v265, 5
      %v1719 = vsel %vm1701, %v1717, %v1718
      %v1720 = vrot.slane %v1718, 4
      %v1721 = vrot.slane %v752, 5
      %v1722 = vsel %vm1701, %v1720, %v1721
      %v1723 = vrot.slane %v266, 5
      %v1724 = vrot.slane %v1723, 4
      %v1725 = vrot.slane %v267, 5
      %v1726 = vsel %vm1701, %v1724, %v1725
      %v1727 = vrot.slane %v1725, 4
      %v1728 = vrot.slane %v753, 5
      %v1729 = vsel %vm1701, %v1727, %v1728
      %v1730 = vrot.slane %v268, 5
      %v1731 = vrot.slane %v1730, 4
      %v1732 = vrot.slane %v269, 5
      %v1733 = vsel %vm1701, %v1731, %v1732
      %v1734 = vrot.slane %v1732, 4
      %v1735 = vrot.slane %v754, 5
      %v1736 = vsel %vm1701, %v1734, %v1735
      %v1737 = vrot.slane %v270, 5
      %v1738 = vrot.slane %v1737, 4
      %v1739 = vrot.slane %v271, 5
      %v1740 = vsel %vm1701, %v1738, %v1739
      %v1741 = vrot.slane %v1739, 4
      %v1742 = vrot.slane %v755, 5
      %v1743 = vsel %vm1701, %v1741, %v1742
      %v1744 = vrot.slane %v272, 5
      %v1745 = vrot.slane %v1744, 4
      %v1746 = vrot.slane %v273, 5
      %v1747 = vsel %vm1701, %v1745, %v1746
      %v1748 = vrot.slane %v1746, 4
      %v1749 = vrot.slane %v756, 5
      %v1750 = vsel %vm1701, %v1748, %v1749
      %v1751 = vrot.slane %v274, 5
      %v1752 = vrot.slane %v1751, 4
      %v1753 = vrot.slane %v275, 5
      %v1754 = vsel %vm1701, %v1752, %v1753
      %v1755 = vrot.slane %v1753, 4
      %v1756 = vrot.slane %v757, 5
      %v1757 = vsel %vm1701, %v1755, %v1756
      %v1758 = vrot.slane %v276, 5
      %v1759 = vrot.slane %v1758, 4
      %v1760 = vrot.slane %v277, 5
      %v1761 = vsel %vm1701, %v1759, %v1760
      %v1762 = vrot.slane %v1760, 4
      %v1763 = vrot.slane %v758, 5
      %v1764 = vsel %vm1701, %v1762, %v1763
      %v1765 = vrot.slane %v278, 5
      %v1766 = vrot.slane %v1765, 4
      %v1767 = vrot.slane %v279, 5
      %v1768 = vsel %vm1701, %v1766, %v1767
      %v1769 = vrot.slane %v1767, 4
      %v1770 = vrot.slane %v759, 5
      %v1771 = vsel %vm1701, %v1769, %v1770
      %v1772 = vrot.slane %v280, 5
      %v1773 = vrot.slane %v1772, 4
      %v1774 = vrot.slane %v281, 5
      %v1775 = vsel %vm1701, %v1773, %v1774
      %v1776 = vrot.slane %v1774, 4
      %v1777 = vrot.slane %v760, 5
      %v1778 = vsel %vm1701, %v1776, %v1777
      %v1779 = vrot.slane %v282, 5
      %v1780 = vrot.slane %v1779, 4
      %v1781 = vrot.slane %v283, 5
      %v1782 = vsel %vm1701, %v1780, %v1781
      %v1783 = vrot.slane %v1781, 4
      %v1784 = vrot.slane %v761, 5
      %v1785 = vsel %vm1701, %v1783, %v1784
      %v1786 = vrot.slane %v284, 5
      %v1787 = vrot.slane %v1786, 4
      %v1788 = vrot.slane %v285, 5
      %v1789 = vsel %vm1701, %v1787, %v1788
      %v1790 = vrot.slane %v1788, 4
      %v1791 = vrot.slane %v762, 5
      %v1792 = vsel %vm1701, %v1790, %v1791
      %v1793 = vrot.slane %v286, 5
      %v1794 = vrot.slane %v1793, 4
      %v1795 = vrot.slane %v287, 5
      %v1796 = vsel %vm1701, %v1794, %v1795
      %v1797 = vrot.slane %v1795, 4
      %v1798 = vrot.slane %v763, 5
      %v1799 = vsel %vm1701, %v1797, %v1798
      %v1800 = vrot.slane %v288, 5
      %v1801 = vrot.slane %v1800, 4
      %v1802 = vrot.slane %v289, 5
      %v1803 = vsel %vm1701, %v1801, %v1802
      %v1804 = vrot.slane %v1802, 4
      %v1805 = vrot.slane %v764, 5
      %v1806 = vsel %vm1701, %v1804, %v1805
      %v1807 = vrot.slane %v290, 5
      %v1808 = vrot.slane %v1807, 4
      %v1809 = vrot.slane %v291, 5
      %v1810 = vsel %vm1701, %v1808, %v1809
      %v1811 = vrot.slane %v1809, 4
      %v1812 = vrot.slane %v765, 5
      %v1813 = vsel %vm1701, %v1811, %v1812
      %v1814 = vunpack.c.l.b16 %v1705
      %v1815 = vunpack.c.l.b16 %v1708
      %v1816 = vunpack.c.l.b16 %v1712
      %v1817 = vunpack.c.l.b16 %v1715
      %v1818 = vunpack.c.l.b16 %v1719
      %v1819 = vunpack.c.l.b16 %v1722
      %v1820 = vunpack.c.l.b16 %v1726
      %v1821 = vunpack.c.l.b16 %v1729
      %v1822 = vunpack.c.l.b16 %v1733
      %v1823 = vunpack.c.l.b16 %v1736
      %v1824 = vunpack.c.l.b16 %v1740
      %v1825 = vunpack.c.l.b16 %v1743
      %v1826 = vunpack.c.l.b16 %v1747
      %v1827 = vunpack.c.l.b16 %v1750
      %v1828 = vunpack.c.l.b16 %v1754
      %v1829 = vunpack.c.l.b16 %v1757
      %v1830 = vunpack.c.l.b16 %v1761
      %v1831 = vunpack.c.l.b16 %v1764
      %v1832 = vunpack.c.l.b16 %v1768
      %v1833 = vunpack.c.l.b16 %v1771
      %v1834 = vunpack.c.l.b16 %v1775
      %v1835 = vunpack.c.l.b16 %v1778
      %v1836 = vunpack.c.l.b16 %v1782
      %v1837 = vunpack.c.l.b16 %v1785
      %v1838 = vunpack.c.l.b16 %v1789
      %v1839 = vunpack.c.l.b16 %v1792
      %v1840 = vunpack.c.l.b16 %v1796
      %v1841 = vunpack.c.l.b16 %v1799
      %v1842 = vunpack.c.l.b16 %v1803
      %v1843 = vunpack.c.l.b16 %v1806
      %v1844 = vunpack.c.l.b16 %v1810
      %v1845 = vunpack.c.l.b16 %v1813
      %v1846 = vpack.c.b16 %v1815, %v1814
      %v1847 = vpack.c.b16 %v1817, %v1816
      %v1848 = vpack.c.b16 %v1819, %v1818
      %v1849 = vpack.c.b16 %v1821, %v1820
      %v1850 = vpack.c.b16 %v1823, %v1822
      %v1851 = vpack.c.b16 %v1825, %v1824
      %v1852 = vpack.c.b16 %v1827, %v1826
      %v1853 = vpack.c.b16 %v1829, %v1828
      %v1854 = vpack.c.b16 %v1831, %v1830
      %v1855 = vpack.c.b16 %v1833, %v1832
      %v1856 = vpack.c.b16 %v1835, %v1834
      %v1857 = vpack.c.b16 %v1837, %v1836
      %v1858 = vpack.c.b16 %v1839, %v1838
      %v1859 = vpack.c.b16 %v1841, %v1840
      %v1860 = vpack.c.b16 %v1843, %v1842
      %v1861 = vpack.c.b16 %v1845, %v1844
      %v1863 = vsel %vm376, %v1846, 0
      %v1866 = vsel %vm376, %v1847, 0
      %v1869 = vsel %vm376, %v1848, 0
      %v1872 = vsel %vm376, %v1849, 0
      %v1875 = vsel %vm376, %v1850, 0
      %v1878 = vsel %vm376, %v1851, 0
      %v1881 = vsel %vm376, %v1852, 0
      %v1884 = vsel %vm376, %v1853, 0
      %v1887 = vsel %vm376, %v1854, 0
      %v1890 = vsel %vm376, %v1855, 0
      %v1893 = vsel %vm376, %v1856, 0
      %v1896 = vsel %vm376, %v1857, 0
      %v1899 = vsel %vm376, %v1858, 0
      %v1902 = vsel %vm376, %v1859, 0
      %v1905 = vsel %vm376, %v1860, 0
      %v1908 = vsel %vm376, %v1861, 0
      %v1911 = vsel %vm425, %v230, 0
      %1913 = vmatpush.bf16.msra.mxu0 0
      %1914 = vmatpush.bf16.msra.mxu0 0
      %1915 = vmatpush.bf16.msra.mxu0 0
      %1916 = vmatpush.bf16.msra.mxu0 0
      %1917 = vmatpush.bf16.msra.mxu0 0
      %1918 = vmatpush.bf16.msra.mxu0 0
      %1919 = vmatpush.bf16.msra.mxu0 0
      %1920 = vmatpush.bf16.msra.mxu0 %v1911
      %1921 = vmatmul.bf16.gmra.mxu0 %v1863
      %v1922 = vpop.f32.mrf.mxu0
      %v1923 = vadd.f32 0.0, %v1922
      %v1924 = vpop.f32.mrf.mxu0
      %v1925 = vadd.f32 0.0, %v1924
      %1926 = vmatmul.bf16.gmra.mxu0 %v1866
      %v1927 = vpop.f32.mrf.mxu0
      %v1928 = vadd.f32 0.0, %v1927
      %v1929 = vpop.f32.mrf.mxu0
      %v1930 = vadd.f32 0.0, %v1929
      %1931 = vmatmul.bf16.gmra.mxu0 %v1869
      %v1932 = vpop.f32.mrf.mxu0
      %v1933 = vadd.f32 0.0, %v1932
      %v1934 = vpop.f32.mrf.mxu0
      %v1935 = vadd.f32 0.0, %v1934
      %1936 = vmatmul.bf16.gmra.mxu0 %v1872
      %v1937 = vpop.f32.mrf.mxu0
      %v1938 = vadd.f32 0.0, %v1937
      %v1939 = vpop.f32.mrf.mxu0
      %v1940 = vadd.f32 0.0, %v1939
      %1941 = vmatmul.bf16.gmra.mxu0 %v1875
      %v1942 = vpop.f32.mrf.mxu0
      %v1943 = vadd.f32 0.0, %v1942
      %v1944 = vpop.f32.mrf.mxu0
      %v1945 = vadd.f32 0.0, %v1944
      %1946 = vmatmul.bf16.gmra.mxu0 %v1878
      %v1947 = vpop.f32.mrf.mxu0
      %v1948 = vadd.f32 0.0, %v1947
      %v1949 = vpop.f32.mrf.mxu0
      %v1950 = vadd.f32 0.0, %v1949
      %1951 = vmatmul.bf16.gmra.mxu0 %v1881
      %v1952 = vpop.f32.mrf.mxu0
      %v1953 = vadd.f32 0.0, %v1952
      %v1954 = vpop.f32.mrf.mxu0
      %v1955 = vadd.f32 0.0, %v1954
      %1956 = vmatmul.bf16.gmra.mxu0 %v1884
      %v1957 = vpop.f32.mrf.mxu0
      %v1958 = vadd.f32 0.0, %v1957
      %v1959 = vpop.f32.mrf.mxu0
      %v1960 = vadd.f32 0.0, %v1959
      %1961 = vmatmul.bf16.gmra.mxu0 %v1887
      %v1962 = vpop.f32.mrf.mxu0
      %v1963 = vadd.f32 0.0, %v1962
      %v1964 = vpop.f32.mrf.mxu0
      %v1965 = vadd.f32 0.0, %v1964
      %1966 = vmatmul.bf16.gmra.mxu0 %v1890
      %v1967 = vpop.f32.mrf.mxu0
      %v1968 = vadd.f32 0.0, %v1967
      %v1969 = vpop.f32.mrf.mxu0
      %v1970 = vadd.f32 0.0, %v1969
      %1971 = vmatmul.bf16.gmra.mxu0 %v1893
      %v1972 = vpop.f32.mrf.mxu0
      %v1973 = vadd.f32 0.0, %v1972
      %v1974 = vpop.f32.mrf.mxu0
      %v1975 = vadd.f32 0.0, %v1974
      %1976 = vmatmul.bf16.gmra.mxu0 %v1896
      %v1977 = vpop.f32.mrf.mxu0
      %v1978 = vadd.f32 0.0, %v1977
      %v1979 = vpop.f32.mrf.mxu0
      %v1980 = vadd.f32 0.0, %v1979
      %1981 = vmatmul.bf16.gmra.mxu0 %v1899
      %v1982 = vpop.f32.mrf.mxu0
      %v1983 = vadd.f32 0.0, %v1982
      %v1984 = vpop.f32.mrf.mxu0
      %v1985 = vadd.f32 0.0, %v1984
      %1986 = vmatmul.bf16.gmra.mxu0 %v1902
      %v1987 = vpop.f32.mrf.mxu0
      %v1988 = vadd.f32 0.0, %v1987
      %v1989 = vpop.f32.mrf.mxu0
      %v1990 = vadd.f32 0.0, %v1989
      %1991 = vmatmul.bf16.gmra.mxu0 %v1905
      %v1992 = vpop.f32.mrf.mxu0
      %v1993 = vadd.f32 0.0, %v1992
      %v1994 = vpop.f32.mrf.mxu0
      %v1995 = vadd.f32 0.0, %v1994
      %1996 = vmatmul.bf16.gmra.mxu0 %v1908
      %v1997 = vpop.f32.mrf.mxu0
      %v1998 = vadd.f32 0.0, %v1997
      %v1999 = vpop.f32.mrf.mxu0
      %v2000 = vadd.f32 0.0, %v1999
      %2001 = vdwg.mxu0
      %v2002 = vadd.f32 %v1651, %v1923
      %v2003 = vadd.f32 %v1652, %v1925
      %v2004 = vadd.f32 %v1653, %v1928
      %v2005 = vadd.f32 %v1654, %v1930
      %v2006 = vadd.f32 %v1655, %v1933
      %v2007 = vadd.f32 %v1656, %v1935
      %v2008 = vadd.f32 %v1657, %v1938
      %v2009 = vadd.f32 %v1658, %v1940
      %v2010 = vadd.f32 %v1659, %v1943
      %v2011 = vadd.f32 %v1660, %v1945
      %v2012 = vadd.f32 %v1661, %v1948
      %v2013 = vadd.f32 %v1662, %v1950
      %v2014 = vadd.f32 %v1663, %v1953
      %v2015 = vadd.f32 %v1664, %v1955
      %v2016 = vadd.f32 %v1665, %v1958
      %v2017 = vadd.f32 %v1666, %v1960
      %v2018 = vadd.f32 %v1667, %v1963
      %v2019 = vadd.f32 %v1668, %v1965
      %v2020 = vadd.f32 %v1669, %v1968
      %v2021 = vadd.f32 %v1670, %v1970
      %v2022 = vadd.f32 %v1671, %v1973
      %v2023 = vadd.f32 %v1672, %v1975
      %v2024 = vadd.f32 %v1673, %v1978
      %v2025 = vadd.f32 %v1674, %v1980
      %v2026 = vadd.f32 %v1675, %v1983
      %v2027 = vadd.f32 %v1676, %v1985
      %v2028 = vadd.f32 %v1677, %v1988
      %v2029 = vadd.f32 %v1678, %v1990
      %v2030 = vadd.f32 %v1679, %v1993
      %v2031 = vadd.f32 %v1680, %v1995
      %v2032 = vadd.f32 %v1681, %v1998
      %v2033 = vadd.f32 %v1682, %v2000
      %v2035 = vrot.slane %v292, 5
      %v2036 = vrot.slane %v2035, 4
      %v2037 = vrot.slane %v293, 5
      %v2038 = vsel %vm1701, %v2036, %v2037
      %v2039 = vrot.slane %v2037, 4
      %v2040 = vrot.slane %v766, 5
      %v2041 = vsel %vm1701, %v2039, %v2040
      %v2042 = vunpack.c.l.b16 %v2038
      %v2043 = vunpack.c.l.b16 %v2041
      %v2044 = vpack.c.b16 %v2043, %v2042
      %v2046 = vsel %vm376, %v2044, 0
      %v2049 = vsel %vm425, %v236, 0
      %2051 = vmatpush.bf16.msra.mxu0 0
      %2052 = vmatpush.bf16.msra.mxu0 0
      %2053 = vmatpush.bf16.msra.mxu0 0
      %2054 = vmatpush.bf16.msra.mxu0 0
      %2055 = vmatpush.bf16.msra.mxu0 0
      %2056 = vmatpush.bf16.msra.mxu0 0
      %2057 = vmatpush.bf16.msra.mxu0 0
      %2058 = vmatpush.bf16.msra.mxu0 %v2049
      %2059 = vmatmul.bf16.gmra.mxu0 %v1866
      %v2060 = vpop.f32.mrf.mxu0
      %v2061 = vadd.f32 0.0, %v2060
      %v2062 = vpop.f32.mrf.mxu0
      %v2063 = vadd.f32 0.0, %v2062
      %2064 = vmatmul.bf16.gmra.mxu0 %v1869
      %v2065 = vpop.f32.mrf.mxu0
      %v2066 = vadd.f32 0.0, %v2065
      %v2067 = vpop.f32.mrf.mxu0
      %v2068 = vadd.f32 0.0, %v2067
      %2069 = vmatmul.bf16.gmra.mxu0 %v1872
      %v2070 = vpop.f32.mrf.mxu0
      %v2071 = vadd.f32 0.0, %v2070
      %v2072 = vpop.f32.mrf.mxu0
      %v2073 = vadd.f32 0.0, %v2072
      %2074 = vmatmul.bf16.gmra.mxu0 %v1875
      %v2075 = vpop.f32.mrf.mxu0
      %v2076 = vadd.f32 0.0, %v2075
      %v2077 = vpop.f32.mrf.mxu0
      %v2078 = vadd.f32 0.0, %v2077
      %2079 = vmatmul.bf16.gmra.mxu0 %v1878
      %v2080 = vpop.f32.mrf.mxu0
      %v2081 = vadd.f32 0.0, %v2080
      %v2082 = vpop.f32.mrf.mxu0
      %v2083 = vadd.f32 0.0, %v2082
      %2084 = vmatmul.bf16.gmra.mxu0 %v1881
      %v2085 = vpop.f32.mrf.mxu0
      %v2086 = vadd.f32 0.0, %v2085
      %v2087 = vpop.f32.mrf.mxu0
      %v2088 = vadd.f32 0.0, %v2087
      %2089 = vmatmul.bf16.gmra.mxu0 %v1884
      %v2090 = vpop.f32.mrf.mxu0
      %v2091 = vadd.f32 0.0, %v2090
      %v2092 = vpop.f32.mrf.mxu0
      %v2093 = vadd.f32 0.0, %v2092
      %2094 = vmatmul.bf16.gmra.mxu0 %v1887
      %v2095 = vpop.f32.mrf.mxu0
      %v2096 = vadd.f32 0.0, %v2095
      %v2097 = vpop.f32.mrf.mxu0
      %v2098 = vadd.f32 0.0, %v2097
      %2099 = vmatmul.bf16.gmra.mxu0 %v1890
      %v2100 = vpop.f32.mrf.mxu0
      %v2101 = vadd.f32 0.0, %v2100
      %v2102 = vpop.f32.mrf.mxu0
      %v2103 = vadd.f32 0.0, %v2102
      %2104 = vmatmul.bf16.gmra.mxu0 %v1893
      %v2105 = vpop.f32.mrf.mxu0
      %v2106 = vadd.f32 0.0, %v2105
      %v2107 = vpop.f32.mrf.mxu0
      %v2108 = vadd.f32 0.0, %v2107
      %2109 = vmatmul.bf16.gmra.mxu0 %v1896
      %v2110 = vpop.f32.mrf.mxu0
      %v2111 = vadd.f32 0.0, %v2110
      %v2112 = vpop.f32.mrf.mxu0
      %v2113 = vadd.f32 0.0, %v2112
      %2114 = vmatmul.bf16.gmra.mxu0 %v1899
      %v2115 = vpop.f32.mrf.mxu0
      %v2116 = vadd.f32 0.0, %v2115
      %v2117 = vpop.f32.mrf.mxu0
      %v2118 = vadd.f32 0.0, %v2117
      %2119 = vmatmul.bf16.gmra.mxu0 %v1902
      %v2120 = vpop.f32.mrf.mxu0
      %v2121 = vadd.f32 0.0, %v2120
      %v2122 = vpop.f32.mrf.mxu0
      %v2123 = vadd.f32 0.0, %v2122
      %2124 = vmatmul.bf16.gmra.mxu0 %v1905
      %v2125 = vpop.f32.mrf.mxu0
      %v2126 = vadd.f32 0.0, %v2125
      %v2127 = vpop.f32.mrf.mxu0
      %v2128 = vadd.f32 0.0, %v2127
      %2129 = vmatmul.bf16.gmra.mxu0 %v1908
      %v2130 = vpop.f32.mrf.mxu0
      %v2131 = vadd.f32 0.0, %v2130
      %v2132 = vpop.f32.mrf.mxu0
      %v2133 = vadd.f32 0.0, %v2132
      %2134 = vmatmul.bf16.gmra.mxu0 %v2046
      %v2135 = vpop.f32.mrf.mxu0
      %v2136 = vadd.f32 0.0, %v2135
      %v2137 = vpop.f32.mrf.mxu0
      %v2138 = vadd.f32 0.0, %v2137
      %2139 = vdwg.mxu0
      %v2140 = vadd.f32 %v2002, %v2061
      %v2141 = vadd.f32 %v2003, %v2063
      %v2142 = vadd.f32 %v2004, %v2066
      %v2143 = vadd.f32 %v2005, %v2068
      %v2144 = vadd.f32 %v2006, %v2071
      %v2145 = vadd.f32 %v2007, %v2073
      %v2146 = vadd.f32 %v2008, %v2076
      %v2147 = vadd.f32 %v2009, %v2078
      %v2148 = vadd.f32 %v2010, %v2081
      %v2149 = vadd.f32 %v2011, %v2083
      %v2150 = vadd.f32 %v2012, %v2086
      %v2151 = vadd.f32 %v2013, %v2088
      %v2152 = vadd.f32 %v2014, %v2091
      %v2153 = vadd.f32 %v2015, %v2093
      %v2154 = vadd.f32 %v2016, %v2096
      %v2155 = vadd.f32 %v2017, %v2098
      %v2156 = vadd.f32 %v2018, %v2101
      %v2157 = vadd.f32 %v2019, %v2103
      %v2158 = vadd.f32 %v2020, %v2106
      %v2159 = vadd.f32 %v2021, %v2108
      %v2160 = vadd.f32 %v2022, %v2111
      %v2161 = vadd.f32 %v2023, %v2113
      %v2162 = vadd.f32 %v2024, %v2116
      %v2163 = vadd.f32 %v2025, %v2118
      %v2164 = vadd.f32 %v2026, %v2121
      %v2165 = vadd.f32 %v2027, %v2123
      %v2166 = vadd.f32 %v2028, %v2126
      %v2167 = vadd.f32 %v2029, %v2128
      %v2168 = vadd.f32 %v2030, %v2131
      %v2169 = vadd.f32 %v2031, %v2133
      %v2170 = vadd.f32 %v2032, %v2136
      %v2171 = vadd.f32 %v2033, %v2138
      %v2173 = vrot.slane %v294, 5
      %v2174 = vrot.slane %v2173, 4
      %v2175 = vrot.slane %v295, 5
      %v2176 = vsel %vm1701, %v2174, %v2175
      %v2177 = vrot.slane %v2175, 4
      %v2178 = vrot.slane %v767, 5
      %v2179 = vsel %vm1701, %v2177, %v2178
      %v2180 = vunpack.c.l.b16 %v2176
      %v2181 = vunpack.c.l.b16 %v2179
      %v2182 = vpack.c.b16 %v2181, %v2180
      %v2184 = vsel %vm376, %v2182, 0
      %v2187 = vsel %vm425, %v242, 0
      %2189 = vmatpush.bf16.msra.mxu0 0
      %2190 = vmatpush.bf16.msra.mxu0 0
      %2191 = vmatpush.bf16.msra.mxu0 0
      %2192 = vmatpush.bf16.msra.mxu0 0
      %2193 = vmatpush.bf16.msra.mxu0 0
      %2194 = vmatpush.bf16.msra.mxu0 0
      %2195 = vmatpush.bf16.msra.mxu0 0
      %2196 = vmatpush.bf16.msra.mxu0 %v2187
      %2197 = vmatmul.bf16.gmra.mxu0 %v1869
      %v2198 = vpop.f32.mrf.mxu0
      %v2199 = vadd.f32 0.0, %v2198
      %v2200 = vpop.f32.mrf.mxu0
      %v2201 = vadd.f32 0.0, %v2200
      %2202 = vmatmul.bf16.gmra.mxu0 %v1872
      %v2203 = vpop.f32.mrf.mxu0
      %v2204 = vadd.f32 0.0, %v2203
      %v2205 = vpop.f32.mrf.mxu0
      %v2206 = vadd.f32 0.0, %v2205
      %2207 = vmatmul.bf16.gmra.mxu0 %v1875
      %v2208 = vpop.f32.mrf.mxu0
      %v2209 = vadd.f32 0.0, %v2208
      %v2210 = vpop.f32.mrf.mxu0
      %v2211 = vadd.f32 0.0, %v2210
      %2212 = vmatmul.bf16.gmra.mxu0 %v1878
      %v2213 = vpop.f32.mrf.mxu0
      %v2214 = vadd.f32 0.0, %v2213
      %v2215 = vpop.f32.mrf.mxu0
      %v2216 = vadd.f32 0.0, %v2215
      %2217 = vmatmul.bf16.gmra.mxu0 %v1881
      %v2218 = vpop.f32.mrf.mxu0
      %v2219 = vadd.f32 0.0, %v2218
      %v2220 = vpop.f32.mrf.mxu0
      %v2221 = vadd.f32 0.0, %v2220
      %2222 = vmatmul.bf16.gmra.mxu0 %v1884
      %v2223 = vpop.f32.mrf.mxu0
      %v2224 = vadd.f32 0.0, %v2223
      %v2225 = vpop.f32.mrf.mxu0
      %v2226 = vadd.f32 0.0, %v2225
      %2227 = vmatmul.bf16.gmra.mxu0 %v1887
      %v2228 = vpop.f32.mrf.mxu0
      %v2229 = vadd.f32 0.0, %v2228
      %v2230 = vpop.f32.mrf.mxu0
      %v2231 = vadd.f32 0.0, %v2230
      %2232 = vmatmul.bf16.gmra.mxu0 %v1890
      %v2233 = vpop.f32.mrf.mxu0
      %v2234 = vadd.f32 0.0, %v2233
      %v2235 = vpop.f32.mrf.mxu0
      %v2236 = vadd.f32 0.0, %v2235
      %2237 = vmatmul.bf16.gmra.mxu0 %v1893
      %v2238 = vpop.f32.mrf.mxu0
      %v2239 = vadd.f32 0.0, %v2238
      %v2240 = vpop.f32.mrf.mxu0
      %v2241 = vadd.f32 0.0, %v2240
      %2242 = vmatmul.bf16.gmra.mxu0 %v1896
      %v2243 = vpop.f32.mrf.mxu0
      %v2244 = vadd.f32 0.0, %v2243
      %v2245 = vpop.f32.mrf.mxu0
      %v2246 = vadd.f32 0.0, %v2245
      %2247 = vmatmul.bf16.gmra.mxu0 %v1899
      %v2248 = vpop.f32.mrf.mxu0
      %v2249 = vadd.f32 0.0, %v2248
      %v2250 = vpop.f32.mrf.mxu0
      %v2251 = vadd.f32 0.0, %v2250
      %2252 = vmatmul.bf16.gmra.mxu0 %v1902
      %v2253 = vpop.f32.mrf.mxu0
      %v2254 = vadd.f32 0.0, %v2253
      %v2255 = vpop.f32.mrf.mxu0
      %v2256 = vadd.f32 0.0, %v2255
      %2257 = vmatmul.bf16.gmra.mxu0 %v1905
      %v2258 = vpop.f32.mrf.mxu0
      %v2259 = vadd.f32 0.0, %v2258
      %v2260 = vpop.f32.mrf.mxu0
      %v2261 = vadd.f32 0.0, %v2260
      %2262 = vmatmul.bf16.gmra.mxu0 %v1908
      %v2263 = vpop.f32.mrf.mxu0
      %v2264 = vadd.f32 0.0, %v2263
      %v2265 = vpop.f32.mrf.mxu0
      %v2266 = vadd.f32 0.0, %v2265
      %2267 = vmatmul.bf16.gmra.mxu0 %v2046
      %v2268 = vpop.f32.mrf.mxu0
      %v2269 = vadd.f32 0.0, %v2268
      %v2270 = vpop.f32.mrf.mxu0
      %v2271 = vadd.f32 0.0, %v2270
      %2272 = vmatmul.bf16.gmra.mxu0 %v2184
      %v2273 = vpop.f32.mrf.mxu0
      %v2274 = vadd.f32 0.0, %v2273
      %v2275 = vpop.f32.mrf.mxu0
      %v2276 = vadd.f32 0.0, %v2275
      %2277 = vdwg.mxu0
      %v2278 = vadd.f32 %v2140, %v2199
      %v2279 = vadd.f32 %v2141, %v2201
      %v2280 = vadd.f32 %v2142, %v2204
      %v2281 = vadd.f32 %v2143, %v2206
      %v2282 = vadd.f32 %v2144, %v2209
      %v2283 = vadd.f32 %v2145, %v2211
      %v2284 = vadd.f32 %v2146, %v2214
      %v2285 = vadd.f32 %v2147, %v2216
      %v2286 = vadd.f32 %v2148, %v2219
      %v2287 = vadd.f32 %v2149, %v2221
      %v2288 = vadd.f32 %v2150, %v2224
      %v2289 = vadd.f32 %v2151, %v2226
      %v2290 = vadd.f32 %v2152, %v2229
      %v2291 = vadd.f32 %v2153, %v2231
      %v2292 = vadd.f32 %v2154, %v2234
      %v2293 = vadd.f32 %v2155, %v2236
      %v2294 = vadd.f32 %v2156, %v2239
      %v2295 = vadd.f32 %v2157, %v2241
      %v2296 = vadd.f32 %v2158, %v2244
      %v2297 = vadd.f32 %v2159, %v2246
      %v2298 = vadd.f32 %v2160, %v2249
      %v2299 = vadd.f32 %v2161, %v2251
      %v2300 = vadd.f32 %v2162, %v2254
      %v2301 = vadd.f32 %v2163, %v2256
      %v2302 = vadd.f32 %v2164, %v2259
      %v2303 = vadd.f32 %v2165, %v2261
      %v2304 = vadd.f32 %v2166, %v2264
      %v2305 = vadd.f32 %v2167, %v2266
      %v2306 = vadd.f32 %v2168, %v2269
      %v2307 = vadd.f32 %v2169, %v2271
      %v2308 = vadd.f32 %v2170, %v2274
      %v2309 = vadd.f32 %v2171, %v2276
      %v2310 = vsel %vm376, %v2278, 0.0
      %v2311 = vsel %vm376, %v2279, 0.0
      %v2312 = vadd.f32 %v2310, %v2311
      %v2313 = vsel %vm376, %v2280, 0.0
      %v2314 = vadd.f32 %v2312, %v2313
      %v2315 = vsel %vm376, %v2281, 0.0
      %v2316 = vadd.f32 %v2314, %v2315
      %v2317 = vsel %vm376, %v2282, 0.0
      %v2318 = vadd.f32 %v2316, %v2317
      %v2319 = vsel %vm376, %v2283, 0.0
      %v2320 = vadd.f32 %v2318, %v2319
      %v2321 = vsel %vm376, %v2284, 0.0
      %v2322 = vadd.f32 %v2320, %v2321
      %v2323 = vsel %vm376, %v2285, 0.0
      %v2324 = vadd.f32 %v2322, %v2323
      %v2325 = vsel %vm376, %v2286, 0.0
      %v2326 = vadd.f32 %v2324, %v2325
      %v2327 = vsel %vm376, %v2287, 0.0
      %v2328 = vadd.f32 %v2326, %v2327
      %v2329 = vsel %vm376, %v2288, 0.0
      %v2330 = vadd.f32 %v2328, %v2329
      %v2331 = vsel %vm376, %v2289, 0.0
      %v2332 = vadd.f32 %v2330, %v2331
      %v2333 = vsel %vm376, %v2290, 0.0
      %v2334 = vadd.f32 %v2332, %v2333
      %v2335 = vsel %vm376, %v2291, 0.0
      %v2336 = vadd.f32 %v2334, %v2335
      %v2337 = vsel %vm376, %v2292, 0.0
      %v2338 = vadd.f32 %v2336, %v2337
      %v2339 = vsel %vm376, %v2293, 0.0
      %v2340 = vadd.f32 %v2338, %v2339
      %v2341 = vsel %vm376, %v2294, 0.0
      %v2342 = vadd.f32 %v2340, %v2341
      %v2343 = vsel %vm376, %v2295, 0.0
      %v2344 = vadd.f32 %v2342, %v2343
      %v2345 = vsel %vm376, %v2296, 0.0
      %v2346 = vadd.f32 %v2344, %v2345
      %v2347 = vsel %vm376, %v2297, 0.0
      %v2348 = vadd.f32 %v2346, %v2347
      %v2349 = vsel %vm376, %v2298, 0.0
      %v2350 = vadd.f32 %v2348, %v2349
      %v2351 = vsel %vm376, %v2299, 0.0
      %v2352 = vadd.f32 %v2350, %v2351
      %v2353 = vsel %vm376, %v2300, 0.0
      %v2354 = vadd.f32 %v2352, %v2353
      %v2355 = vsel %vm376, %v2301, 0.0
      %v2356 = vadd.f32 %v2354, %v2355
      %v2357 = vsel %vm376, %v2302, 0.0
      %v2358 = vadd.f32 %v2356, %v2357
      %v2359 = vsel %vm376, %v2303, 0.0
      %v2360 = vadd.f32 %v2358, %v2359
      %v2361 = vsel %vm376, %v2304, 0.0
      %v2362 = vadd.f32 %v2360, %v2361
      %v2363 = vsel %vm376, %v2305, 0.0
      %v2364 = vadd.f32 %v2362, %v2363
      %v2365 = vsel %vm376, %v2306, 0.0
      %v2366 = vadd.f32 %v2364, %v2365
      %v2367 = vsel %vm376, %v2307, 0.0
      %v2368 = vadd.f32 %v2366, %v2367
      %v2369 = vsel %vm376, %v2308, 0.0
      %v2370 = vadd.f32 %v2368, %v2369
      %v2371 = vsel %vm376, %v2309, 0.0
      %v2372 = vadd.f32 %v2370, %v2371
      %v2373 = vrot.slane %v2372, 4
      %v2374 = vadd.f32 %v2372, %v2373
      %v2375 = vrot.slane %v2374, 2
      %v2376 = vadd.f32 %v2374, %v2375
      %v2377 = vrot.slane %v2376, 1
      %v2378 = vadd.f32 %v2376, %v2377
      %v2379 = vmul.f32 %v2278, %v2278
      %v2380 = vmul.f32 %v2279, %v2279
      %v2381 = vmul.f32 %v2280, %v2280
      %v2382 = vmul.f32 %v2281, %v2281
      %v2383 = vmul.f32 %v2282, %v2282
      %v2384 = vmul.f32 %v2283, %v2283
      %v2385 = vmul.f32 %v2284, %v2284
      %v2386 = vmul.f32 %v2285, %v2285
      %v2387 = vmul.f32 %v2286, %v2286
      %v2388 = vmul.f32 %v2287, %v2287
      %v2389 = vmul.f32 %v2288, %v2288
      %v2390 = vmul.f32 %v2289, %v2289
      %v2391 = vmul.f32 %v2290, %v2290
      %v2392 = vmul.f32 %v2291, %v2291
      %v2393 = vmul.f32 %v2292, %v2292
      %v2394 = vmul.f32 %v2293, %v2293
      %v2395 = vmul.f32 %v2294, %v2294
      %v2396 = vmul.f32 %v2295, %v2295
      %v2397 = vmul.f32 %v2296, %v2296
      %v2398 = vmul.f32 %v2297, %v2297
      %v2399 = vmul.f32 %v2298, %v2298
      %v2400 = vmul.f32 %v2299, %v2299
      %v2401 = vmul.f32 %v2300, %v2300
      %v2402 = vmul.f32 %v2301, %v2301
      %v2403 = vmul.f32 %v2302, %v2302
      %v2404 = vmul.f32 %v2303, %v2303
      %v2405 = vmul.f32 %v2304, %v2304
      %v2406 = vmul.f32 %v2305, %v2305
      %v2407 = vmul.f32 %v2306, %v2306
      %v2408 = vmul.f32 %v2307, %v2307
      %v2409 = vmul.f32 %v2308, %v2308
      %v2410 = vmul.f32 %v2309, %v2309
      %v2411 = vsel %vm376, %v2379, 0.0
      %v2412 = vsel %vm376, %v2380, 0.0
      %v2413 = vadd.f32 %v2411, %v2412
      %v2414 = vsel %vm376, %v2381, 0.0
      %v2415 = vadd.f32 %v2413, %v2414
      %v2416 = vsel %vm376, %v2382, 0.0
      %v2417 = vadd.f32 %v2415, %v2416
      %v2418 = vsel %vm376, %v2383, 0.0
      %v2419 = vadd.f32 %v2417, %v2418
      %v2420 = vsel %vm376, %v2384, 0.0
      %v2421 = vadd.f32 %v2419, %v2420
      %v2422 = vsel %vm376, %v2385, 0.0
      %v2423 = vadd.f32 %v2421, %v2422
      %v2424 = vsel %vm376, %v2386, 0.0
      %v2425 = vadd.f32 %v2423, %v2424
      %v2426 = vsel %vm376, %v2387, 0.0
      %v2427 = vadd.f32 %v2425, %v2426
      %v2428 = vsel %vm376, %v2388, 0.0
      %v2429 = vadd.f32 %v2427, %v2428
      %v2430 = vsel %vm376, %v2389, 0.0
      %v2431 = vadd.f32 %v2429, %v2430
      %v2432 = vsel %vm376, %v2390, 0.0
      %v2433 = vadd.f32 %v2431, %v2432
      %v2434 = vsel %vm376, %v2391, 0.0
      %v2435 = vadd.f32 %v2433, %v2434
      %v2436 = vsel %vm376, %v2392, 0.0
      %v2437 = vadd.f32 %v2435, %v2436
      %v2438 = vsel %vm376, %v2393, 0.0
      %v2439 = vadd.f32 %v2437, %v2438
      %v2440 = vsel %vm376, %v2394, 0.0
      %v2441 = vadd.f32 %v2439, %v2440
      %v2442 = vsel %vm376, %v2395, 0.0
      %v2443 = vadd.f32 %v2441, %v2442
      %v2444 = vsel %vm376, %v2396, 0.0
      %v2445 = vadd.f32 %v2443, %v2444
      %v2446 = vsel %vm376, %v2397, 0.0
      %v2447 = vadd.f32 %v2445, %v2446
      %v2448 = vsel %vm376, %v2398, 0.0
      %v2449 = vadd.f32 %v2447, %v2448
      %v2450 = vsel %vm376, %v2399, 0.0
      %v2451 = vadd.f32 %v2449, %v2450
      %v2452 = vsel %vm376, %v2400, 0.0
      %v2453 = vadd.f32 %v2451, %v2452
      %v2454 = vsel %vm376, %v2401, 0.0
      %v2455 = vadd.f32 %v2453, %v2454
      %v2456 = vsel %vm376, %v2402, 0.0
      %v2457 = vadd.f32 %v2455, %v2456
      %v2458 = vsel %vm376, %v2403, 0.0
      %v2459 = vadd.f32 %v2457, %v2458
      %v2460 = vsel %vm376, %v2404, 0.0
      %v2461 = vadd.f32 %v2459, %v2460
      %v2462 = vsel %vm376, %v2405, 0.0
      %v2463 = vadd.f32 %v2461, %v2462
      %v2464 = vsel %vm376, %v2406, 0.0
      %v2465 = vadd.f32 %v2463, %v2464
      %v2466 = vsel %vm376, %v2407, 0.0
      %v2467 = vadd.f32 %v2465, %v2466
      %v2468 = vsel %vm376, %v2408, 0.0
      %v2469 = vadd.f32 %v2467, %v2468
      %v2470 = vsel %vm376, %v2409, 0.0
      %v2471 = vadd.f32 %v2469, %v2470
      %v2472 = vsel %vm376, %v2410, 0.0
      %v2473 = vadd.f32 %v2471, %v2472
      %v2474 = vrot.slane %v2473, 4
      %v2475 = vadd.f32 %v2473, %v2474
      %v2476 = vrot.slane %v2475, 2
      %v2477 = vadd.f32 %v2475, %v2476
      %v2478 = vrot.slane %v2477, 1
      %v2479 = vadd.f32 %v2477, %v2478
      %v2480 = vmul.f32 %v2378, 0.00390625
      %v2481 = vmul.f32 %v2479, 0.00390625
      %v2482 = vmul.f32 %v2480, %v2480
      %v2483 = vsub.f32 %v2481, %v2482
      %v2484 = vsub.f32 %v2278, %v2480
      %v2485 = vsub.f32 %v2279, %v2480
      %v2486 = vsub.f32 %v2280, %v2480
      %v2487 = vsub.f32 %v2281, %v2480
      %v2488 = vsub.f32 %v2282, %v2480
      %v2489 = vsub.f32 %v2283, %v2480
      %v2490 = vsub.f32 %v2284, %v2480
      %v2491 = vsub.f32 %v2285, %v2480
      %v2492 = vsub.f32 %v2286, %v2480
      %v2493 = vsub.f32 %v2287, %v2480
      %v2494 = vsub.f32 %v2288, %v2480
      %v2495 = vsub.f32 %v2289, %v2480
      %v2496 = vsub.f32 %v2290, %v2480
      %v2497 = vsub.f32 %v2291, %v2480
      %v2498 = vsub.f32 %v2292, %v2480
      %v2499 = vsub.f32 %v2293, %v2480
      %v2500 = vsub.f32 %v2294, %v2480
      %v2501 = vsub.f32 %v2295, %v2480
      %v2502 = vsub.f32 %v2296, %v2480
      %v2503 = vsub.f32 %v2297, %v2480
      %v2504 = vsub.f32 %v2298, %v2480
      %v2505 = vsub.f32 %v2299, %v2480
      %v2506 = vsub.f32 %v2300, %v2480
      %v2507 = vsub.f32 %v2301, %v2480
      %v2508 = vsub.f32 %v2302, %v2480
      %v2509 = vsub.f32 %v2303, %v2480
      %v2510 = vsub.f32 %v2304, %v2480
      %v2511 = vsub.f32 %v2305, %v2480
      %v2512 = vsub.f32 %v2306, %v2480
      %v2513 = vsub.f32 %v2307, %v2480
      %v2514 = vsub.f32 %v2308, %v2480
      %v2515 = vsub.f32 %v2309, %v2480
      %v2516 = vadd.f32 %v2483, 1e-05
      %v2517 = vrsqrt.pop %v2516
      %v2518 = vmul.f32 %v2517, %v2516
      %v2519 = vmul.f32 %v2518, %v2517
      %v2520 = vmul.f32 0.5, %v2519
      %v2521 = vsub.f32 1.5, %v2520
      %v2522 = vmul.f32 %v2517, %v2521
      %vm2523 = vweird.f32 %v2516
      %vm2524 = vweird.f32 %v2517
      %vm2525 = vmor %vm2523, %vm2524
      %v2526 = vsel %vm2525, %v2517, %v2522
      %v2527 = vmul.f32 %v2484, %v2526
      %v2528 = vmul.f32 %v2485, %v2526
      %v2529 = vmul.f32 %v2486, %v2526
      %v2530 = vmul.f32 %v2487, %v2526
      %v2531 = vmul.f32 %v2488, %v2526
      %v2532 = vmul.f32 %v2489, %v2526
      %v2533 = vmul.f32 %v2490, %v2526
      %v2534 = vmul.f32 %v2491, %v2526
      %v2535 = vmul.f32 %v2492, %v2526
      %v2536 = vmul.f32 %v2493, %v2526
      %v2537 = vmul.f32 %v2494, %v2526
      %v2538 = vmul.f32 %v2495, %v2526
      %v2539 = vmul.f32 %v2496, %v2526
      %v2540 = vmul.f32 %v2497, %v2526
      %v2541 = vmul.f32 %v2498, %v2526
      %v2542 = vmul.f32 %v2499, %v2526
      %v2543 = vmul.f32 %v2500, %v2526
      %v2544 = vmul.f32 %v2501, %v2526
      %v2545 = vmul.f32 %v2502, %v2526
      %v2546 = vmul.f32 %v2503, %v2526
      %v2547 = vmul.f32 %v2504, %v2526
      %v2548 = vmul.f32 %v2505, %v2526
      %v2549 = vmul.f32 %v2506, %v2526
      %v2550 = vmul.f32 %v2507, %v2526
      %v2551 = vmul.f32 %v2508, %v2526
      %v2552 = vmul.f32 %v2509, %v2526
      %v2553 = vmul.f32 %v2510, %v2526
      %v2554 = vmul.f32 %v2511, %v2526
      %v2555 = vmul.f32 %v2512, %v2526
      %v2556 = vmul.f32 %v2513, %v2526
      %v2557 = vmul.f32 %v2514, %v2526
      %v2558 = vmul.f32 %v2515, %v2526
      %v2559 = vmax.f32 %v2527, 0.0
      %v2560 = vmax.f32 %v2528, 0.0
      %v2561 = vmax.f32 %v2529, 0.0
      %v2562 = vmax.f32 %v2530, 0.0
      %v2563 = vmax.f32 %v2531, 0.0
      %v2564 = vmax.f32 %v2532, 0.0
      %v2565 = vmax.f32 %v2533, 0.0
      %v2566 = vmax.f32 %v2534, 0.0
      %v2567 = vmax.f32 %v2535, 0.0
      %v2568 = vmax.f32 %v2536, 0.0
      %v2569 = vmax.f32 %v2537, 0.0
      %v2570 = vmax.f32 %v2538, 0.0
      %v2571 = vmax.f32 %v2539, 0.0
      %v2572 = vmax.f32 %v2540, 0.0
      %v2573 = vmax.f32 %v2541, 0.0
      %v2574 = vmax.f32 %v2542, 0.0
      %v2575 = vmax.f32 %v2543, 0.0
      %v2576 = vmax.f32 %v2544, 0.0
      %v2577 = vmax.f32 %v2545, 0.0
      %v2578 = vmax.f32 %v2546, 0.0
      %v2579 = vmax.f32 %v2547, 0.0
      %v2580 = vmax.f32 %v2548, 0.0
      %v2581 = vmax.f32 %v2549, 0.0
      %v2582 = vmax.f32 %v2550, 0.0
      %v2583 = vmax.f32 %v2551, 0.0
      %v2584 = vmax.f32 %v2552, 0.0
      %v2585 = vmax.f32 %v2553, 0.0
      %v2586 = vmax.f32 %v2554, 0.0
      %v2587 = vmax.f32 %v2555, 0.0
      %v2588 = vmax.f32 %v2556, 0.0
      %v2589 = vmax.f32 %v2557, 0.0
      %v2590 = vmax.f32 %v2558, 0.0
      %s2591 = scalar_lea.vmem [#allocation2], 24
      %2592 = vst.msk [vmem:[%s2591 + $0x1] sm:$0xff] %vm376, %v2559
      %2593 = vst.msk [vmem:[%s2591 + $0x9] sm:$0xff] %vm376, %v2560
      %2594 = vst.msk [vmem:[%s2591 + $0x19] sm:$0xff] %vm376, %v2561
      %2595 = vst.msk [vmem:[%s2591 + $0x21] sm:$0xff] %vm376, %v2562
      %2596 = vst.msk [vmem:[%s2591 + $0x31] sm:$0xff] %vm376, %v2563
      %2597 = vst.msk [vmem:[%s2591 + $0x39] sm:$0xff] %vm376, %v2564
      %2598 = vst.msk [vmem:[%s2591 + $0x49] sm:$0xff] %vm376, %v2565
      %2599 = vst.msk [vmem:[%s2591 + $0x51] sm:$0xff] %vm376, %v2566
      %2600 = vst.msk [vmem:[%s2591 + $0x61] sm:$0xff] %vm376, %v2567
      %2601 = vst.msk [vmem:[%s2591 + $0x69] sm:$0xff] %vm376, %v2568
      %2602 = vst.msk [vmem:[%s2591 + $0x79] sm:$0xff] %vm376, %v2569
      %2603 = vst.msk [vmem:[%s2591 + $0x81] sm:$0xff] %vm376, %v2570
      %2604 = vst.msk [vmem:[%s2591 + $0x91] sm:$0xff] %vm376, %v2571
      %2605 = vst.msk [vmem:[%s2591 + $0x99] sm:$0xff] %vm376, %v2572
      %2606 = vst.msk [vmem:[%s2591 + $0xa9] sm:$0xff] %vm376, %v2573
      %2607 = vst.msk [vmem:[%s2591 + $0xb1] sm:$0xff] %vm376, %v2574
      %2608 = vst.msk [vmem:[%s2591 + $0xc1] sm:$0xff] %vm376, %v2575
      %2609 = vst.msk [vmem:[%s2591 + $0xc9] sm:$0xff] %vm376, %v2576
      %2610 = vst.msk [vmem:[%s2591 + $0xd9] sm:$0xff] %vm376, %v2577
      %2611 = vst.msk [vmem:[%s2591 + $0xe1] sm:$0xff] %vm376, %v2578
      %2612 = vst.msk [vmem:[%s2591 + $0xf1] sm:$0xff] %vm376, %v2579
      %2613 = vst.msk [vmem:[%s2591 + $0xf9] sm:$0xff] %vm376, %v2580
      %2614 = vst.msk [vmem:[%s2591 + $0x109] sm:$0xff] %vm376, %v2581
      %2615 = vst.msk [vmem:[%s2591 + $0x111] sm:$0xff] %vm376, %v2582
      %2616 = vst.msk [vmem:[%s2591 + $0x121] sm:$0xff] %vm376, %v2583
      %2617 = vst.msk [vmem:[%s2591 + $0x129] sm:$0xff] %vm376, %v2584
      %2618 = vst.msk [vmem:[%s2591 + $0x139] sm:$0xff] %vm376, %v2585
      %2619 = vst.msk [vmem:[%s2591 + $0x141] sm:$0xff] %vm376, %v2586
      %2620 = vst.msk [vmem:[%s2591 + $0x151] sm:$0xff] %vm376, %v2587
      %2621 = vst.msk [vmem:[%s2591 + $0x159] sm:$0xff] %vm376, %v2588
      %2622 = vst.msk [vmem:[%s2591 + $0x169] sm:$0xff] %vm376, %v2589
      %2623 = vst.msk [vmem:[%s2591 + $0x171] sm:$0xff] %vm376, %v2590
      %vm2624 = vcmask 25601
      %2625 = vst.msk [vmem:[%s2591 - $0x1] sm:$0x2] %vm2624, %v2559
      %2626 = vst.msk [vmem:[%s2591 + $0x17] sm:$0x2] %vm2624, %v2561
      %2627 = vst.msk [vmem:[%s2591 + $0x2f] sm:$0x2] %vm2624, %v2563
      %2628 = vst.msk [vmem:[%s2591 + $0x47] sm:$0x2] %vm2624, %v2565
      %2629 = vst.msk [vmem:[%s2591 + $0x5f] sm:$0x2] %vm2624, %v2567
      %2630 = vst.msk [vmem:[%s2591 + $0x77] sm:$0x2] %vm2624, %v2569
      %2631 = vst.msk [vmem:[%s2591 + $0x8f] sm:$0x2] %vm2624, %v2571
      %2632 = vst.msk [vmem:[%s2591 + $0xa7] sm:$0x2] %vm2624, %v2573
      %2633 = vst.msk [vmem:[%s2591 + $0xbf] sm:$0x2] %vm2624, %v2575
      %2634 = vst.msk [vmem:[%s2591 + $0xd7] sm:$0x2] %vm2624, %v2577
      %2635 = vst.msk [vmem:[%s2591 + $0xef] sm:$0x2] %vm2624, %v2579
      %2636 = vst.msk [vmem:[%s2591 + $0x107] sm:$0x2] %vm2624, %v2581
      %2637 = vst.msk [vmem:[%s2591 + $0x11f] sm:$0x2] %vm2624, %v2583
      %2638 = vst.msk [vmem:[%s2591 + $0x137] sm:$0x2] %vm2624, %v2585
      %2639 = vst.msk [vmem:[%s2591 + $0x14f] sm:$0x2] %vm2624, %v2587
      %2640 = vst.msk [vmem:[%s2591 + $0x167] sm:$0x2] %vm2624, %v2589
      %vm2641 = vcmask 30726
      %2642 = vst.msk [vmem:[%s2591 + $0xb] sm:$0x40] %vm2641, %v2560
      %2643 = vst.msk [vmem:[%s2591 + $0x23] sm:$0x40] %vm2641, %v2562
      %2644 = vst.msk [vmem:[%s2591 + $0x3b] sm:$0x40] %vm2641, %v2564
      %2645 = vst.msk [vmem:[%s2591 + $0x53] sm:$0x40] %vm2641, %v2566
      %2646 = vst.msk [vmem:[%s2591 + $0x6b] sm:$0x40] %vm2641, %v2568
      %2647 = vst.msk [vmem:[%s2591 + $0x83] sm:$0x40] %vm2641, %v2570
      %2648 = vst.msk [vmem:[%s2591 + $0x9b] sm:$0x40] %vm2641, %v2572
      %2649 = vst.msk [vmem:[%s2591 + $0xb3] sm:$0x40] %vm2641, %v2574
      %2650 = vst.msk [vmem:[%s2591 + $0xcb] sm:$0x40] %vm2641, %v2576
      %2651 = vst.msk [vmem:[%s2591 + $0xe3] sm:$0x40] %vm2641, %v2578
      %2652 = vst.msk [vmem:[%s2591 + $0xfb] sm:$0x40] %vm2641, %v2580
      %2653 = vst.msk [vmem:[%s2591 + $0x113] sm:$0x40] %vm2641, %v2582
      %2654 = vst.msk [vmem:[%s2591 + $0x12b] sm:$0x40] %vm2641, %v2584
      %2655 = vst.msk [vmem:[%s2591 + $0x143] sm:$0x40] %vm2641, %v2586
      %2656 = vst.msk [vmem:[%s2591 + $0x15b] sm:$0x40] %vm2641, %v2588
      %2657 = vst.msk [vmem:[%s2591 + $0x173] sm:$0x40] %vm2641, %v2590
      %s2658 = scalar_lea.vmem [#allocation2], 48
      %v2659 = vld [vmem:[%s2658] sm:$0xff]
      %v2660 = vld [vmem:[%s2658 + $0x8] sm:$0xff]
      %v2661 = vld [vmem:[%s2658 + $0x10] sm:$0x3]
      %2662 = vst.msk [vmem:[#allocation2] sm:$0xff] %vm376, %v2659
      %2663 = vst.msk [vmem:[#allocation2 + $0x8] sm:$0xff] %vm376, %v2660
      %vm2664 = vcmask 25600
      %2665 = vst.msk [vmem:[#allocation2 + $0x10] sm:$0x3] %vm2664, %v2661
      %s2666 = scalar_lea.vmem [#allocation2], 360
      %v2667 = vld [vmem:[%s2666] sm:$0xff]
      %v2668 = vld [vmem:[%s2666 + $0x8] sm:$0xff]
      %v2669 = vld [vmem:[%s2666 + $0x10] sm:$0x3]
      %s2670 = scalar_lea.vmem [#allocation2], 408
      %2671 = vst.msk [vmem:[%s2670] sm:$0xff] %vm376, %v2667
      %2672 = vst.msk [vmem:[%s2670 + $0x8] sm:$0xff] %vm376, %v2668
      %2673 = vst.msk [vmem:[%s2670 + $0x10] sm:$0x3] %vm2664, %v2669
      %v2674 = vld [vmem:[#allocation2] sm:$0xff]
      %v2675 = vld [vmem:[#allocation2 + $0x8] sm:$0xff]
      %v2676 = vld [vmem:[#allocation2 + $0x10] sm:$0x3]
      %v2677 = vld [vmem:[#allocation2 + $0x18] sm:$0xff]
      %v2678 = vld [vmem:[#allocation2 + $0x20] sm:$0xff]
      %v2679 = vld [vmem:[#allocation2 + $0x28] sm:$0x3]
      %v2680 = vld [vmem:[#allocation2 + $0x30] sm:$0xff]
      %v2681 = vld [vmem:[#allocation2 + $0x38] sm:$0xff]
      %v2682 = vld [vmem:[#allocation2 + $0x40] sm:$0x3]
      %v2683 = vld [vmem:[#allocation2 + $0x48] sm:$0xff]
      %v2684 = vld [vmem:[#allocation2 + $0x50] sm:$0xff]
      %v2685 = vld [vmem:[#allocation2 + $0x58] sm:$0x3]
      %v2686 = vld [vmem:[#allocation2 + $0x60] sm:$0xff]
      %v2687 = vld [vmem:[#allocation2 + $0x68] sm:$0xff]
      %v2688 = vld [vmem:[#allocation2 + $0x70] sm:$0x3]
      %v2689 = vld [vmem:[#allocation2 + $0x78] sm:$0xff]
      %v2690 = vld [vmem:[#allocation2 + $0x80] sm:$0xff]
      %v2691 = vld [vmem:[#allocation2 + $0x88] sm:$0x3]
      %v2692 = vld [vmem:[#allocation2 + $0x90] sm:$0xff]
      %v2693 = vld [vmem:[#allocation2 + $0x98] sm:$0xff]
      %v2694 = vld [vmem:[#allocation2 + $0xa0] sm:$0x3]
      %v2695 = vld [vmem:[#allocation2 + $0xa8] sm:$0xff]
      %v2696 = vld [vmem:[#allocation2 + $0xb0] sm:$0xff]
      %v2697 = vld [vmem:[#allocation2 + $0xb8] sm:$0x3]
      %v2698 = vld [vmem:[#allocation2 + $0xc0] sm:$0xff]
      %v2699 = vld [vmem:[#allocation2 + $0xc8] sm:$0xff]
      %v2700 = vld [vmem:[#allocation2 + $0xd0] sm:$0x3]
      %v2701 = vld [vmem:[#allocation2 + $0xd8] sm:$0xff]
      %v2702 = vld [vmem:[#allocation2 + $0xe0] sm:$0xff]
      %v2703 = vld [vmem:[#allocation2 + $0xe8] sm:$0x3]
      %v2704 = vld [vmem:[#allocation2 + $0xf0] sm:$0xff]
      %v2705 = vld [vmem:[#allocation2 + $0xf8] sm:$0xff]
      %v2706 = vld [vmem:[#allocation2 + $0x100] sm:$0x3]
      %v2707 = vld [vmem:[#allocation2 + $0x108] sm:$0xff]
      %v2708 = vld [vmem:[#allocation2 + $0x110] sm:$0xff]
      %v2709 = vld [vmem:[#allocation2 + $0x118] sm:$0x3]
      %v2710 = vld [vmem:[#allocation2 + $0x120] sm:$0xff]
      %v2711 = vld [vmem:[#allocation2 + $0x128] sm:$0xff]
      %v2712 = vld [vmem:[#allocation2 + $0x130] sm:$0x3]
      %v2713 = vld [vmem:[#allocation2 + $0x138] sm:$0xff]
      %v2714 = vld [vmem:[#allocation2 + $0x140] sm:$0xff]
      %v2715 = vld [vmem:[#allocation2 + $0x148] sm:$0x3]
      %v2716 = vld [vmem:[#allocation2 + $0x150] sm:$0xff]
      %v2717 = vld [vmem:[#allocation2 + $0x158] sm:$0xff]
      %v2718 = vld [vmem:[#allocation2 + $0x160] sm:$0x3]
      %v2719 = vld [vmem:[#allocation2 + $0x168] sm:$0xff]
      %v2720 = vld [vmem:[#allocation2 + $0x170] sm:$0xff]
      %v2721 = vld [vmem:[#allocation2 + $0x178] sm:$0x3]
      %v2722 = vld [vmem:[#allocation2 + $0x180] sm:$0xff]
      %v2723 = vld [vmem:[#allocation2 + $0x188] sm:$0xff]
      %v2724 = vld [vmem:[#allocation2 + $0x190] sm:$0x3]
      %v2725 = vld [vmem:[#allocation2 + $0x198] sm:$0xff]
      %v2726 = vld [vmem:[#allocation2 + $0x1a0] sm:$0xff]
      %v2727 = vld [vmem:[#allocation2 + $0x1a8] sm:$0x3]
      %v2728 = vpack.c.bf16 %v2674, %v2674
      %v2729 = vpack.c.bf16 %v2675, %v2675
      %v2730 = vpack.c.bf16 %v2677, %v2677
      %v2731 = vpack.c.bf16 %v2678, %v2678
      %v2732 = vpack.c.bf16 %v2680, %v2680
      %v2733 = vpack.c.bf16 %v2681, %v2681
      %v2734 = vpack.c.bf16 %v2683, %v2683
      %v2735 = vpack.c.bf16 %v2684, %v2684
      %v2736 = vpack.c.bf16 %v2686, %v2686
      %v2737 = vpack.c.bf16 %v2687, %v2687
      %v2738 = vpack.c.bf16 %v2689, %v2689
      %v2739 = vpack.c.bf16 %v2690, %v2690
      %v2740 = vpack.c.bf16 %v2692, %v2692
      %v2741 = vpack.c.bf16 %v2693, %v2693
      %v2742 = vpack.c.bf16 %v2695, %v2695
      %v2743 = vpack.c.bf16 %v2696, %v2696
      %v2744 = vpack.c.bf16 %v2698, %v2698
      %v2745 = vpack.c.bf16 %v2699, %v2699
      %v2746 = vpack.c.bf16 %v2701, %v2701
      %v2747 = vpack.c.bf16 %v2702, %v2702
      %v2748 = vpack.c.bf16 %v2704, %v2704
      %v2749 = vpack.c.bf16 %v2705, %v2705
      %v2750 = vpack.c.bf16 %v2707, %v2707
      %v2751 = vpack.c.bf16 %v2708, %v2708
      %v2752 = vpack.c.bf16 %v2710, %v2710
      %v2753 = vpack.c.bf16 %v2711, %v2711
      %v2754 = vpack.c.bf16 %v2713, %v2713
      %v2755 = vpack.c.bf16 %v2714, %v2714
      %v2756 = vpack.c.bf16 %v2716, %v2716
      %v2757 = vpack.c.bf16 %v2717, %v2717
      %v2758 = vpack.c.bf16 %v2719, %v2719
      %v2759 = vpack.c.bf16 %v2720, %v2720
      %v2760 = vpack.c.bf16 %v2722, %v2722
      %v2761 = vpack.c.bf16 %v2723, %v2723
      %v2762 = vpack.c.bf16 %v2725, %v2725
      %v2763 = vpack.c.bf16 %v2726, %v2726
      %v2796 = vunpack.c.l.b16 %v2730
      %v2797 = vunpack.c.l.b16 %v2731
      %v2798 = vunpack.c.l.b16 %v2732
      %v2799 = vunpack.c.l.b16 %v2733
      %v2800 = vunpack.c.l.b16 %v2734
      %v2801 = vunpack.c.l.b16 %v2735
      %v2802 = vunpack.c.l.b16 %v2736
      %v2803 = vunpack.c.l.b16 %v2737
      %v2804 = vunpack.c.l.b16 %v2738
      %v2805 = vunpack.c.l.b16 %v2739
      %v2806 = vunpack.c.l.b16 %v2740
      %v2807 = vunpack.c.l.b16 %v2741
      %v2808 = vunpack.c.l.b16 %v2742
      %v2809 = vunpack.c.l.b16 %v2743
      %v2810 = vunpack.c.l.b16 %v2744
      %v2811 = vunpack.c.l.b16 %v2745
      %v2812 = vunpack.c.l.b16 %v2746
      %v2813 = vunpack.c.l.b16 %v2747
      %v2814 = vunpack.c.l.b16 %v2748
      %v2815 = vunpack.c.l.b16 %v2749
      %v2816 = vunpack.c.l.b16 %v2750
      %v2817 = vunpack.c.l.b16 %v2751
      %v2818 = vunpack.c.l.b16 %v2752
      %v2819 = vunpack.c.l.b16 %v2753
      %v2820 = vunpack.c.l.b16 %v2754
      %v2821 = vunpack.c.l.b16 %v2755
      %v2822 = vunpack.c.l.b16 %v2756
      %v2823 = vunpack.c.l.b16 %v2757
      %v2824 = vunpack.c.l.b16 %v2758
      %v2825 = vunpack.c.l.b16 %v2759
      %v2826 = vunpack.c.l.b16 %v2760
      %v2827 = vunpack.c.l.b16 %v2761
      %v2828 = vpack.c.b16 %v2797, %v2796
      %v2829 = vpack.c.b16 %v2799, %v2798
      %v2830 = vpack.c.b16 %v2801, %v2800
      %v2831 = vpack.c.b16 %v2803, %v2802
      %v2832 = vpack.c.b16 %v2805, %v2804
      %v2833 = vpack.c.b16 %v2807, %v2806
      %v2834 = vpack.c.b16 %v2809, %v2808
      %v2835 = vpack.c.b16 %v2811, %v2810
      %v2836 = vpack.c.b16 %v2813, %v2812
      %v2837 = vpack.c.b16 %v2815, %v2814
      %v2838 = vpack.c.b16 %v2817, %v2816
      %v2839 = vpack.c.b16 %v2819, %v2818
      %v2840 = vpack.c.b16 %v2821, %v2820
      %v2841 = vpack.c.b16 %v2823, %v2822
      %v2842 = vpack.c.b16 %v2825, %v2824
      %v2843 = vpack.c.b16 %v2827, %v2826
      %v2845 = vsel %vm376, %v2828, 0
      %v2848 = vsel %vm376, %v2829, 0
      %v2851 = vsel %vm376, %v2830, 0
      %v2854 = vsel %vm376, %v2831, 0
      %v2857 = vsel %vm376, %v2832, 0
      %v2860 = vsel %vm376, %v2833, 0
      %v2863 = vsel %vm376, %v2834, 0
      %v2866 = vsel %vm376, %v2835, 0
      %v2869 = vsel %vm376, %v2836, 0
      %v2872 = vsel %vm376, %v2837, 0
      %v2875 = vsel %vm376, %v2838, 0
      %v2878 = vsel %vm376, %v2839, 0
      %v2881 = vsel %vm376, %v2840, 0
      %v2884 = vsel %vm376, %v2841, 0
      %v2887 = vsel %vm376, %v2842, 0
      %v2890 = vsel %vm376, %v2843, 0
      %v2893 = vsel %vm425, %v249, 0
      %2895 = vmatpush.bf16.msra.mxu0 0
      %2896 = vmatpush.bf16.msra.mxu0 0
      %2897 = vmatpush.bf16.msra.mxu0 0
      %2898 = vmatpush.bf16.msra.mxu0 0
      %2899 = vmatpush.bf16.msra.mxu0 0
      %2900 = vmatpush.bf16.msra.mxu0 0
      %2901 = vmatpush.bf16.msra.mxu0 0
      %2902 = vmatpush.bf16.msra.mxu0 %v2893
      %2903 = vmatmul.bf16.gmra.mxu0 %v2845
      %v2904 = vpop.f32.mrf.mxu0
      %v2905 = vadd.f32 0.0, %v2904
      %v2906 = vpop.f32.mrf.mxu0
      %v2907 = vadd.f32 0.0, %v2906
      %2908 = vmatmul.bf16.gmra.mxu0 %v2848
      %v2909 = vpop.f32.mrf.mxu0
      %v2910 = vadd.f32 0.0, %v2909
      %v2911 = vpop.f32.mrf.mxu0
      %v2912 = vadd.f32 0.0, %v2911
      %2913 = vmatmul.bf16.gmra.mxu0 %v2851
      %v2914 = vpop.f32.mrf.mxu0
      %v2915 = vadd.f32 0.0, %v2914
      %v2916 = vpop.f32.mrf.mxu0
      %v2917 = vadd.f32 0.0, %v2916
      %2918 = vmatmul.bf16.gmra.mxu0 %v2854
      %v2919 = vpop.f32.mrf.mxu0
      %v2920 = vadd.f32 0.0, %v2919
      %v2921 = vpop.f32.mrf.mxu0
      %v2922 = vadd.f32 0.0, %v2921
      %2923 = vmatmul.bf16.gmra.mxu0 %v2857
      %v2924 = vpop.f32.mrf.mxu0
      %v2925 = vadd.f32 0.0, %v2924
      %v2926 = vpop.f32.mrf.mxu0
      %v2927 = vadd.f32 0.0, %v2926
      %2928 = vmatmul.bf16.gmra.mxu0 %v2860
      %v2929 = vpop.f32.mrf.mxu0
      %v2930 = vadd.f32 0.0, %v2929
      %v2931 = vpop.f32.mrf.mxu0
      %v2932 = vadd.f32 0.0, %v2931
      %2933 = vmatmul.bf16.gmra.mxu0 %v2863
      %v2934 = vpop.f32.mrf.mxu0
      %v2935 = vadd.f32 0.0, %v2934
      %v2936 = vpop.f32.mrf.mxu0
      %v2937 = vadd.f32 0.0, %v2936
      %2938 = vmatmul.bf16.gmra.mxu0 %v2866
      %v2939 = vpop.f32.mrf.mxu0
      %v2940 = vadd.f32 0.0, %v2939
      %v2941 = vpop.f32.mrf.mxu0
      %v2942 = vadd.f32 0.0, %v2941
      %2943 = vmatmul.bf16.gmra.mxu0 %v2869
      %v2944 = vpop.f32.mrf.mxu0
      %v2945 = vadd.f32 0.0, %v2944
      %v2946 = vpop.f32.mrf.mxu0
      %v2947 = vadd.f32 0.0, %v2946
      %2948 = vmatmul.bf16.gmra.mxu0 %v2872
      %v2949 = vpop.f32.mrf.mxu0
      %v2950 = vadd.f32 0.0, %v2949
      %v2951 = vpop.f32.mrf.mxu0
      %v2952 = vadd.f32 0.0, %v2951
      %2953 = vmatmul.bf16.gmra.mxu0 %v2875
      %v2954 = vpop.f32.mrf.mxu0
      %v2955 = vadd.f32 0.0, %v2954
      %v2956 = vpop.f32.mrf.mxu0
      %v2957 = vadd.f32 0.0, %v2956
      %2958 = vmatmul.bf16.gmra.mxu0 %v2878
      %v2959 = vpop.f32.mrf.mxu0
      %v2960 = vadd.f32 0.0, %v2959
      %v2961 = vpop.f32.mrf.mxu0
      %v2962 = vadd.f32 0.0, %v2961
      %2963 = vmatmul.bf16.gmra.mxu0 %v2881
      %v2964 = vpop.f32.mrf.mxu0
      %v2965 = vadd.f32 0.0, %v2964
      %v2966 = vpop.f32.mrf.mxu0
      %v2967 = vadd.f32 0.0, %v2966
      %2968 = vmatmul.bf16.gmra.mxu0 %v2884
      %v2969 = vpop.f32.mrf.mxu0
      %v2970 = vadd.f32 0.0, %v2969
      %v2971 = vpop.f32.mrf.mxu0
      %v2972 = vadd.f32 0.0, %v2971
      %2973 = vmatmul.bf16.gmra.mxu0 %v2887
      %v2974 = vpop.f32.mrf.mxu0
      %v2975 = vadd.f32 0.0, %v2974
      %v2976 = vpop.f32.mrf.mxu0
      %v2977 = vadd.f32 0.0, %v2976
      %2978 = vmatmul.bf16.gmra.mxu0 %v2890
      %v2979 = vpop.f32.mrf.mxu0
      %v2980 = vadd.f32 0.0, %v2979
      %v2981 = vpop.f32.mrf.mxu0
      %v2982 = vadd.f32 0.0, %v2981
      %2983 = vdwg.mxu0
      %v2986 = vunpack.c.l.b16 %v2728
      %v2987 = vunpack.c.l.b16 %v2729
      %v2988 = vpack.c.b16 %v2987, %v2986
      %v2990 = vsel %vm376, %v2988, 0
      %v2993 = vsel %vm425, %v243, 0
      %2995 = vmatpush.bf16.msra.mxu0 0
      %2996 = vmatpush.bf16.msra.mxu0 0
      %2997 = vmatpush.bf16.msra.mxu0 0
      %2998 = vmatpush.bf16.msra.mxu0 0
      %2999 = vmatpush.bf16.msra.mxu0 0
      %3000 = vmatpush.bf16.msra.mxu0 0
      %3001 = vmatpush.bf16.msra.mxu0 0
      %3002 = vmatpush.bf16.msra.mxu0 %v2993
      %3003 = vmatmul.bf16.gmra.mxu0 %v2990
      %v3004 = vpop.f32.mrf.mxu0
      %v3005 = vadd.f32 %v2905, %v3004
      %v3006 = vpop.f32.mrf.mxu0
      %v3007 = vadd.f32 %v2907, %v3006
      %3008 = vmatmul.bf16.gmra.mxu0 %v2845
      %v3009 = vpop.f32.mrf.mxu0
      %v3010 = vadd.f32 %v2910, %v3009
      %v3011 = vpop.f32.mrf.mxu0
      %v3012 = vadd.f32 %v2912, %v3011
      %3013 = vmatmul.bf16.gmra.mxu0 %v2848
      %v3014 = vpop.f32.mrf.mxu0
      %v3015 = vadd.f32 %v2915, %v3014
      %v3016 = vpop.f32.mrf.mxu0
      %v3017 = vadd.f32 %v2917, %v3016
      %3018 = vmatmul.bf16.gmra.mxu0 %v2851
      %v3019 = vpop.f32.mrf.mxu0
      %v3020 = vadd.f32 %v2920, %v3019
      %v3021 = vpop.f32.mrf.mxu0
      %v3022 = vadd.f32 %v2922, %v3021
      %3023 = vmatmul.bf16.gmra.mxu0 %v2854
      %v3024 = vpop.f32.mrf.mxu0
      %v3025 = vadd.f32 %v2925, %v3024
      %v3026 = vpop.f32.mrf.mxu0
      %v3027 = vadd.f32 %v2927, %v3026
      %3028 = vmatmul.bf16.gmra.mxu0 %v2857
      %v3029 = vpop.f32.mrf.mxu0
      %v3030 = vadd.f32 %v2930, %v3029
      %v3031 = vpop.f32.mrf.mxu0
      %v3032 = vadd.f32 %v2932, %v3031
      %3033 = vmatmul.bf16.gmra.mxu0 %v2860
      %v3034 = vpop.f32.mrf.mxu0
      %v3035 = vadd.f32 %v2935, %v3034
      %v3036 = vpop.f32.mrf.mxu0
      %v3037 = vadd.f32 %v2937, %v3036
      %3038 = vmatmul.bf16.gmra.mxu0 %v2863
      %v3039 = vpop.f32.mrf.mxu0
      %v3040 = vadd.f32 %v2940, %v3039
      %v3041 = vpop.f32.mrf.mxu0
      %v3042 = vadd.f32 %v2942, %v3041
      %3043 = vmatmul.bf16.gmra.mxu0 %v2866
      %v3044 = vpop.f32.mrf.mxu0
      %v3045 = vadd.f32 %v2945, %v3044
      %v3046 = vpop.f32.mrf.mxu0
      %v3047 = vadd.f32 %v2947, %v3046
      %3048 = vmatmul.bf16.gmra.mxu0 %v2869
      %v3049 = vpop.f32.mrf.mxu0
      %v3050 = vadd.f32 %v2950, %v3049
      %v3051 = vpop.f32.mrf.mxu0
      %v3052 = vadd.f32 %v2952, %v3051
      %3053 = vmatmul.bf16.gmra.mxu0 %v2872
      %v3054 = vpop.f32.mrf.mxu0
      %v3055 = vadd.f32 %v2955, %v3054
      %v3056 = vpop.f32.mrf.mxu0
      %v3057 = vadd.f32 %v2957, %v3056
      %3058 = vmatmul.bf16.gmra.mxu0 %v2875
      %v3059 = vpop.f32.mrf.mxu0
      %v3060 = vadd.f32 %v2960, %v3059
      %v3061 = vpop.f32.mrf.mxu0
      %v3062 = vadd.f32 %v2962, %v3061
      %3063 = vmatmul.bf16.gmra.mxu0 %v2878
      %v3064 = vpop.f32.mrf.mxu0
      %v3065 = vadd.f32 %v2965, %v3064
      %v3066 = vpop.f32.mrf.mxu0
      %v3067 = vadd.f32 %v2967, %v3066
      %3068 = vmatmul.bf16.gmra.mxu0 %v2881
      %v3069 = vpop.f32.mrf.mxu0
      %v3070 = vadd.f32 %v2970, %v3069
      %v3071 = vpop.f32.mrf.mxu0
      %v3072 = vadd.f32 %v2972, %v3071
      %3073 = vmatmul.bf16.gmra.mxu0 %v2884
      %v3074 = vpop.f32.mrf.mxu0
      %v3075 = vadd.f32 %v2975, %v3074
      %v3076 = vpop.f32.mrf.mxu0
      %v3077 = vadd.f32 %v2977, %v3076
      %3078 = vmatmul.bf16.gmra.mxu0 %v2887
      %v3079 = vpop.f32.mrf.mxu0
      %v3080 = vadd.f32 %v2980, %v3079
      %v3081 = vpop.f32.mrf.mxu0
      %v3082 = vadd.f32 %v2982, %v3081
      %3083 = vdwg.mxu0
      %v3086 = vunpack.c.l.b16 %v2762
      %v3087 = vunpack.c.l.b16 %v2763
      %v3088 = vpack.c.b16 %v3087, %v3086
      %v3090 = vsel %vm376, %v3088, 0
      %v3093 = vsel %vm425, %v255, 0
      %3095 = vmatpush.bf16.msra.mxu0 0
      %3096 = vmatpush.bf16.msra.mxu0 0
      %3097 = vmatpush.bf16.msra.mxu0 0
      %3098 = vmatpush.bf16.msra.mxu0 0
      %3099 = vmatpush.bf16.msra.mxu0 0
      %3100 = vmatpush.bf16.msra.mxu0 0
      %3101 = vmatpush.bf16.msra.mxu0 0
      %3102 = vmatpush.bf16.msra.mxu0 %v3093
      %3103 = vmatmul.bf16.gmra.mxu0 %v2848
      %v3104 = vpop.f32.mrf.mxu0
      %v3105 = vadd.f32 0.0, %v3104
      %v3106 = vpop.f32.mrf.mxu0
      %v3107 = vadd.f32 0.0, %v3106
      %3108 = vmatmul.bf16.gmra.mxu0 %v2851
      %v3109 = vpop.f32.mrf.mxu0
      %v3110 = vadd.f32 0.0, %v3109
      %v3111 = vpop.f32.mrf.mxu0
      %v3112 = vadd.f32 0.0, %v3111
      %3113 = vmatmul.bf16.gmra.mxu0 %v2854
      %v3114 = vpop.f32.mrf.mxu0
      %v3115 = vadd.f32 0.0, %v3114
      %v3116 = vpop.f32.mrf.mxu0
      %v3117 = vadd.f32 0.0, %v3116
      %3118 = vmatmul.bf16.gmra.mxu0 %v2857
      %v3119 = vpop.f32.mrf.mxu0
      %v3120 = vadd.f32 0.0, %v3119
      %v3121 = vpop.f32.mrf.mxu0
      %v3122 = vadd.f32 0.0, %v3121
      %3123 = vmatmul.bf16.gmra.mxu0 %v2860
      %v3124 = vpop.f32.mrf.mxu0
      %v3125 = vadd.f32 0.0, %v3124
      %v3126 = vpop.f32.mrf.mxu0
      %v3127 = vadd.f32 0.0, %v3126
      %3128 = vmatmul.bf16.gmra.mxu0 %v2863
      %v3129 = vpop.f32.mrf.mxu0
      %v3130 = vadd.f32 0.0, %v3129
      %v3131 = vpop.f32.mrf.mxu0
      %v3132 = vadd.f32 0.0, %v3131
      %3133 = vmatmul.bf16.gmra.mxu0 %v2866
      %v3134 = vpop.f32.mrf.mxu0
      %v3135 = vadd.f32 0.0, %v3134
      %v3136 = vpop.f32.mrf.mxu0
      %v3137 = vadd.f32 0.0, %v3136
      %3138 = vmatmul.bf16.gmra.mxu0 %v2869
      %v3139 = vpop.f32.mrf.mxu0
      %v3140 = vadd.f32 0.0, %v3139
      %v3141 = vpop.f32.mrf.mxu0
      %v3142 = vadd.f32 0.0, %v3141
      %3143 = vmatmul.bf16.gmra.mxu0 %v2872
      %v3144 = vpop.f32.mrf.mxu0
      %v3145 = vadd.f32 0.0, %v3144
      %v3146 = vpop.f32.mrf.mxu0
      %v3147 = vadd.f32 0.0, %v3146
      %3148 = vmatmul.bf16.gmra.mxu0 %v2875
      %v3149 = vpop.f32.mrf.mxu0
      %v3150 = vadd.f32 0.0, %v3149
      %v3151 = vpop.f32.mrf.mxu0
      %v3152 = vadd.f32 0.0, %v3151
      %3153 = vmatmul.bf16.gmra.mxu0 %v2878
      %v3154 = vpop.f32.mrf.mxu0
      %v3155 = vadd.f32 0.0, %v3154
      %v3156 = vpop.f32.mrf.mxu0
      %v3157 = vadd.f32 0.0, %v3156
      %3158 = vmatmul.bf16.gmra.mxu0 %v2881
      %v3159 = vpop.f32.mrf.mxu0
      %v3160 = vadd.f32 0.0, %v3159
      %v3161 = vpop.f32.mrf.mxu0
      %v3162 = vadd.f32 0.0, %v3161
      %3163 = vmatmul.bf16.gmra.mxu0 %v2884
      %v3164 = vpop.f32.mrf.mxu0
      %v3165 = vadd.f32 0.0, %v3164
      %v3166 = vpop.f32.mrf.mxu0
      %v3167 = vadd.f32 0.0, %v3166
      %3168 = vmatmul.bf16.gmra.mxu0 %v2887
      %v3169 = vpop.f32.mrf.mxu0
      %v3170 = vadd.f32 0.0, %v3169
      %v3171 = vpop.f32.mrf.mxu0
      %v3172 = vadd.f32 0.0, %v3171
      %3173 = vmatmul.bf16.gmra.mxu0 %v2890
      %v3174 = vpop.f32.mrf.mxu0
      %v3175 = vadd.f32 0.0, %v3174
      %v3176 = vpop.f32.mrf.mxu0
      %v3177 = vadd.f32 0.0, %v3176
      %3178 = vmatmul.bf16.gmra.mxu0 %v3090
      %v3179 = vpop.f32.mrf.mxu0
      %v3180 = vadd.f32 0.0, %v3179
      %v3181 = vpop.f32.mrf.mxu0
      %v3182 = vadd.f32 0.0, %v3181
      %3183 = vdwg.mxu0
      %v3184 = vadd.f32 %v3005, %v3105
      %v3185 = vadd.f32 %v3007, %v3107
      %v3186 = vadd.f32 %v3010, %v3110
      %v3187 = vadd.f32 %v3012, %v3112
      %v3188 = vadd.f32 %v3015, %v3115
      %v3189 = vadd.f32 %v3017, %v3117
      %v3190 = vadd.f32 %v3020, %v3120
      %v3191 = vadd.f32 %v3022, %v3122
      %v3192 = vadd.f32 %v3025, %v3125
      %v3193 = vadd.f32 %v3027, %v3127
      %v3194 = vadd.f32 %v3030, %v3130
      %v3195 = vadd.f32 %v3032, %v3132
      %v3196 = vadd.f32 %v3035, %v3135
      %v3197 = vadd.f32 %v3037, %v3137
      %v3198 = vadd.f32 %v3040, %v3140
      %v3199 = vadd.f32 %v3042, %v3142
      %v3200 = vadd.f32 %v3045, %v3145
      %v3201 = vadd.f32 %v3047, %v3147
      %v3202 = vadd.f32 %v3050, %v3150
      %v3203 = vadd.f32 %v3052, %v3152
      %v3204 = vadd.f32 %v3055, %v3155
      %v3205 = vadd.f32 %v3057, %v3157
      %v3206 = vadd.f32 %v3060, %v3160
      %v3207 = vadd.f32 %v3062, %v3162
      %v3208 = vadd.f32 %v3065, %v3165
      %v3209 = vadd.f32 %v3067, %v3167
      %v3210 = vadd.f32 %v3070, %v3170
      %v3211 = vadd.f32 %v3072, %v3172
      %v3212 = vadd.f32 %v3075, %v3175
      %v3213 = vadd.f32 %v3077, %v3177
      %v3214 = vadd.f32 %v3080, %v3180
      %v3215 = vadd.f32 %v3082, %v3182
      %v3216 = vpack.c.bf16 %v2676, %v2676
      %v3217 = vpack.c.bf16 %v2679, %v2679
      %v3218 = vpack.c.bf16 %v2682, %v2682
      %v3219 = vpack.c.bf16 %v2685, %v2685
      %v3220 = vpack.c.bf16 %v2688, %v2688
      %v3221 = vpack.c.bf16 %v2691, %v2691
      %v3222 = vpack.c.bf16 %v2694, %v2694
      %v3223 = vpack.c.bf16 %v2697, %v2697
      %v3224 = vpack.c.bf16 %v2700, %v2700
      %v3225 = vpack.c.bf16 %v2703, %v2703
      %v3226 = vpack.c.bf16 %v2706, %v2706
      %v3227 = vpack.c.bf16 %v2709, %v2709
      %v3228 = vpack.c.bf16 %v2712, %v2712
      %v3229 = vpack.c.bf16 %v2715, %v2715
      %v3230 = vpack.c.bf16 %v2718, %v2718
      %v3231 = vpack.c.bf16 %v2721, %v2721
      %v3232 = vpack.c.bf16 %v2724, %v2724
      %v3233 = vpack.c.bf16 %v2727, %v2727
      %v3235 = vshrl.u32 %v2728, 16
      %v3237 = vrot.slane %v3235, 4
      %v3238 = vshll.u32 %v2728, 16
      %v3240 = vrot.slane %v3238, 5
      %v3241 = vor.u32 %v3237, %v3240
      %v3242 = vrot.slane %v3241, 4
      %v3244 = vshll.u32 %v2729, 16
      %v3246 = vrot.slane %v3244, 5
      %v3247 = vsel %vm770, %v3242, %v3246
      %v3248 = vshrl.u32 %v2729, 16
      %v3250 = vrot.slane %v3248, 4
      %v3251 = vor.u32 %v3250, %v3246
      %v3252 = vrot.slane %v3251, 4
      %v3254 = vshll.u32 %v3216, 16
      %v3256 = vrot.slane %v3254, 5
      %v3257 = vsel %vm770, %v3252, %v3256
      %v3259 = vshrl.u32 %v2730, 16
      %v3261 = vrot.slane %v3259, 4
      %v3262 = vshll.u32 %v2730, 16
      %v3264 = vrot.slane %v3262, 5
      %v3265 = vor.u32 %v3261, %v3264
      %v3266 = vrot.slane %v3265, 4
      %v3268 = vshll.u32 %v2731, 16
      %v3270 = vrot.slane %v3268, 5
      %v3271 = vsel %vm770, %v3266, %v3270
      %v3272 = vshrl.u32 %v2731, 16
      %v3274 = vrot.slane %v3272, 4
      %v3275 = vor.u32 %v3274, %v3270
      %v3276 = vrot.slane %v3275, 4
      %v3278 = vshll.u32 %v3217, 16
      %v3280 = vrot.slane %v3278, 5
      %v3281 = vsel %vm770, %v3276, %v3280
      %v3283 = vshrl.u32 %v2732, 16
      %v3285 = vrot.slane %v3283, 4
      %v3286 = vshll.u32 %v2732, 16
      %v3288 = vrot.slane %v3286, 5
      %v3289 = vor.u32 %v3285, %v3288
      %v3290 = vrot.slane %v3289, 4
      %v3292 = vshll.u32 %v2733, 16
      %v3294 = vrot.slane %v3292, 5
      %v3295 = vsel %vm770, %v3290, %v3294
      %v3296 = vshrl.u32 %v2733, 16
      %v3298 = vrot.slane %v3296, 4
      %v3299 = vor.u32 %v3298, %v3294
      %v3300 = vrot.slane %v3299, 4
      %v3302 = vshll.u32 %v3218, 16
      %v3304 = vrot.slane %v3302, 5
      %v3305 = vsel %vm770, %v3300, %v3304
      %v3307 = vshrl.u32 %v2734, 16
      %v3309 = vrot.slane %v3307, 4
      %v3310 = vshll.u32 %v2734, 16
      %v3312 = vrot.slane %v3310, 5
      %v3313 = vor.u32 %v3309, %v3312
      %v3314 = vrot.slane %v3313, 4
      %v3316 = vshll.u32 %v2735, 16
      %v3318 = vrot.slane %v3316, 5
      %v3319 = vsel %vm770, %v3314, %v3318
      %v3320 = vshrl.u32 %v2735, 16
      %v3322 = vrot.slane %v3320, 4
      %v3323 = vor.u32 %v3322, %v3318
      %v3324 = vrot.slane %v3323, 4
      %v3326 = vshll.u32 %v3219, 16
      %v3328 = vrot.slane %v3326, 5
      %v3329 = vsel %vm770, %v3324, %v3328
      %v3331 = vshrl.u32 %v2736, 16
      %v3333 = vrot.slane %v3331, 4
      %v3334 = vshll.u32 %v2736, 16
      %v3336 = vrot.slane %v3334, 5
      %v3337 = vor.u32 %v3333, %v3336
      %v3338 = vrot.slane %v3337, 4
      %v3340 = vshll.u32 %v2737, 16
      %v3342 = vrot.slane %v3340, 5
      %v3343 = vsel %vm770, %v3338, %v3342
      %v3344 = vshrl.u32 %v2737, 16
      %v3346 = vrot.slane %v3344, 4
      %v3347 = vor.u32 %v3346, %v3342
      %v3348 = vrot.slane %v3347, 4
      %v3350 = vshll.u32 %v3220, 16
      %v3352 = vrot.slane %v3350, 5
      %v3353 = vsel %vm770, %v3348, %v3352
      %v3355 = vshrl.u32 %v2738, 16
      %v3357 = vrot.slane %v3355, 4
      %v3358 = vshll.u32 %v2738, 16
      %v3360 = vrot.slane %v3358, 5
      %v3361 = vor.u32 %v3357, %v3360
      %v3362 = vrot.slane %v3361, 4
      %v3364 = vshll.u32 %v2739, 16
      %v3366 = vrot.slane %v3364, 5
      %v3367 = vsel %vm770, %v3362, %v3366
      %v3368 = vshrl.u32 %v2739, 16
      %v3370 = vrot.slane %v3368, 4
      %v3371 = vor.u32 %v3370, %v3366
      %v3372 = vrot.slane %v3371, 4
      %v3374 = vshll.u32 %v3221, 16
      %v3376 = vrot.slane %v3374, 5
      %v3377 = vsel %vm770, %v3372, %v3376
      %v3379 = vshrl.u32 %v2740, 16
      %v3381 = vrot.slane %v3379, 4
      %v3382 = vshll.u32 %v2740, 16
      %v3384 = vrot.slane %v3382, 5
      %v3385 = vor.u32 %v3381, %v3384
      %v3386 = vrot.slane %v3385, 4
      %v3388 = vshll.u32 %v2741, 16
      %v3390 = vrot.slane %v3388, 5
      %v3391 = vsel %vm770, %v3386, %v3390
      %v3392 = vshrl.u32 %v2741, 16
      %v3394 = vrot.slane %v3392, 4
      %v3395 = vor.u32 %v3394, %v3390
      %v3396 = vrot.slane %v3395, 4
      %v3398 = vshll.u32 %v3222, 16
      %v3400 = vrot.slane %v3398, 5
      %v3401 = vsel %vm770, %v3396, %v3400
      %v3403 = vshrl.u32 %v2742, 16
      %v3405 = vrot.slane %v3403, 4
      %v3406 = vshll.u32 %v2742, 16
      %v3408 = vrot.slane %v3406, 5
      %v3409 = vor.u32 %v3405, %v3408
      %v3410 = vrot.slane %v3409, 4
      %v3412 = vshll.u32 %v2743, 16
      %v3414 = vrot.slane %v3412, 5
      %v3415 = vsel %vm770, %v3410, %v3414
      %v3416 = vshrl.u32 %v2743, 16
      %v3418 = vrot.slane %v3416, 4
      %v3419 = vor.u32 %v3418, %v3414
      %v3420 = vrot.slane %v3419, 4
      %v3422 = vshll.u32 %v3223, 16
      %v3424 = vrot.slane %v3422, 5
      %v3425 = vsel %vm770, %v3420, %v3424
      %v3427 = vshrl.u32 %v2744, 16
      %v3429 = vrot.slane %v3427, 4
      %v3430 = vshll.u32 %v2744, 16
      %v3432 = vrot.slane %v3430, 5
      %v3433 = vor.u32 %v3429, %v3432
      %v3434 = vrot.slane %v3433, 4
      %v3436 = vshll.u32 %v2745, 16
      %v3438 = vrot.slane %v3436, 5
      %v3439 = vsel %vm770, %v3434, %v3438
      %v3440 = vshrl.u32 %v2745, 16
      %v3442 = vrot.slane %v3440, 4
      %v3443 = vor.u32 %v3442, %v3438
      %v3444 = vrot.slane %v3443, 4
      %v3446 = vshll.u32 %v3224, 16
      %v3448 = vrot.slane %v3446, 5
      %v3449 = vsel %vm770, %v3444, %v3448
      %v3451 = vshrl.u32 %v2746, 16
      %v3453 = vrot.slane %v3451, 4
      %v3454 = vshll.u32 %v2746, 16
      %v3456 = vrot.slane %v3454, 5
      %v3457 = vor.u32 %v3453, %v3456
      %v3458 = vrot.slane %v3457, 4
      %v3460 = vshll.u32 %v2747, 16
      %v3462 = vrot.slane %v3460, 5
      %v3463 = vsel %vm770, %v3458, %v3462
      %v3464 = vshrl.u32 %v2747, 16
      %v3466 = vrot.slane %v3464, 4
      %v3467 = vor.u32 %v3466, %v3462
      %v3468 = vrot.slane %v3467, 4
      %v3470 = vshll.u32 %v3225, 16
      %v3472 = vrot.slane %v3470, 5
      %v3473 = vsel %vm770, %v3468, %v3472
      %v3475 = vshrl.u32 %v2748, 16
      %v3477 = vrot.slane %v3475, 4
      %v3478 = vshll.u32 %v2748, 16
      %v3480 = vrot.slane %v3478, 5
      %v3481 = vor.u32 %v3477, %v3480
      %v3482 = vrot.slane %v3481, 4
      %v3484 = vshll.u32 %v2749, 16
      %v3486 = vrot.slane %v3484, 5
      %v3487 = vsel %vm770, %v3482, %v3486
      %v3488 = vshrl.u32 %v2749, 16
      %v3490 = vrot.slane %v3488, 4
      %v3491 = vor.u32 %v3490, %v3486
      %v3492 = vrot.slane %v3491, 4
      %v3494 = vshll.u32 %v3226, 16
      %v3496 = vrot.slane %v3494, 5
      %v3497 = vsel %vm770, %v3492, %v3496
      %v3499 = vshrl.u32 %v2750, 16
      %v3501 = vrot.slane %v3499, 4
      %v3502 = vshll.u32 %v2750, 16
      %v3504 = vrot.slane %v3502, 5
      %v3505 = vor.u32 %v3501, %v3504
      %v3506 = vrot.slane %v3505, 4
      %v3508 = vshll.u32 %v2751, 16
      %v3510 = vrot.slane %v3508, 5
      %v3511 = vsel %vm770, %v3506, %v3510
      %v3512 = vshrl.u32 %v2751, 16
      %v3514 = vrot.slane %v3512, 4
      %v3515 = vor.u32 %v3514, %v3510
      %v3516 = vrot.slane %v3515, 4
      %v3518 = vshll.u32 %v3227, 16
      %v3520 = vrot.slane %v3518, 5
      %v3521 = vsel %vm770, %v3516, %v3520
      %v3523 = vshrl.u32 %v2752, 16
      %v3525 = vrot.slane %v3523, 4
      %v3526 = vshll.u32 %v2752, 16
      %v3528 = vrot.slane %v3526, 5
      %v3529 = vor.u32 %v3525, %v3528
      %v3530 = vrot.slane %v3529, 4
      %v3532 = vshll.u32 %v2753, 16
      %v3534 = vrot.slane %v3532, 5
      %v3535 = vsel %vm770, %v3530, %v3534
      %v3536 = vshrl.u32 %v2753, 16
      %v3538 = vrot.slane %v3536, 4
      %v3539 = vor.u32 %v3538, %v3534
      %v3540 = vrot.slane %v3539, 4
      %v3542 = vshll.u32 %v3228, 16
      %v3544 = vrot.slane %v3542, 5
      %v3545 = vsel %vm770, %v3540, %v3544
      %v3547 = vshrl.u32 %v2754, 16
      %v3549 = vrot.slane %v3547, 4
      %v3550 = vshll.u32 %v2754, 16
      %v3552 = vrot.slane %v3550, 5
      %v3553 = vor.u32 %v3549, %v3552
      %v3554 = vrot.slane %v3553, 4
      %v3556 = vshll.u32 %v2755, 16
      %v3558 = vrot.slane %v3556, 5
      %v3559 = vsel %vm770, %v3554, %v3558
      %v3560 = vshrl.u32 %v2755, 16
      %v3562 = vrot.slane %v3560, 4
      %v3563 = vor.u32 %v3562, %v3558
      %v3564 = vrot.slane %v3563, 4
      %v3566 = vshll.u32 %v3229, 16
      %v3568 = vrot.slane %v3566, 5
      %v3569 = vsel %vm770, %v3564, %v3568
      %v3571 = vshrl.u32 %v2756, 16
      %v3573 = vrot.slane %v3571, 4
      %v3574 = vshll.u32 %v2756, 16
      %v3576 = vrot.slane %v3574, 5
      %v3577 = vor.u32 %v3573, %v3576
      %v3578 = vrot.slane %v3577, 4
      %v3580 = vshll.u32 %v2757, 16
      %v3582 = vrot.slane %v3580, 5
      %v3583 = vsel %vm770, %v3578, %v3582
      %v3584 = vshrl.u32 %v2757, 16
      %v3586 = vrot.slane %v3584, 4
      %v3587 = vor.u32 %v3586, %v3582
      %v3588 = vrot.slane %v3587, 4
      %v3590 = vshll.u32 %v3230, 16
      %v3592 = vrot.slane %v3590, 5
      %v3593 = vsel %vm770, %v3588, %v3592
      %v3595 = vshrl.u32 %v2758, 16
      %v3597 = vrot.slane %v3595, 4
      %v3598 = vshll.u32 %v2758, 16
      %v3600 = vrot.slane %v3598, 5
      %v3601 = vor.u32 %v3597, %v3600
      %v3602 = vrot.slane %v3601, 4
      %v3604 = vshll.u32 %v2759, 16
      %v3606 = vrot.slane %v3604, 5
      %v3607 = vsel %vm770, %v3602, %v3606
      %v3608 = vshrl.u32 %v2759, 16
      %v3610 = vrot.slane %v3608, 4
      %v3611 = vor.u32 %v3610, %v3606
      %v3612 = vrot.slane %v3611, 4
      %v3614 = vshll.u32 %v3231, 16
      %v3616 = vrot.slane %v3614, 5
      %v3617 = vsel %vm770, %v3612, %v3616
      %v3618 = vunpack.c.l.b16 %v3247
      %v3619 = vunpack.c.l.b16 %v3257
      %v3620 = vunpack.c.l.b16 %v3271
      %v3621 = vunpack.c.l.b16 %v3281
      %v3622 = vunpack.c.l.b16 %v3295
      %v3623 = vunpack.c.l.b16 %v3305
      %v3624 = vunpack.c.l.b16 %v3319
      %v3625 = vunpack.c.l.b16 %v3329
      %v3626 = vunpack.c.l.b16 %v3343
      %v3627 = vunpack.c.l.b16 %v3353
      %v3628 = vunpack.c.l.b16 %v3367
      %v3629 = vunpack.c.l.b16 %v3377
      %v3630 = vunpack.c.l.b16 %v3391
      %v3631 = vunpack.c.l.b16 %v3401
      %v3632 = vunpack.c.l.b16 %v3415
      %v3633 = vunpack.c.l.b16 %v3425
      %v3634 = vunpack.c.l.b16 %v3439
      %v3635 = vunpack.c.l.b16 %v3449
      %v3636 = vunpack.c.l.b16 %v3463
      %v3637 = vunpack.c.l.b16 %v3473
      %v3638 = vunpack.c.l.b16 %v3487
      %v3639 = vunpack.c.l.b16 %v3497
      %v3640 = vunpack.c.l.b16 %v3511
      %v3641 = vunpack.c.l.b16 %v3521
      %v3642 = vunpack.c.l.b16 %v3535
      %v3643 = vunpack.c.l.b16 %v3545
      %v3644 = vunpack.c.l.b16 %v3559
      %v3645 = vunpack.c.l.b16 %v3569
      %v3646 = vunpack.c.l.b16 %v3583
      %v3647 = vunpack.c.l.b16 %v3593
      %v3648 = vunpack.c.l.b16 %v3607
      %v3649 = vunpack.c.l.b16 %v3617
      %v3650 = vpack.c.b16 %v3619, %v3618
      %v3651 = vpack.c.b16 %v3621, %v3620
      %v3652 = vpack.c.b16 %v3623, %v3622
      %v3653 = vpack.c.b16 %v3625, %v3624
      %v3654 = vpack.c.b16 %v3627, %v3626
      %v3655 = vpack.c.b16 %v3629, %v3628
      %v3656 = vpack.c.b16 %v3631, %v3630
      %v3657 = vpack.c.b16 %v3633, %v3632
      %v3658 = vpack.c.b16 %v3635, %v3634
      %v3659 = vpack.c.b16 %v3637, %v3636
      %v3660 = vpack.c.b16 %v3639, %v3638
      %v3661 = vpack.c.b16 %v3641, %v3640
      %v3662 = vpack.c.b16 %v3643, %v3642
      %v3663 = vpack.c.b16 %v3645, %v3644
      %v3664 = vpack.c.b16 %v3647, %v3646
      %v3665 = vpack.c.b16 %v3649, %v3648
      %v3667 = vsel %vm376, %v3650, 0
      %v3670 = vsel %vm376, %v3651, 0
      %v3673 = vsel %vm376, %v3652, 0
      %v3676 = vsel %vm376, %v3653, 0
      %v3679 = vsel %vm376, %v3654, 0
      %v3682 = vsel %vm376, %v3655, 0
      %v3685 = vsel %vm376, %v3656, 0
      %v3688 = vsel %vm376, %v3657, 0
      %v3691 = vsel %vm376, %v3658, 0
      %v3694 = vsel %vm376, %v3659, 0
      %v3697 = vsel %vm376, %v3660, 0
      %v3700 = vsel %vm376, %v3661, 0
      %v3703 = vsel %vm376, %v3662, 0
      %v3706 = vsel %vm376, %v3663, 0
      %v3709 = vsel %vm376, %v3664, 0
      %v3712 = vsel %vm376, %v3665, 0
      %v3715 = vsel %vm425, %v245, 0
      %3717 = vmatpush.bf16.msra.mxu0 0
      %3718 = vmatpush.bf16.msra.mxu0 0
      %3719 = vmatpush.bf16.msra.mxu0 0
      %3720 = vmatpush.bf16.msra.mxu0 0
      %3721 = vmatpush.bf16.msra.mxu0 0
      %3722 = vmatpush.bf16.msra.mxu0 0
      %3723 = vmatpush.bf16.msra.mxu0 0
      %3724 = vmatpush.bf16.msra.mxu0 %v3715
      %3725 = vmatmul.bf16.gmra.mxu0 %v3667
      %v3726 = vpop.f32.mrf.mxu0
      %v3727 = vadd.f32 0.0, %v3726
      %v3728 = vpop.f32.mrf.mxu0
      %v3729 = vadd.f32 0.0, %v3728
      %3730 = vmatmul.bf16.gmra.mxu0 %v3670
      %v3731 = vpop.f32.mrf.mxu0
      %v3732 = vadd.f32 0.0, %v3731
      %v3733 = vpop.f32.mrf.mxu0
      %v3734 = vadd.f32 0.0, %v3733
      %3735 = vmatmul.bf16.gmra.mxu0 %v3673
      %v3736 = vpop.f32.mrf.mxu0
      %v3737 = vadd.f32 0.0, %v3736
      %v3738 = vpop.f32.mrf.mxu0
      %v3739 = vadd.f32 0.0, %v3738
      %3740 = vmatmul.bf16.gmra.mxu0 %v3676
      %v3741 = vpop.f32.mrf.mxu0
      %v3742 = vadd.f32 0.0, %v3741
      %v3743 = vpop.f32.mrf.mxu0
      %v3744 = vadd.f32 0.0, %v3743
      %3745 = vmatmul.bf16.gmra.mxu0 %v3679
      %v3746 = vpop.f32.mrf.mxu0
      %v3747 = vadd.f32 0.0, %v3746
      %v3748 = vpop.f32.mrf.mxu0
      %v3749 = vadd.f32 0.0, %v3748
      %3750 = vmatmul.bf16.gmra.mxu0 %v3682
      %v3751 = vpop.f32.mrf.mxu0
      %v3752 = vadd.f32 0.0, %v3751
      %v3753 = vpop.f32.mrf.mxu0
      %v3754 = vadd.f32 0.0, %v3753
      %3755 = vmatmul.bf16.gmra.mxu0 %v3685
      %v3756 = vpop.f32.mrf.mxu0
      %v3757 = vadd.f32 0.0, %v3756
      %v3758 = vpop.f32.mrf.mxu0
      %v3759 = vadd.f32 0.0, %v3758
      %3760 = vmatmul.bf16.gmra.mxu0 %v3688
      %v3761 = vpop.f32.mrf.mxu0
      %v3762 = vadd.f32 0.0, %v3761
      %v3763 = vpop.f32.mrf.mxu0
      %v3764 = vadd.f32 0.0, %v3763
      %3765 = vmatmul.bf16.gmra.mxu0 %v3691
      %v3766 = vpop.f32.mrf.mxu0
      %v3767 = vadd.f32 0.0, %v3766
      %v3768 = vpop.f32.mrf.mxu0
      %v3769 = vadd.f32 0.0, %v3768
      %3770 = vmatmul.bf16.gmra.mxu0 %v3694
      %v3771 = vpop.f32.mrf.mxu0
      %v3772 = vadd.f32 0.0, %v3771
      %v3773 = vpop.f32.mrf.mxu0
      %v3774 = vadd.f32 0.0, %v3773
      %3775 = vmatmul.bf16.gmra.mxu0 %v3697
      %v3776 = vpop.f32.mrf.mxu0
      %v3777 = vadd.f32 0.0, %v3776
      %v3778 = vpop.f32.mrf.mxu0
      %v3779 = vadd.f32 0.0, %v3778
      %3780 = vmatmul.bf16.gmra.mxu0 %v3700
      %v3781 = vpop.f32.mrf.mxu0
      %v3782 = vadd.f32 0.0, %v3781
      %v3783 = vpop.f32.mrf.mxu0
      %v3784 = vadd.f32 0.0, %v3783
      %3785 = vmatmul.bf16.gmra.mxu0 %v3703
      %v3786 = vpop.f32.mrf.mxu0
      %v3787 = vadd.f32 0.0, %v3786
      %v3788 = vpop.f32.mrf.mxu0
      %v3789 = vadd.f32 0.0, %v3788
      %3790 = vmatmul.bf16.gmra.mxu0 %v3706
      %v3791 = vpop.f32.mrf.mxu0
      %v3792 = vadd.f32 0.0, %v3791
      %v3793 = vpop.f32.mrf.mxu0
      %v3794 = vadd.f32 0.0, %v3793
      %3795 = vmatmul.bf16.gmra.mxu0 %v3709
      %v3796 = vpop.f32.mrf.mxu0
      %v3797 = vadd.f32 0.0, %v3796
      %v3798 = vpop.f32.mrf.mxu0
      %v3799 = vadd.f32 0.0, %v3798
      %3800 = vmatmul.bf16.gmra.mxu0 %v3712
      %v3801 = vpop.f32.mrf.mxu0
      %v3802 = vadd.f32 0.0, %v3801
      %v3803 = vpop.f32.mrf.mxu0
      %v3804 = vadd.f32 0.0, %v3803
      %3805 = vdwg.mxu0
      %v3806 = vadd.f32 %v3184, %v3727
      %v3807 = vadd.f32 %v3185, %v3729
      %v3808 = vadd.f32 %v3186, %v3732
      %v3809 = vadd.f32 %v3187, %v3734
      %v3810 = vadd.f32 %v3188, %v3737
      %v3811 = vadd.f32 %v3189, %v3739
      %v3812 = vadd.f32 %v3190, %v3742
      %v3813 = vadd.f32 %v3191, %v3744
      %v3814 = vadd.f32 %v3192, %v3747
      %v3815 = vadd.f32 %v3193, %v3749
      %v3816 = vadd.f32 %v3194, %v3752
      %v3817 = vadd.f32 %v3195, %v3754
      %v3818 = vadd.f32 %v3196, %v3757
      %v3819 = vadd.f32 %v3197, %v3759
      %v3820 = vadd.f32 %v3198, %v3762
      %v3821 = vadd.f32 %v3199, %v3764
      %v3822 = vadd.f32 %v3200, %v3767
      %v3823 = vadd.f32 %v3201, %v3769
      %v3824 = vadd.f32 %v3202, %v3772
      %v3825 = vadd.f32 %v3203, %v3774
      %v3826 = vadd.f32 %v3204, %v3777
      %v3827 = vadd.f32 %v3205, %v3779
      %v3828 = vadd.f32 %v3206, %v3782
      %v3829 = vadd.f32 %v3207, %v3784
      %v3830 = vadd.f32 %v3208, %v3787
      %v3831 = vadd.f32 %v3209, %v3789
      %v3832 = vadd.f32 %v3210, %v3792
      %v3833 = vadd.f32 %v3211, %v3794
      %v3834 = vadd.f32 %v3212, %v3797
      %v3835 = vadd.f32 %v3213, %v3799
      %v3836 = vadd.f32 %v3214, %v3802
      %v3837 = vadd.f32 %v3215, %v3804
      %v3839 = vshrl.u32 %v2760, 16
      %v3841 = vrot.slane %v3839, 4
      %v3842 = vshll.u32 %v2760, 16
      %v3844 = vrot.slane %v3842, 5
      %v3845 = vor.u32 %v3841, %v3844
      %v3846 = vrot.slane %v3845, 4
      %v3848 = vshll.u32 %v2761, 16
      %v3850 = vrot.slane %v3848, 5
      %v3851 = vsel %vm770, %v3846, %v3850
      %v3852 = vshrl.u32 %v2761, 16
      %v3854 = vrot.slane %v3852, 4
      %v3855 = vor.u32 %v3854, %v3850
      %v3856 = vrot.slane %v3855, 4
      %v3858 = vshll.u32 %v3232, 16
      %v3860 = vrot.slane %v3858, 5
      %v3861 = vsel %vm770, %v3856, %v3860
      %v3862 = vunpack.c.l.b16 %v3851
      %v3863 = vunpack.c.l.b16 %v3861
      %v3864 = vpack.c.b16 %v3863, %v3862
      %v3866 = vsel %vm376, %v3864, 0
      %v3869 = vsel %vm425, %v251, 0
      %3871 = vmatpush.bf16.msra.mxu0 0
      %3872 = vmatpush.bf16.msra.mxu0 0
      %3873 = vmatpush.bf16.msra.mxu0 0
      %3874 = vmatpush.bf16.msra.mxu0 0
      %3875 = vmatpush.bf16.msra.mxu0 0
      %3876 = vmatpush.bf16.msra.mxu0 0
      %3877 = vmatpush.bf16.msra.mxu0 0
      %3878 = vmatpush.bf16.msra.mxu0 %v3869
      %3879 = vmatmul.bf16.gmra.mxu0 %v3670
      %v3880 = vpop.f32.mrf.mxu0
      %v3881 = vadd.f32 0.0, %v3880
      %v3882 = vpop.f32.mrf.mxu0
      %v3883 = vadd.f32 0.0, %v3882
      %3884 = vmatmul.bf16.gmra.mxu0 %v3673
      %v3885 = vpop.f32.mrf.mxu0
      %v3886 = vadd.f32 0.0, %v3885
      %v3887 = vpop.f32.mrf.mxu0
      %v3888 = vadd.f32 0.0, %v3887
      %3889 = vmatmul.bf16.gmra.mxu0 %v3676
      %v3890 = vpop.f32.mrf.mxu0
      %v3891 = vadd.f32 0.0, %v3890
      %v3892 = vpop.f32.mrf.mxu0
      %v3893 = vadd.f32 0.0, %v3892
      %3894 = vmatmul.bf16.gmra.mxu0 %v3679
      %v3895 = vpop.f32.mrf.mxu0
      %v3896 = vadd.f32 0.0, %v3895
      %v3897 = vpop.f32.mrf.mxu0
      %v3898 = vadd.f32 0.0, %v3897
      %3899 = vmatmul.bf16.gmra.mxu0 %v3682
      %v3900 = vpop.f32.mrf.mxu0
      %v3901 = vadd.f32 0.0, %v3900
      %v3902 = vpop.f32.mrf.mxu0
      %v3903 = vadd.f32 0.0, %v3902
      %3904 = vmatmul.bf16.gmra.mxu0 %v3685
      %v3905 = vpop.f32.mrf.mxu0
      %v3906 = vadd.f32 0.0, %v3905
      %v3907 = vpop.f32.mrf.mxu0
      %v3908 = vadd.f32 0.0, %v3907
      %3909 = vmatmul.bf16.gmra.mxu0 %v3688
      %v3910 = vpop.f32.mrf.mxu0
      %v3911 = vadd.f32 0.0, %v3910
      %v3912 = vpop.f32.mrf.mxu0
      %v3913 = vadd.f32 0.0, %v3912
      %3914 = vmatmul.bf16.gmra.mxu0 %v3691
      %v3915 = vpop.f32.mrf.mxu0
      %v3916 = vadd.f32 0.0, %v3915
      %v3917 = vpop.f32.mrf.mxu0
      %v3918 = vadd.f32 0.0, %v3917
      %3919 = vmatmul.bf16.gmra.mxu0 %v3694
      %v3920 = vpop.f32.mrf.mxu0
      %v3921 = vadd.f32 0.0, %v3920
      %v3922 = vpop.f32.mrf.mxu0
      %v3923 = vadd.f32 0.0, %v3922
      %3924 = vmatmul.bf16.gmra.mxu0 %v3697
      %v3925 = vpop.f32.mrf.mxu0
      %v3926 = vadd.f32 0.0, %v3925
      %v3927 = vpop.f32.mrf.mxu0
      %v3928 = vadd.f32 0.0, %v3927
      %3929 = vmatmul.bf16.gmra.mxu0 %v3700
      %v3930 = vpop.f32.mrf.mxu0
      %v3931 = vadd.f32 0.0, %v3930
      %v3932 = vpop.f32.mrf.mxu0
      %v3933 = vadd.f32 0.0, %v3932
      %3934 = vmatmul.bf16.gmra.mxu0 %v3703
      %v3935 = vpop.f32.mrf.mxu0
      %v3936 = vadd.f32 0.0, %v3935
      %v3937 = vpop.f32.mrf.mxu0
      %v3938 = vadd.f32 0.0, %v3937
      %3939 = vmatmul.bf16.gmra.mxu0 %v3706
      %v3940 = vpop.f32.mrf.mxu0
      %v3941 = vadd.f32 0.0, %v3940
      %v3942 = vpop.f32.mrf.mxu0
      %v3943 = vadd.f32 0.0, %v3942
      %3944 = vmatmul.bf16.gmra.mxu0 %v3709
      %v3945 = vpop.f32.mrf.mxu0
      %v3946 = vadd.f32 0.0, %v3945
      %v3947 = vpop.f32.mrf.mxu0
      %v3948 = vadd.f32 0.0, %v3947
      %3949 = vmatmul.bf16.gmra.mxu0 %v3712
      %v3950 = vpop.f32.mrf.mxu0
      %v3951 = vadd.f32 0.0, %v3950
      %v3952 = vpop.f32.mrf.mxu0
      %v3953 = vadd.f32 0.0, %v3952
      %3954 = vmatmul.bf16.gmra.mxu0 %v3866
      %v3955 = vpop.f32.mrf.mxu0
      %v3956 = vadd.f32 0.0, %v3955
      %v3957 = vpop.f32.mrf.mxu0
      %v3958 = vadd.f32 0.0, %v3957
      %3959 = vdwg.mxu0
      %v3960 = vadd.f32 %v3806, %v3881
      %v3961 = vadd.f32 %v3807, %v3883
      %v3962 = vadd.f32 %v3808, %v3886
      %v3963 = vadd.f32 %v3809, %v3888
      %v3964 = vadd.f32 %v3810, %v3891
      %v3965 = vadd.f32 %v3811, %v3893
      %v3966 = vadd.f32 %v3812, %v3896
      %v3967 = vadd.f32 %v3813, %v3898
      %v3968 = vadd.f32 %v3814, %v3901
      %v3969 = vadd.f32 %v3815, %v3903
      %v3970 = vadd.f32 %v3816, %v3906
      %v3971 = vadd.f32 %v3817, %v3908
      %v3972 = vadd.f32 %v3818, %v3911
      %v3973 = vadd.f32 %v3819, %v3913
      %v3974 = vadd.f32 %v3820, %v3916
      %v3975 = vadd.f32 %v3821, %v3918
      %v3976 = vadd.f32 %v3822, %v3921
      %v3977 = vadd.f32 %v3823, %v3923
      %v3978 = vadd.f32 %v3824, %v3926
      %v3979 = vadd.f32 %v3825, %v3928
      %v3980 = vadd.f32 %v3826, %v3931
      %v3981 = vadd.f32 %v3827, %v3933
      %v3982 = vadd.f32 %v3828, %v3936
      %v3983 = vadd.f32 %v3829, %v3938
      %v3984 = vadd.f32 %v3830, %v3941
      %v3985 = vadd.f32 %v3831, %v3943
      %v3986 = vadd.f32 %v3832, %v3946
      %v3987 = vadd.f32 %v3833, %v3948
      %v3988 = vadd.f32 %v3834, %v3951
      %v3989 = vadd.f32 %v3835, %v3953
      %v3990 = vadd.f32 %v3836, %v3956
      %v3991 = vadd.f32 %v3837, %v3958
      %v3993 = vshrl.u32 %v2762, 16
      %v3995 = vrot.slane %v3993, 4
      %v3996 = vshll.u32 %v2762, 16
      %v3998 = vrot.slane %v3996, 5
      %v3999 = vor.u32 %v3995, %v3998
      %v4000 = vrot.slane %v3999, 4
      %v4002 = vshll.u32 %v2763, 16
      %v4004 = vrot.slane %v4002, 5
      %v4005 = vsel %vm770, %v4000, %v4004
      %v4006 = vshrl.u32 %v2763, 16
      %v4008 = vrot.slane %v4006, 4
      %v4009 = vor.u32 %v4008, %v4004
      %v4010 = vrot.slane %v4009, 4
      %v4012 = vshll.u32 %v3233, 16
      %v4014 = vrot.slane %v4012, 5
      %v4015 = vsel %vm770, %v4010, %v4014
      %v4016 = vunpack.c.l.b16 %v4005
      %v4017 = vunpack.c.l.b16 %v4015
      %v4018 = vpack.c.b16 %v4017, %v4016
      %v4020 = vsel %vm376, %v4018, 0
      %v4023 = vsel %vm425, %v257, 0
      %4025 = vmatpush.bf16.msra.mxu0 0
      %4026 = vmatpush.bf16.msra.mxu0 0
      %4027 = vmatpush.bf16.msra.mxu0 0
      %4028 = vmatpush.bf16.msra.mxu0 0
      %4029 = vmatpush.bf16.msra.mxu0 0
      %4030 = vmatpush.bf16.msra.mxu0 0
      %4031 = vmatpush.bf16.msra.mxu0 0
      %4032 = vmatpush.bf16.msra.mxu0 %v4023
      %4033 = vmatmul.bf16.gmra.mxu0 %v3673
      %v4034 = vpop.f32.mrf.mxu0
      %v4035 = vadd.f32 0.0, %v4034
      %v4036 = vpop.f32.mrf.mxu0
      %v4037 = vadd.f32 0.0, %v4036
      %4038 = vmatmul.bf16.gmra.mxu0 %v3676
      %v4039 = vpop.f32.mrf.mxu0
      %v4040 = vadd.f32 0.0, %v4039
      %v4041 = vpop.f32.mrf.mxu0
      %v4042 = vadd.f32 0.0, %v4041
      %4043 = vmatmul.bf16.gmra.mxu0 %v3679
      %v4044 = vpop.f32.mrf.mxu0
      %v4045 = vadd.f32 0.0, %v4044
      %v4046 = vpop.f32.mrf.mxu0
      %v4047 = vadd.f32 0.0, %v4046
      %4048 = vmatmul.bf16.gmra.mxu0 %v3682
      %v4049 = vpop.f32.mrf.mxu0
      %v4050 = vadd.f32 0.0, %v4049
      %v4051 = vpop.f32.mrf.mxu0
      %v4052 = vadd.f32 0.0, %v4051
      %4053 = vmatmul.bf16.gmra.mxu0 %v3685
      %v4054 = vpop.f32.mrf.mxu0
      %v4055 = vadd.f32 0.0, %v4054
      %v4056 = vpop.f32.mrf.mxu0
      %v4057 = vadd.f32 0.0, %v4056
      %4058 = vmatmul.bf16.gmra.mxu0 %v3688
      %v4059 = vpop.f32.mrf.mxu0
      %v4060 = vadd.f32 0.0, %v4059
      %v4061 = vpop.f32.mrf.mxu0
      %v4062 = vadd.f32 0.0, %v4061
      %4063 = vmatmul.bf16.gmra.mxu0 %v3691
      %v4064 = vpop.f32.mrf.mxu0
      %v4065 = vadd.f32 0.0, %v4064
      %v4066 = vpop.f32.mrf.mxu0
      %v4067 = vadd.f32 0.0, %v4066
      %4068 = vmatmul.bf16.gmra.mxu0 %v3694
      %v4069 = vpop.f32.mrf.mxu0
      %v4070 = vadd.f32 0.0, %v4069
      %v4071 = vpop.f32.mrf.mxu0
      %v4072 = vadd.f32 0.0, %v4071
      %4073 = vmatmul.bf16.gmra.mxu0 %v3697
      %v4074 = vpop.f32.mrf.mxu0
      %v4075 = vadd.f32 0.0, %v4074
      %v4076 = vpop.f32.mrf.mxu0
      %v4077 = vadd.f32 0.0, %v4076
      %4078 = vmatmul.bf16.gmra.mxu0 %v3700
      %v4079 = vpop.f32.mrf.mxu0
      %v4080 = vadd.f32 0.0, %v4079
      %v4081 = vpop.f32.mrf.mxu0
      %v4082 = vadd.f32 0.0, %v4081
      %4083 = vmatmul.bf16.gmra.mxu0 %v3703
      %v4084 = vpop.f32.mrf.mxu0
      %v4085 = vadd.f32 0.0, %v4084
      %v4086 = vpop.f32.mrf.mxu0
      %v4087 = vadd.f32 0.0, %v4086
      %4088 = vmatmul.bf16.gmra.mxu0 %v3706
      %v4089 = vpop.f32.mrf.mxu0
      %v4090 = vadd.f32 0.0, %v4089
      %v4091 = vpop.f32.mrf.mxu0
      %v4092 = vadd.f32 0.0, %v4091
      %4093 = vmatmul.bf16.gmra.mxu0 %v3709
      %v4094 = vpop.f32.mrf.mxu0
      %v4095 = vadd.f32 0.0, %v4094
      %v4096 = vpop.f32.mrf.mxu0
      %v4097 = vadd.f32 0.0, %v4096
      %4098 = vmatmul.bf16.gmra.mxu0 %v3712
      %v4099 = vpop.f32.mrf.mxu0
      %v4100 = vadd.f32 0.0, %v4099
      %v4101 = vpop.f32.mrf.mxu0
      %v4102 = vadd.f32 0.0, %v4101
      %4103 = vmatmul.bf16.gmra.mxu0 %v3866
      %v4104 = vpop.f32.mrf.mxu0
      %v4105 = vadd.f32 0.0, %v4104
      %v4106 = vpop.f32.mrf.mxu0
      %v4107 = vadd.f32 0.0, %v4106
      %4108 = vmatmul.bf16.gmra.mxu0 %v4020
      %v4109 = vpop.f32.mrf.mxu0
      %v4110 = vadd.f32 0.0, %v4109
      %v4111 = vpop.f32.mrf.mxu0
      %v4112 = vadd.f32 0.0, %v4111
      %4113 = vdwg.mxu0
      %v4114 = vadd.f32 %v3960, %v4035
      %v4115 = vadd.f32 %v3961, %v4037
      %v4116 = vadd.f32 %v3962, %v4040
      %v4117 = vadd.f32 %v3963, %v4042
      %v4118 = vadd.f32 %v3964, %v4045
      %v4119 = vadd.f32 %v3965, %v4047
      %v4120 = vadd.f32 %v3966, %v4050
      %v4121 = vadd.f32 %v3967, %v4052
      %v4122 = vadd.f32 %v3968, %v4055
      %v4123 = vadd.f32 %v3969, %v4057
      %v4124 = vadd.f32 %v3970, %v4060
      %v4125 = vadd.f32 %v3971, %v4062
      %v4126 = vadd.f32 %v3972, %v4065
      %v4127 = vadd.f32 %v3973, %v4067
      %v4128 = vadd.f32 %v3974, %v4070
      %v4129 = vadd.f32 %v3975, %v4072
      %v4130 = vadd.f32 %v3976, %v4075
      %v4131 = vadd.f32 %v3977, %v4077
      %v4132 = vadd.f32 %v3978, %v4080
      %v4133 = vadd.f32 %v3979, %v4082
      %v4134 = vadd.f32 %v3980, %v4085
      %v4135 = vadd.f32 %v3981, %v4087
      %v4136 = vadd.f32 %v3982, %v4090
      %v4137 = vadd.f32 %v3983, %v4092
      %v4138 = vadd.f32 %v3984, %v4095
      %v4139 = vadd.f32 %v3985, %v4097
      %v4140 = vadd.f32 %v3986, %v4100
      %v4141 = vadd.f32 %v3987, %v4102
      %v4142 = vadd.f32 %v3988, %v4105
      %v4143 = vadd.f32 %v3989, %v4107
      %v4144 = vadd.f32 %v3990, %v4110
      %v4145 = vadd.f32 %v3991, %v4112
      %v4162 = vrot.slane %v2728, 5
      %v4163 = vrot.slane %v4162, 4
      %v4164 = vrot.slane %v2729, 5
      %v4165 = vsel %vm1701, %v4163, %v4164
      %v4166 = vrot.slane %v4164, 4
      %v4167 = vrot.slane %v3216, 5
      %v4168 = vsel %vm1701, %v4166, %v4167
      %v4169 = vrot.slane %v2730, 5
      %v4170 = vrot.slane %v4169, 4
      %v4171 = vrot.slane %v2731, 5
      %v4172 = vsel %vm1701, %v4170, %v4171
      %v4173 = vrot.slane %v4171, 4
      %v4174 = vrot.slane %v3217, 5
      %v4175 = vsel %vm1701, %v4173, %v4174
      %v4176 = vrot.slane %v2732, 5
      %v4177 = vrot.slane %v4176, 4
      %v4178 = vrot.slane %v2733, 5
      %v4179 = vsel %vm1701, %v4177, %v4178
      %v4180 = vrot.slane %v4178, 4
      %v4181 = vrot.slane %v3218, 5
      %v4182 = vsel %vm1701, %v4180, %v4181
      %v4183 = vrot.slane %v2734, 5
      %v4184 = vrot.slane %v4183, 4
      %v4185 = vrot.slane %v2735, 5
      %v4186 = vsel %vm1701, %v4184, %v4185
      %v4187 = vrot.slane %v4185, 4
      %v4188 = vrot.slane %v3219, 5
      %v4189 = vsel %vm1701, %v4187, %v4188
      %v4190 = vrot.slane %v2736, 5
      %v4191 = vrot.slane %v4190, 4
      %v4192 = vrot.slane %v2737, 5
      %v4193 = vsel %vm1701, %v4191, %v4192
      %v4194 = vrot.slane %v4192, 4
      %v4195 = vrot.slane %v3220, 5
      %v4196 = vsel %vm1701, %v4194, %v4195
      %v4197 = vrot.slane %v2738, 5
      %v4198 = vrot.slane %v4197, 4
      %v4199 = vrot.slane %v2739, 5
      %v4200 = vsel %vm1701, %v4198, %v4199
      %v4201 = vrot.slane %v4199, 4
      %v4202 = vrot.slane %v3221, 5
      %v4203 = vsel %vm1701, %v4201, %v4202
      %v4204 = vrot.slane %v2740, 5
      %v4205 = vrot.slane %v4204, 4
      %v4206 = vrot.slane %v2741, 5
      %v4207 = vsel %vm1701, %v4205, %v4206
      %v4208 = vrot.slane %v4206, 4
      %v4209 = vrot.slane %v3222, 5
      %v4210 = vsel %vm1701, %v4208, %v4209
      %v4211 = vrot.slane %v2742, 5
      %v4212 = vrot.slane %v4211, 4
      %v4213 = vrot.slane %v2743, 5
      %v4214 = vsel %vm1701, %v4212, %v4213
      %v4215 = vrot.slane %v4213, 4
      %v4216 = vrot.slane %v3223, 5
      %v4217 = vsel %vm1701, %v4215, %v4216
      %v4218 = vrot.slane %v2744, 5
      %v4219 = vrot.slane %v4218, 4
      %v4220 = vrot.slane %v2745, 5
      %v4221 = vsel %vm1701, %v4219, %v4220
      %v4222 = vrot.slane %v4220, 4
      %v4223 = vrot.slane %v3224, 5
      %v4224 = vsel %vm1701, %v4222, %v4223
      %v4225 = vrot.slane %v2746, 5
      %v4226 = vrot.slane %v4225, 4
      %v4227 = vrot.slane %v2747, 5
      %v4228 = vsel %vm1701, %v4226, %v4227
      %v4229 = vrot.slane %v4227, 4
      %v4230 = vrot.slane %v3225, 5
      %v4231 = vsel %vm1701, %v4229, %v4230
      %v4232 = vrot.slane %v2748, 5
      %v4233 = vrot.slane %v4232, 4
      %v4234 = vrot.slane %v2749, 5
      %v4235 = vsel %vm1701, %v4233, %v4234
      %v4236 = vrot.slane %v4234, 4
      %v4237 = vrot.slane %v3226, 5
      %v4238 = vsel %vm1701, %v4236, %v4237
      %v4239 = vrot.slane %v2750, 5
      %v4240 = vrot.slane %v4239, 4
      %v4241 = vrot.slane %v2751, 5
      %v4242 = vsel %vm1701, %v4240, %v4241
      %v4243 = vrot.slane %v4241, 4
      %v4244 = vrot.slane %v3227, 5
      %v4245 = vsel %vm1701, %v4243, %v4244
      %v4246 = vrot.slane %v2752, 5
      %v4247 = vrot.slane %v4246, 4
      %v4248 = vrot.slane %v2753, 5
      %v4249 = vsel %vm1701, %v4247, %v4248
      %v4250 = vrot.slane %v4248, 4
      %v4251 = vrot.slane %v3228, 5
      %v4252 = vsel %vm1701, %v4250, %v4251
      %v4253 = vrot.slane %v2754, 5
      %v4254 = vrot.slane %v4253, 4
      %v4255 = vrot.slane %v2755, 5
      %v4256 = vsel %vm1701, %v4254, %v4255
      %v4257 = vrot.slane %v4255, 4
      %v4258 = vrot.slane %v3229, 5
      %v4259 = vsel %vm1701, %v4257, %v4258
      %v4260 = vrot.slane %v2756, 5
      %v4261 = vrot.slane %v4260, 4
      %v4262 = vrot.slane %v2757, 5
      %v4263 = vsel %vm1701, %v4261, %v4262
      %v4264 = vrot.slane %v4262, 4
      %v4265 = vrot.slane %v3230, 5
      %v4266 = vsel %vm1701, %v4264, %v4265
      %v4267 = vrot.slane %v2758, 5
      %v4268 = vrot.slane %v4267, 4
      %v4269 = vrot.slane %v2759, 5
      %v4270 = vsel %vm1701, %v4268, %v4269
      %v4271 = vrot.slane %v4269, 4
      %v4272 = vrot.slane %v3231, 5
      %v4273 = vsel %vm1701, %v4271, %v4272
      %v4274 = vunpack.c.l.b16 %v4165
      %v4275 = vunpack.c.l.b16 %v4168
      %v4276 = vunpack.c.l.b16 %v4172
      %v4277 = vunpack.c.l.b16 %v4175
      %v4278 = vunpack.c.l.b16 %v4179
      %v4279 = vunpack.c.l.b16 %v4182
      %v4280 = vunpack.c.l.b16 %v4186
      %v4281 = vunpack.c.l.b16 %v4189
      %v4282 = vunpack.c.l.b16 %v4193
      %v4283 = vunpack.c.l.b16 %v4196
      %v4284 = vunpack.c.l.b16 %v4200
      %v4285 = vunpack.c.l.b16 %v4203
      %v4286 = vunpack.c.l.b16 %v4207
      %v4287 = vunpack.c.l.b16 %v4210
      %v4288 = vunpack.c.l.b16 %v4214
      %v4289 = vunpack.c.l.b16 %v4217
      %v4290 = vunpack.c.l.b16 %v4221
      %v4291 = vunpack.c.l.b16 %v4224
      %v4292 = vunpack.c.l.b16 %v4228
      %v4293 = vunpack.c.l.b16 %v4231
      %v4294 = vunpack.c.l.b16 %v4235
      %v4295 = vunpack.c.l.b16 %v4238
      %v4296 = vunpack.c.l.b16 %v4242
      %v4297 = vunpack.c.l.b16 %v4245
      %v4298 = vunpack.c.l.b16 %v4249
      %v4299 = vunpack.c.l.b16 %v4252
      %v4300 = vunpack.c.l.b16 %v4256
      %v4301 = vunpack.c.l.b16 %v4259
      %v4302 = vunpack.c.l.b16 %v4263
      %v4303 = vunpack.c.l.b16 %v4266
      %v4304 = vunpack.c.l.b16 %v4270
      %v4305 = vunpack.c.l.b16 %v4273
      %v4306 = vpack.c.b16 %v4275, %v4274
      %v4307 = vpack.c.b16 %v4277, %v4276
      %v4308 = vpack.c.b16 %v4279, %v4278
      %v4309 = vpack.c.b16 %v4281, %v4280
      %v4310 = vpack.c.b16 %v4283, %v4282
      %v4311 = vpack.c.b16 %v4285, %v4284
      %v4312 = vpack.c.b16 %v4287, %v4286
      %v4313 = vpack.c.b16 %v4289, %v4288
      %v4314 = vpack.c.b16 %v4291, %v4290
      %v4315 = vpack.c.b16 %v4293, %v4292
      %v4316 = vpack.c.b16 %v4295, %v4294
      %v4317 = vpack.c.b16 %v4297, %v4296
      %v4318 = vpack.c.b16 %v4299, %v4298
      %v4319 = vpack.c.b16 %v4301, %v4300
      %v4320 = vpack.c.b16 %v4303, %v4302
      %v4321 = vpack.c.b16 %v4305, %v4304
      %v4323 = vsel %vm376, %v4306, 0
      %v4326 = vsel %vm376, %v4307, 0
      %v4329 = vsel %vm376, %v4308, 0
      %v4332 = vsel %vm376, %v4309, 0
      %v4335 = vsel %vm376, %v4310, 0
      %v4338 = vsel %vm376, %v4311, 0
      %v4341 = vsel %vm376, %v4312, 0
      %v4344 = vsel %vm376, %v4313, 0
      %v4347 = vsel %vm376, %v4314, 0
      %v4350 = vsel %vm376, %v4315, 0
      %v4353 = vsel %vm376, %v4316, 0
      %v4356 = vsel %vm376, %v4317, 0
      %v4359 = vsel %vm376, %v4318, 0
      %v4362 = vsel %vm376, %v4319, 0
      %v4365 = vsel %vm376, %v4320, 0
      %v4368 = vsel %vm376, %v4321, 0
      %v4371 = vsel %vm425, %v247, 0
      %4373 = vmatpush.bf16.msra.mxu0 0
      %4374 = vmatpush.bf16.msra.mxu0 0
      %4375 = vmatpush.bf16.msra.mxu0 0
      %4376 = vmatpush.bf16.msra.mxu0 0
      %4377 = vmatpush.bf16.msra.mxu0 0
      %4378 = vmatpush.bf16.msra.mxu0 0
      %4379 = vmatpush.bf16.msra.mxu0 0
      %4380 = vmatpush.bf16.msra.mxu0 %v4371
      %4381 = vmatmul.bf16.gmra.mxu0 %v4323
      %v4382 = vpop.f32.mrf.mxu0
      %v4383 = vadd.f32 0.0, %v4382
      %v4384 = vpop.f32.mrf.mxu0
      %v4385 = vadd.f32 0.0, %v4384
      %4386 = vmatmul.bf16.gmra.mxu0 %v4326
      %v4387 = vpop.f32.mrf.mxu0
      %v4388 = vadd.f32 0.0, %v4387
      %v4389 = vpop.f32.mrf.mxu0
      %v4390 = vadd.f32 0.0, %v4389
      %4391 = vmatmul.bf16.gmra.mxu0 %v4329
      %v4392 = vpop.f32.mrf.mxu0
      %v4393 = vadd.f32 0.0, %v4392
      %v4394 = vpop.f32.mrf.mxu0
      %v4395 = vadd.f32 0.0, %v4394
      %4396 = vmatmul.bf16.gmra.mxu0 %v4332
      %v4397 = vpop.f32.mrf.mxu0
      %v4398 = vadd.f32 0.0, %v4397
      %v4399 = vpop.f32.mrf.mxu0
      %v4400 = vadd.f32 0.0, %v4399
      %4401 = vmatmul.bf16.gmra.mxu0 %v4335
      %v4402 = vpop.f32.mrf.mxu0
      %v4403 = vadd.f32 0.0, %v4402
      %v4404 = vpop.f32.mrf.mxu0
      %v4405 = vadd.f32 0.0, %v4404
      %4406 = vmatmul.bf16.gmra.mxu0 %v4338
      %v4407 = vpop.f32.mrf.mxu0
      %v4408 = vadd.f32 0.0, %v4407
      %v4409 = vpop.f32.mrf.mxu0
      %v4410 = vadd.f32 0.0, %v4409
      %4411 = vmatmul.bf16.gmra.mxu0 %v4341
      %v4412 = vpop.f32.mrf.mxu0
      %v4413 = vadd.f32 0.0, %v4412
      %v4414 = vpop.f32.mrf.mxu0
      %v4415 = vadd.f32 0.0, %v4414
      %4416 = vmatmul.bf16.gmra.mxu0 %v4344
      %v4417 = vpop.f32.mrf.mxu0
      %v4418 = vadd.f32 0.0, %v4417
      %v4419 = vpop.f32.mrf.mxu0
      %v4420 = vadd.f32 0.0, %v4419
      %4421 = vmatmul.bf16.gmra.mxu0 %v4347
      %v4422 = vpop.f32.mrf.mxu0
      %v4423 = vadd.f32 0.0, %v4422
      %v4424 = vpop.f32.mrf.mxu0
      %v4425 = vadd.f32 0.0, %v4424
      %4426 = vmatmul.bf16.gmra.mxu0 %v4350
      %v4427 = vpop.f32.mrf.mxu0
      %v4428 = vadd.f32 0.0, %v4427
      %v4429 = vpop.f32.mrf.mxu0
      %v4430 = vadd.f32 0.0, %v4429
      %4431 = vmatmul.bf16.gmra.mxu0 %v4353
      %v4432 = vpop.f32.mrf.mxu0
      %v4433 = vadd.f32 0.0, %v4432
      %v4434 = vpop.f32.mrf.mxu0
      %v4435 = vadd.f32 0.0, %v4434
      %4436 = vmatmul.bf16.gmra.mxu0 %v4356
      %v4437 = vpop.f32.mrf.mxu0
      %v4438 = vadd.f32 0.0, %v4437
      %v4439 = vpop.f32.mrf.mxu0
      %v4440 = vadd.f32 0.0, %v4439
      %4441 = vmatmul.bf16.gmra.mxu0 %v4359
      %v4442 = vpop.f32.mrf.mxu0
      %v4443 = vadd.f32 0.0, %v4442
      %v4444 = vpop.f32.mrf.mxu0
      %v4445 = vadd.f32 0.0, %v4444
      %4446 = vmatmul.bf16.gmra.mxu0 %v4362
      %v4447 = vpop.f32.mrf.mxu0
      %v4448 = vadd.f32 0.0, %v4447
      %v4449 = vpop.f32.mrf.mxu0
      %v4450 = vadd.f32 0.0, %v4449
      %4451 = vmatmul.bf16.gmra.mxu0 %v4365
      %v4452 = vpop.f32.mrf.mxu0
      %v4453 = vadd.f32 0.0, %v4452
      %v4454 = vpop.f32.mrf.mxu0
      %v4455 = vadd.f32 0.0, %v4454
      %4456 = vmatmul.bf16.gmra.mxu0 %v4368
      %v4457 = vpop.f32.mrf.mxu0
      %v4458 = vadd.f32 0.0, %v4457
      %v4459 = vpop.f32.mrf.mxu0
      %v4460 = vadd.f32 0.0, %v4459
      %4461 = vdwg.mxu0
      %v4462 = vadd.f32 %v4114, %v4383
      %v4463 = vadd.f32 %v4115, %v4385
      %v4464 = vadd.f32 %v4116, %v4388
      %v4465 = vadd.f32 %v4117, %v4390
      %v4466 = vadd.f32 %v4118, %v4393
      %v4467 = vadd.f32 %v4119, %v4395
      %v4468 = vadd.f32 %v4120, %v4398
      %v4469 = vadd.f32 %v4121, %v4400
      %v4470 = vadd.f32 %v4122, %v4403
      %v4471 = vadd.f32 %v4123, %v4405
      %v4472 = vadd.f32 %v4124, %v4408
      %v4473 = vadd.f32 %v4125, %v4410
      %v4474 = vadd.f32 %v4126, %v4413
      %v4475 = vadd.f32 %v4127, %v4415
      %v4476 = vadd.f32 %v4128, %v4418
      %v4477 = vadd.f32 %v4129, %v4420
      %v4478 = vadd.f32 %v4130, %v4423
      %v4479 = vadd.f32 %v4131, %v4425
      %v4480 = vadd.f32 %v4132, %v4428
      %v4481 = vadd.f32 %v4133, %v4430
      %v4482 = vadd.f32 %v4134, %v4433
      %v4483 = vadd.f32 %v4135, %v4435
      %v4484 = vadd.f32 %v4136, %v4438
      %v4485 = vadd.f32 %v4137, %v4440
      %v4486 = vadd.f32 %v4138, %v4443
      %v4487 = vadd.f32 %v4139, %v4445
      %v4488 = vadd.f32 %v4140, %v4448
      %v4489 = vadd.f32 %v4141, %v4450
      %v4490 = vadd.f32 %v4142, %v4453
      %v4491 = vadd.f32 %v4143, %v4455
      %v4492 = vadd.f32 %v4144, %v4458
      %v4493 = vadd.f32 %v4145, %v4460
      %v4495 = vrot.slane %v2760, 5
      %v4496 = vrot.slane %v4495, 4
      %v4497 = vrot.slane %v2761, 5
      %v4498 = vsel %vm1701, %v4496, %v4497
      %v4499 = vrot.slane %v4497, 4
      %v4500 = vrot.slane %v3232, 5
      %v4501 = vsel %vm1701, %v4499, %v4500
      %v4502 = vunpack.c.l.b16 %v4498
      %v4503 = vunpack.c.l.b16 %v4501
      %v4504 = vpack.c.b16 %v4503, %v4502
      %v4506 = vsel %vm376, %v4504, 0
      %v4509 = vsel %vm425, %v253, 0
      %4511 = vmatpush.bf16.msra.mxu0 0
      %4512 = vmatpush.bf16.msra.mxu0 0
      %4513 = vmatpush.bf16.msra.mxu0 0
      %4514 = vmatpush.bf16.msra.mxu0 0
      %4515 = vmatpush.bf16.msra.mxu0 0
      %4516 = vmatpush.bf16.msra.mxu0 0
      %4517 = vmatpush.bf16.msra.mxu0 0
      %4518 = vmatpush.bf16.msra.mxu0 %v4509
      %4519 = vmatmul.bf16.gmra.mxu0 %v4326
      %v4520 = vpop.f32.mrf.mxu0
      %v4521 = vadd.f32 0.0, %v4520
      %v4522 = vpop.f32.mrf.mxu0
      %v4523 = vadd.f32 0.0, %v4522
      %4524 = vmatmul.bf16.gmra.mxu0 %v4329
      %v4525 = vpop.f32.mrf.mxu0
      %v4526 = vadd.f32 0.0, %v4525
      %v4527 = vpop.f32.mrf.mxu0
      %v4528 = vadd.f32 0.0, %v4527
      %4529 = vmatmul.bf16.gmra.mxu0 %v4332
      %v4530 = vpop.f32.mrf.mxu0
      %v4531 = vadd.f32 0.0, %v4530
      %v4532 = vpop.f32.mrf.mxu0
      %v4533 = vadd.f32 0.0, %v4532
      %4534 = vmatmul.bf16.gmra.mxu0 %v4335
      %v4535 = vpop.f32.mrf.mxu0
      %v4536 = vadd.f32 0.0, %v4535
      %v4537 = vpop.f32.mrf.mxu0
      %v4538 = vadd.f32 0.0, %v4537
      %4539 = vmatmul.bf16.gmra.mxu0 %v4338
      %v4540 = vpop.f32.mrf.mxu0
      %v4541 = vadd.f32 0.0, %v4540
      %v4542 = vpop.f32.mrf.mxu0
      %v4543 = vadd.f32 0.0, %v4542
      %4544 = vmatmul.bf16.gmra.mxu0 %v4341
      %v4545 = vpop.f32.mrf.mxu0
      %v4546 = vadd.f32 0.0, %v4545
      %v4547 = vpop.f32.mrf.mxu0
      %v4548 = vadd.f32 0.0, %v4547
      %4549 = vmatmul.bf16.gmra.mxu0 %v4344
      %v4550 = vpop.f32.mrf.mxu0
      %v4551 = vadd.f32 0.0, %v4550
      %v4552 = vpop.f32.mrf.mxu0
      %v4553 = vadd.f32 0.0, %v4552
      %4554 = vmatmul.bf16.gmra.mxu0 %v4347
      %v4555 = vpop.f32.mrf.mxu0
      %v4556 = vadd.f32 0.0, %v4555
      %v4557 = vpop.f32.mrf.mxu0
      %v4558 = vadd.f32 0.0, %v4557
      %4559 = vmatmul.bf16.gmra.mxu0 %v4350
      %v4560 = vpop.f32.mrf.mxu0
      %v4561 = vadd.f32 0.0, %v4560
      %v4562 = vpop.f32.mrf.mxu0
      %v4563 = vadd.f32 0.0, %v4562
      %4564 = vmatmul.bf16.gmra.mxu0 %v4353
      %v4565 = vpop.f32.mrf.mxu0
      %v4566 = vadd.f32 0.0, %v4565
      %v4567 = vpop.f32.mrf.mxu0
      %v4568 = vadd.f32 0.0, %v4567
      %4569 = vmatmul.bf16.gmra.mxu0 %v4356
      %v4570 = vpop.f32.mrf.mxu0
      %v4571 = vadd.f32 0.0, %v4570
      %v4572 = vpop.f32.mrf.mxu0
      %v4573 = vadd.f32 0.0, %v4572
      %4574 = vmatmul.bf16.gmra.mxu0 %v4359
      %v4575 = vpop.f32.mrf.mxu0
      %v4576 = vadd.f32 0.0, %v4575
      %v4577 = vpop.f32.mrf.mxu0
      %v4578 = vadd.f32 0.0, %v4577
      %4579 = vmatmul.bf16.gmra.mxu0 %v4362
      %v4580 = vpop.f32.mrf.mxu0
      %v4581 = vadd.f32 0.0, %v4580
      %v4582 = vpop.f32.mrf.mxu0
      %v4583 = vadd.f32 0.0, %v4582
      %4584 = vmatmul.bf16.gmra.mxu0 %v4365
      %v4585 = vpop.f32.mrf.mxu0
      %v4586 = vadd.f32 0.0, %v4585
      %v4587 = vpop.f32.mrf.mxu0
      %v4588 = vadd.f32 0.0, %v4587
      %4589 = vmatmul.bf16.gmra.mxu0 %v4368
      %v4590 = vpop.f32.mrf.mxu0
      %v4591 = vadd.f32 0.0, %v4590
      %v4592 = vpop.f32.mrf.mxu0
      %v4593 = vadd.f32 0.0, %v4592
      %4594 = vmatmul.bf16.gmra.mxu0 %v4506
      %v4595 = vpop.f32.mrf.mxu0
      %v4596 = vadd.f32 0.0, %v4595
      %v4597 = vpop.f32.mrf.mxu0
      %v4598 = vadd.f32 0.0, %v4597
      %4599 = vdwg.mxu0
      %v4600 = vadd.f32 %v4462, %v4521
      %v4601 = vadd.f32 %v4463, %v4523
      %v4602 = vadd.f32 %v4464, %v4526
      %v4603 = vadd.f32 %v4465, %v4528
      %v4604 = vadd.f32 %v4466, %v4531
      %v4605 = vadd.f32 %v4467, %v4533
      %v4606 = vadd.f32 %v4468, %v4536
      %v4607 = vadd.f32 %v4469, %v4538
      %v4608 = vadd.f32 %v4470, %v4541
      %v4609 = vadd.f32 %v4471, %v4543
      %v4610 = vadd.f32 %v4472, %v4546
      %v4611 = vadd.f32 %v4473, %v4548
      %v4612 = vadd.f32 %v4474, %v4551
      %v4613 = vadd.f32 %v4475, %v4553
      %v4614 = vadd.f32 %v4476, %v4556
      %v4615 = vadd.f32 %v4477, %v4558
      %v4616 = vadd.f32 %v4478, %v4561
      %v4617 = vadd.f32 %v4479, %v4563
      %v4618 = vadd.f32 %v4480, %v4566
      %v4619 = vadd.f32 %v4481, %v4568
      %v4620 = vadd.f32 %v4482, %v4571
      %v4621 = vadd.f32 %v4483, %v4573
      %v4622 = vadd.f32 %v4484, %v4576
      %v4623 = vadd.f32 %v4485, %v4578
      %v4624 = vadd.f32 %v4486, %v4581
      %v4625 = vadd.f32 %v4487, %v4583
      %v4626 = vadd.f32 %v4488, %v4586
      %v4627 = vadd.f32 %v4489, %v4588
      %v4628 = vadd.f32 %v4490, %v4591
      %v4629 = vadd.f32 %v4491, %v4593
      %v4630 = vadd.f32 %v4492, %v4596
      %v4631 = vadd.f32 %v4493, %v4598
      %v4633 = vrot.slane %v2762, 5
      %v4634 = vrot.slane %v4633, 4
      %v4635 = vrot.slane %v2763, 5
      %v4636 = vsel %vm1701, %v4634, %v4635
      %v4637 = vrot.slane %v4635, 4
      %v4638 = vrot.slane %v3233, 5
      %v4639 = vsel %vm1701, %v4637, %v4638
      %v4640 = vunpack.c.l.b16 %v4636
      %v4641 = vunpack.c.l.b16 %v4639
      %v4642 = vpack.c.b16 %v4641, %v4640
      %v4644 = vsel %vm376, %v4642, 0
      %v4647 = vsel %vm425, %v259, 0
      %4649 = vmatpush.bf16.msra.mxu0 0
      %4650 = vmatpush.bf16.msra.mxu0 0
      %4651 = vmatpush.bf16.msra.mxu0 0
      %4652 = vmatpush.bf16.msra.mxu0 0
      %4653 = vmatpush.bf16.msra.mxu0 0
      %4654 = vmatpush.bf16.msra.mxu0 0
      %4655 = vmatpush.bf16.msra.mxu0 0
      %4656 = vmatpush.bf16.msra.mxu0 %v4647
      %4657 = vmatmul.bf16.gmra.mxu0 %v4329
      %v4658 = vpop.f32.mrf.mxu0
      %v4659 = vadd.f32 0.0, %v4658
      %v4660 = vpop.f32.mrf.mxu0
      %v4661 = vadd.f32 0.0, %v4660
      %4662 = vmatmul.bf16.gmra.mxu0 %v4332
      %v4663 = vpop.f32.mrf.mxu0
      %v4664 = vadd.f32 0.0, %v4663
      %v4665 = vpop.f32.mrf.mxu0
      %v4666 = vadd.f32 0.0, %v4665
      %4667 = vmatmul.bf16.gmra.mxu0 %v4335
      %v4668 = vpop.f32.mrf.mxu0
      %v4669 = vadd.f32 0.0, %v4668
      %v4670 = vpop.f32.mrf.mxu0
      %v4671 = vadd.f32 0.0, %v4670
      %4672 = vmatmul.bf16.gmra.mxu0 %v4338
      %v4673 = vpop.f32.mrf.mxu0
      %v4674 = vadd.f32 0.0, %v4673
      %v4675 = vpop.f32.mrf.mxu0
      %v4676 = vadd.f32 0.0, %v4675
      %4677 = vmatmul.bf16.gmra.mxu0 %v4341
      %v4678 = vpop.f32.mrf.mxu0
      %v4679 = vadd.f32 0.0, %v4678
      %v4680 = vpop.f32.mrf.mxu0
      %v4681 = vadd.f32 0.0, %v4680
      %4682 = vmatmul.bf16.gmra.mxu0 %v4344
      %v4683 = vpop.f32.mrf.mxu0
      %v4684 = vadd.f32 0.0, %v4683
      %v4685 = vpop.f32.mrf.mxu0
      %v4686 = vadd.f32 0.0, %v4685
      %4687 = vmatmul.bf16.gmra.mxu0 %v4347
      %v4688 = vpop.f32.mrf.mxu0
      %v4689 = vadd.f32 0.0, %v4688
      %v4690 = vpop.f32.mrf.mxu0
      %v4691 = vadd.f32 0.0, %v4690
      %4692 = vmatmul.bf16.gmra.mxu0 %v4350
      %v4693 = vpop.f32.mrf.mxu0
      %v4694 = vadd.f32 0.0, %v4693
      %v4695 = vpop.f32.mrf.mxu0
      %v4696 = vadd.f32 0.0, %v4695
      %4697 = vmatmul.bf16.gmra.mxu0 %v4353
      %v4698 = vpop.f32.mrf.mxu0
      %v4699 = vadd.f32 0.0, %v4698
      %v4700 = vpop.f32.mrf.mxu0
      %v4701 = vadd.f32 0.0, %v4700
      %4702 = vmatmul.bf16.gmra.mxu0 %v4356
      %v4703 = vpop.f32.mrf.mxu0
      %v4704 = vadd.f32 0.0, %v4703
      %v4705 = vpop.f32.mrf.mxu0
      %v4706 = vadd.f32 0.0, %v4705
      %4707 = vmatmul.bf16.gmra.mxu0 %v4359
      %v4708 = vpop.f32.mrf.mxu0
      %v4709 = vadd.f32 0.0, %v4708
      %v4710 = vpop.f32.mrf.mxu0
      %v4711 = vadd.f32 0.0, %v4710
      %4712 = vmatmul.bf16.gmra.mxu0 %v4362
      %v4713 = vpop.f32.mrf.mxu0
      %v4714 = vadd.f32 0.0, %v4713
      %v4715 = vpop.f32.mrf.mxu0
      %v4716 = vadd.f32 0.0, %v4715
      %4717 = vmatmul.bf16.gmra.mxu0 %v4365
      %v4718 = vpop.f32.mrf.mxu0
      %v4719 = vadd.f32 0.0, %v4718
      %v4720 = vpop.f32.mrf.mxu0
      %v4721 = vadd.f32 0.0, %v4720
      %4722 = vmatmul.bf16.gmra.mxu0 %v4368
      %v4723 = vpop.f32.mrf.mxu0
      %v4724 = vadd.f32 0.0, %v4723
      %v4725 = vpop.f32.mrf.mxu0
      %v4726 = vadd.f32 0.0, %v4725
      %4727 = vmatmul.bf16.gmra.mxu0 %v4506
      %v4728 = vpop.f32.mrf.mxu0
      %v4729 = vadd.f32 0.0, %v4728
      %v4730 = vpop.f32.mrf.mxu0
      %v4731 = vadd.f32 0.0, %v4730
      %4732 = vmatmul.bf16.gmra.mxu0 %v4644
      %v4733 = vpop.f32.mrf.mxu0
      %v4734 = vadd.f32 0.0, %v4733
      %v4735 = vpop.f32.mrf.mxu0
      %v4736 = vadd.f32 0.0, %v4735
      %4737 = vdwg.mxu0
      %v4738 = vadd.f32 %v4600, %v4659
      %v4739 = vadd.f32 %v4601, %v4661
      %v4740 = vadd.f32 %v4602, %v4664
      %v4741 = vadd.f32 %v4603, %v4666
      %v4742 = vadd.f32 %v4604, %v4669
      %v4743 = vadd.f32 %v4605, %v4671
      %v4744 = vadd.f32 %v4606, %v4674
      %v4745 = vadd.f32 %v4607, %v4676
      %v4746 = vadd.f32 %v4608, %v4679
      %v4747 = vadd.f32 %v4609, %v4681
      %v4748 = vadd.f32 %v4610, %v4684
      %v4749 = vadd.f32 %v4611, %v4686
      %v4750 = vadd.f32 %v4612, %v4689
      %v4751 = vadd.f32 %v4613, %v4691
      %v4752 = vadd.f32 %v4614, %v4694
      %v4753 = vadd.f32 %v4615, %v4696
      %v4754 = vadd.f32 %v4616, %v4699
      %v4755 = vadd.f32 %v4617, %v4701
      %v4756 = vadd.f32 %v4618, %v4704
      %v4757 = vadd.f32 %v4619, %v4706
      %v4758 = vadd.f32 %v4620, %v4709
      %v4759 = vadd.f32 %v4621, %v4711
      %v4760 = vadd.f32 %v4622, %v4714
      %v4761 = vadd.f32 %v4623, %v4716
      %v4762 = vadd.f32 %v4624, %v4719
      %v4763 = vadd.f32 %v4625, %v4721
      %v4764 = vadd.f32 %v4626, %v4724
      %v4765 = vadd.f32 %v4627, %v4726
      %v4766 = vadd.f32 %v4628, %v4729
      %v4767 = vadd.f32 %v4629, %v4731
      %v4768 = vadd.f32 %v4630, %v4734
      %v4769 = vadd.f32 %v4631, %v4736
      %v4770 = vsel %vm376, %v4738, 0.0
      %v4771 = vsel %vm376, %v4739, 0.0
      %v4772 = vadd.f32 %v4770, %v4771
      %v4773 = vsel %vm376, %v4740, 0.0
      %v4774 = vadd.f32 %v4772, %v4773
      %v4775 = vsel %vm376, %v4741, 0.0
      %v4776 = vadd.f32 %v4774, %v4775
      %v4777 = vsel %vm376, %v4742, 0.0
      %v4778 = vadd.f32 %v4776, %v4777
      %v4779 = vsel %vm376, %v4743, 0.0
      %v4780 = vadd.f32 %v4778, %v4779
      %v4781 = vsel %vm376, %v4744, 0.0
      %v4782 = vadd.f32 %v4780, %v4781
      %v4783 = vsel %vm376, %v4745, 0.0
      %v4784 = vadd.f32 %v4782, %v4783
      %v4785 = vsel %vm376, %v4746, 0.0
      %v4786 = vadd.f32 %v4784, %v4785
      %v4787 = vsel %vm376, %v4747, 0.0
      %v4788 = vadd.f32 %v4786, %v4787
      %v4789 = vsel %vm376, %v4748, 0.0
      %v4790 = vadd.f32 %v4788, %v4789
      %v4791 = vsel %vm376, %v4749, 0.0
      %v4792 = vadd.f32 %v4790, %v4791
      %v4793 = vsel %vm376, %v4750, 0.0
      %v4794 = vadd.f32 %v4792, %v4793
      %v4795 = vsel %vm376, %v4751, 0.0
      %v4796 = vadd.f32 %v4794, %v4795
      %v4797 = vsel %vm376, %v4752, 0.0
      %v4798 = vadd.f32 %v4796, %v4797
      %v4799 = vsel %vm376, %v4753, 0.0
      %v4800 = vadd.f32 %v4798, %v4799
      %v4801 = vsel %vm376, %v4754, 0.0
      %v4802 = vadd.f32 %v4800, %v4801
      %v4803 = vsel %vm376, %v4755, 0.0
      %v4804 = vadd.f32 %v4802, %v4803
      %v4805 = vsel %vm376, %v4756, 0.0
      %v4806 = vadd.f32 %v4804, %v4805
      %v4807 = vsel %vm376, %v4757, 0.0
      %v4808 = vadd.f32 %v4806, %v4807
      %v4809 = vsel %vm376, %v4758, 0.0
      %v4810 = vadd.f32 %v4808, %v4809
      %v4811 = vsel %vm376, %v4759, 0.0
      %v4812 = vadd.f32 %v4810, %v4811
      %v4813 = vsel %vm376, %v4760, 0.0
      %v4814 = vadd.f32 %v4812, %v4813
      %v4815 = vsel %vm376, %v4761, 0.0
      %v4816 = vadd.f32 %v4814, %v4815
      %v4817 = vsel %vm376, %v4762, 0.0
      %v4818 = vadd.f32 %v4816, %v4817
      %v4819 = vsel %vm376, %v4763, 0.0
      %v4820 = vadd.f32 %v4818, %v4819
      %v4821 = vsel %vm376, %v4764, 0.0
      %v4822 = vadd.f32 %v4820, %v4821
      %v4823 = vsel %vm376, %v4765, 0.0
      %v4824 = vadd.f32 %v4822, %v4823
      %v4825 = vsel %vm376, %v4766, 0.0
      %v4826 = vadd.f32 %v4824, %v4825
      %v4827 = vsel %vm376, %v4767, 0.0
      %v4828 = vadd.f32 %v4826, %v4827
      %v4829 = vsel %vm376, %v4768, 0.0
      %v4830 = vadd.f32 %v4828, %v4829
      %v4831 = vsel %vm376, %v4769, 0.0
      %v4832 = vadd.f32 %v4830, %v4831
      %v4833 = vrot.slane %v4832, 4
      %v4834 = vadd.f32 %v4832, %v4833
      %v4835 = vrot.slane %v4834, 2
      %v4836 = vadd.f32 %v4834, %v4835
      %v4837 = vrot.slane %v4836, 1
      %v4838 = vadd.f32 %v4836, %v4837
      %v4839 = vmul.f32 %v4738, %v4738
      %v4840 = vmul.f32 %v4739, %v4739
      %v4841 = vmul.f32 %v4740, %v4740
      %v4842 = vmul.f32 %v4741, %v4741
      %v4843 = vmul.f32 %v4742, %v4742
      %v4844 = vmul.f32 %v4743, %v4743
      %v4845 = vmul.f32 %v4744, %v4744
      %v4846 = vmul.f32 %v4745, %v4745
      %v4847 = vmul.f32 %v4746, %v4746
      %v4848 = vmul.f32 %v4747, %v4747
      %v4849 = vmul.f32 %v4748, %v4748
      %v4850 = vmul.f32 %v4749, %v4749
      %v4851 = vmul.f32 %v4750, %v4750
      %v4852 = vmul.f32 %v4751, %v4751
      %v4853 = vmul.f32 %v4752, %v4752
      %v4854 = vmul.f32 %v4753, %v4753
      %v4855 = vmul.f32 %v4754, %v4754
      %v4856 = vmul.f32 %v4755, %v4755
      %v4857 = vmul.f32 %v4756, %v4756
      %v4858 = vmul.f32 %v4757, %v4757
      %v4859 = vmul.f32 %v4758, %v4758
      %v4860 = vmul.f32 %v4759, %v4759
      %v4861 = vmul.f32 %v4760, %v4760
      %v4862 = vmul.f32 %v4761, %v4761
      %v4863 = vmul.f32 %v4762, %v4762
      %v4864 = vmul.f32 %v4763, %v4763
      %v4865 = vmul.f32 %v4764, %v4764
      %v4866 = vmul.f32 %v4765, %v4765
      %v4867 = vmul.f32 %v4766, %v4766
      %v4868 = vmul.f32 %v4767, %v4767
      %v4869 = vmul.f32 %v4768, %v4768
      %v4870 = vmul.f32 %v4769, %v4769
      %v4871 = vsel %vm376, %v4839, 0.0
      %v4872 = vsel %vm376, %v4840, 0.0
      %v4873 = vadd.f32 %v4871, %v4872
      %v4874 = vsel %vm376, %v4841, 0.0
      %v4875 = vadd.f32 %v4873, %v4874
      %v4876 = vsel %vm376, %v4842, 0.0
      %v4877 = vadd.f32 %v4875, %v4876
      %v4878 = vsel %vm376, %v4843, 0.0
      %v4879 = vadd.f32 %v4877, %v4878
      %v4880 = vsel %vm376, %v4844, 0.0
      %v4881 = vadd.f32 %v4879, %v4880
      %v4882 = vsel %vm376, %v4845, 0.0
      %v4883 = vadd.f32 %v4881, %v4882
      %v4884 = vsel %vm376, %v4846, 0.0
      %v4885 = vadd.f32 %v4883, %v4884
      %v4886 = vsel %vm376, %v4847, 0.0
      %v4887 = vadd.f32 %v4885, %v4886
      %v4888 = vsel %vm376, %v4848, 0.0
      %v4889 = vadd.f32 %v4887, %v4888
      %v4890 = vsel %vm376, %v4849, 0.0
      %v4891 = vadd.f32 %v4889, %v4890
      %v4892 = vsel %vm376, %v4850, 0.0
      %v4893 = vadd.f32 %v4891, %v4892
      %v4894 = vsel %vm376, %v4851, 0.0
      %v4895 = vadd.f32 %v4893, %v4894
      %v4896 = vsel %vm376, %v4852, 0.0
      %v4897 = vadd.f32 %v4895, %v4896
      %v4898 = vsel %vm376, %v4853, 0.0
      %v4899 = vadd.f32 %v4897, %v4898
      %v4900 = vsel %vm376, %v4854, 0.0
      %v4901 = vadd.f32 %v4899, %v4900
      %v4902 = vsel %vm376, %v4855, 0.0
      %v4903 = vadd.f32 %v4901, %v4902
      %v4904 = vsel %vm376, %v4856, 0.0
      %v4905 = vadd.f32 %v4903, %v4904
      %v4906 = vsel %vm376, %v4857, 0.0
      %v4907 = vadd.f32 %v4905, %v4906
      %v4908 = vsel %vm376, %v4858, 0.0
      %v4909 = vadd.f32 %v4907, %v4908
      %v4910 = vsel %vm376, %v4859, 0.0
      %v4911 = vadd.f32 %v4909, %v4910
      %v4912 = vsel %vm376, %v4860, 0.0
      %v4913 = vadd.f32 %v4911, %v4912
      %v4914 = vsel %vm376, %v4861, 0.0
      %v4915 = vadd.f32 %v4913, %v4914
      %v4916 = vsel %vm376, %v4862, 0.0
      %v4917 = vadd.f32 %v4915, %v4916
      %v4918 = vsel %vm376, %v4863, 0.0
      %v4919 = vadd.f32 %v4917, %v4918
      %v4920 = vsel %vm376, %v4864, 0.0
      %v4921 = vadd.f32 %v4919, %v4920
      %v4922 = vsel %vm376, %v4865, 0.0
      %v4923 = vadd.f32 %v4921, %v4922
      %v4924 = vsel %vm376, %v4866, 0.0
      %v4925 = vadd.f32 %v4923, %v4924
      %v4926 = vsel %vm376, %v4867, 0.0
      %v4927 = vadd.f32 %v4925, %v4926
      %v4928 = vsel %vm376, %v4868, 0.0
      %v4929 = vadd.f32 %v4927, %v4928
      %v4930 = vsel %vm376, %v4869, 0.0
      %v4931 = vadd.f32 %v4929, %v4930
      %v4932 = vsel %vm376, %v4870, 0.0
      %v4933 = vadd.f32 %v4931, %v4932
      %v4934 = vrot.slane %v4933, 4
      %v4935 = vadd.f32 %v4933, %v4934
      %v4936 = vrot.slane %v4935, 2
      %v4937 = vadd.f32 %v4935, %v4936
      %v4938 = vrot.slane %v4937, 1
      %v4939 = vadd.f32 %v4937, %v4938
      %v4940 = vmul.f32 %v4838, 0.00390625
      %v4941 = vmul.f32 %v4939, 0.00390625
      %v4942 = vmul.f32 %v4940, %v4940
      %v4943 = vsub.f32 %v4941, %v4942
      %v4944 = vsub.f32 %v4738, %v4940
      %v4945 = vsub.f32 %v4739, %v4940
      %v4946 = vsub.f32 %v4740, %v4940
      %v4947 = vsub.f32 %v4741, %v4940
      %v4948 = vsub.f32 %v4742, %v4940
      %v4949 = vsub.f32 %v4743, %v4940
      %v4950 = vsub.f32 %v4744, %v4940
      %v4951 = vsub.f32 %v4745, %v4940
      %v4952 = vsub.f32 %v4746, %v4940
      %v4953 = vsub.f32 %v4747, %v4940
      %v4954 = vsub.f32 %v4748, %v4940
      %v4955 = vsub.f32 %v4749, %v4940
      %v4956 = vsub.f32 %v4750, %v4940
      %v4957 = vsub.f32 %v4751, %v4940
      %v4958 = vsub.f32 %v4752, %v4940
      %v4959 = vsub.f32 %v4753, %v4940
      %v4960 = vsub.f32 %v4754, %v4940
      %v4961 = vsub.f32 %v4755, %v4940
      %v4962 = vsub.f32 %v4756, %v4940
      %v4963 = vsub.f32 %v4757, %v4940
      %v4964 = vsub.f32 %v4758, %v4940
      %v4965 = vsub.f32 %v4759, %v4940
      %v4966 = vsub.f32 %v4760, %v4940
      %v4967 = vsub.f32 %v4761, %v4940
      %v4968 = vsub.f32 %v4762, %v4940
      %v4969 = vsub.f32 %v4763, %v4940
      %v4970 = vsub.f32 %v4764, %v4940
      %v4971 = vsub.f32 %v4765, %v4940
      %v4972 = vsub.f32 %v4766, %v4940
      %v4973 = vsub.f32 %v4767, %v4940
      %v4974 = vsub.f32 %v4768, %v4940
      %v4975 = vsub.f32 %v4769, %v4940
      %v4976 = vadd.f32 %v4943, 1e-05
      %v4977 = vrsqrt.pop %v4976
      %v4978 = vmul.f32 %v4977, %v4976
      %v4979 = vmul.f32 %v4978, %v4977
      %v4980 = vmul.f32 0.5, %v4979
      %v4981 = vsub.f32 1.5, %v4980
      %v4982 = vmul.f32 %v4977, %v4981
      %vm4983 = vweird.f32 %v4976
      %vm4984 = vweird.f32 %v4977
      %vm4985 = vmor %vm4983, %vm4984
      %v4986 = vsel %vm4985, %v4977, %v4982
      %v4987 = vmul.f32 %v4944, %v4986
      %v4988 = vmul.f32 %v4945, %v4986
      %v4989 = vmul.f32 %v4946, %v4986
      %v4990 = vmul.f32 %v4947, %v4986
      %v4991 = vmul.f32 %v4948, %v4986
      %v4992 = vmul.f32 %v4949, %v4986
      %v4993 = vmul.f32 %v4950, %v4986
      %v4994 = vmul.f32 %v4951, %v4986
      %v4995 = vmul.f32 %v4952, %v4986
      %v4996 = vmul.f32 %v4953, %v4986
      %v4997 = vmul.f32 %v4954, %v4986
      %v4998 = vmul.f32 %v4955, %v4986
      %v4999 = vmul.f32 %v4956, %v4986
      %v5000 = vmul.f32 %v4957, %v4986
      %v5001 = vmul.f32 %v4958, %v4986
      %v5002 = vmul.f32 %v4959, %v4986
      %v5003 = vmul.f32 %v4960, %v4986
      %v5004 = vmul.f32 %v4961, %v4986
      %v5005 = vmul.f32 %v4962, %v4986
      %v5006 = vmul.f32 %v4963, %v4986
      %v5007 = vmul.f32 %v4964, %v4986
      %v5008 = vmul.f32 %v4965, %v4986
      %v5009 = vmul.f32 %v4966, %v4986
      %v5010 = vmul.f32 %v4967, %v4986
      %v5011 = vmul.f32 %v4968, %v4986
      %v5012 = vmul.f32 %v4969, %v4986
      %v5013 = vmul.f32 %v4970, %v4986
      %v5014 = vmul.f32 %v4971, %v4986
      %v5015 = vmul.f32 %v4972, %v4986
      %v5016 = vmul.f32 %v4973, %v4986
      %v5017 = vmul.f32 %v4974, %v4986
      %v5018 = vmul.f32 %v4975, %v4986
      %vm5051 = vcmask 1040384
      %v5052 = vrot.slane %v4987, 7
      %v5053 = vrot.slane %v4988, 7
      %v5054 = vsel %vm5051, %v5052, %v5053
      %v5055 = vrot.slane %v4989, 7
      %v5056 = vrot.slane %v4990, 7
      %v5057 = vsel %vm5051, %v5055, %v5056
      %v5058 = vrot.slane %v4991, 7
      %v5059 = vrot.slane %v4992, 7
      %v5060 = vsel %vm5051, %v5058, %v5059
      %v5061 = vrot.slane %v4993, 7
      %v5062 = vrot.slane %v4994, 7
      %v5063 = vsel %vm5051, %v5061, %v5062
      %v5064 = vrot.slane %v4995, 7
      %v5065 = vrot.slane %v4996, 7
      %v5066 = vsel %vm5051, %v5064, %v5065
      %v5067 = vrot.slane %v4997, 7
      %v5068 = vrot.slane %v4998, 7
      %v5069 = vsel %vm5051, %v5067, %v5068
      %v5070 = vrot.slane %v4999, 7
      %v5071 = vrot.slane %v5000, 7
      %v5072 = vsel %vm5051, %v5070, %v5071
      %v5073 = vrot.slane %v5001, 7
      %v5074 = vrot.slane %v5002, 7
      %v5075 = vsel %vm5051, %v5073, %v5074
      %v5076 = vrot.slane %v5003, 7
      %v5077 = vrot.slane %v5004, 7
      %v5078 = vsel %vm5051, %v5076, %v5077
      %v5079 = vrot.slane %v5005, 7
      %v5080 = vrot.slane %v5006, 7
      %v5081 = vsel %vm5051, %v5079, %v5080
      %v5082 = vrot.slane %v5007, 7
      %v5083 = vrot.slane %v5008, 7
      %v5084 = vsel %vm5051, %v5082, %v5083
      %v5085 = vrot.slane %v5009, 7
      %v5086 = vrot.slane %v5010, 7
      %v5087 = vsel %vm5051, %v5085, %v5086
      %v5088 = vrot.slane %v5011, 7
      %v5089 = vrot.slane %v5012, 7
      %v5090 = vsel %vm5051, %v5088, %v5089
      %v5091 = vrot.slane %v5013, 7
      %v5092 = vrot.slane %v5014, 7
      %v5093 = vsel %vm5051, %v5091, %v5092
      %v5094 = vrot.slane %v5015, 7
      %v5095 = vrot.slane %v5016, 7
      %v5096 = vsel %vm5051, %v5094, %v5095
      %v5097 = vrot.slane %v5017, 7
      %v5098 = vrot.slane %v5018, 7
      %v5099 = vsel %vm5051, %v5097, %v5098
      %v5148 = vadd.f32 %v175, %v5052
      %v5149 = vadd.f32 %v176, %v5054
      %v5150 = vadd.f32 %v177, %v5053
      %v5151 = vadd.f32 %v178, %v5055
      %v5152 = vadd.f32 %v179, %v5057
      %v5153 = vadd.f32 %v180, %v5056
      %v5154 = vadd.f32 %v181, %v5058
      %v5155 = vadd.f32 %v182, %v5060
      %v5156 = vadd.f32 %v183, %v5059
      %v5157 = vadd.f32 %v184, %v5061
      %v5158 = vadd.f32 %v185, %v5063
      %v5159 = vadd.f32 %v186, %v5062
      %v5160 = vadd.f32 %v187, %v5064
      %v5161 = vadd.f32 %v188, %v5066
      %v5162 = vadd.f32 %v189, %v5065
      %v5163 = vadd.f32 %v190, %v5067
      %v5164 = vadd.f32 %v191, %v5069
      %v5165 = vadd.f32 %v192, %v5068
      %v5166 = vadd.f32 %v193, %v5070
      %v5167 = vadd.f32 %v194, %v5072
      %v5168 = vadd.f32 %v195, %v5071
      %v5169 = vadd.f32 %v196, %v5073
      %v5170 = vadd.f32 %v197, %v5075
      %v5171 = vadd.f32 %v198, %v5074
      %v5172 = vadd.f32 %v199, %v5076
      %v5173 = vadd.f32 %v200, %v5078
      %v5174 = vadd.f32 %v201, %v5077
      %v5175 = vadd.f32 %v202, %v5079
      %v5176 = vadd.f32 %v203, %v5081
      %v5177 = vadd.f32 %v204, %v5080
      %v5178 = vadd.f32 %v205, %v5082
      %v5179 = vadd.f32 %v206, %v5084
      %v5180 = vadd.f32 %v207, %v5083
      %v5181 = vadd.f32 %v208, %v5085
      %v5182 = vadd.f32 %v209, %v5087
      %v5183 = vadd.f32 %v210, %v5086
      %v5184 = vadd.f32 %v211, %v5088
      %v5185 = vadd.f32 %v212, %v5090
      %v5186 = vadd.f32 %v213, %v5089
      %v5187 = vadd.f32 %v214, %v5091
      %v5188 = vadd.f32 %v215, %v5093
      %v5189 = vadd.f32 %v216, %v5092
      %v5190 = vadd.f32 %v217, %v5094
      %v5191 = vadd.f32 %v218, %v5096
      %v5192 = vadd.f32 %v219, %v5095
      %v5193 = vadd.f32 %v220, %v5097
      %v5194 = vadd.f32 %v221, %v5099
      %v5195 = vadd.f32 %v222, %v5098
      %vm5196 = vcmask 31745
      %5197 = vst.msk [vmem:[%s170 - $0x1] sm:$0xfe] %vm5196, %v5148
      %5198 = vst.msk [vmem:[%s170 + $0x7] sm:$0xff] %vm376, %v5149
      %vm5199 = vcmask 24576
      %5200 = vst.msk [vmem:[%s170 + $0xf] sm:$0x1] %vm5199, %v5150
      %5201 = vst.msk [vmem:[%s170 + $0xf] sm:$0xfe] %vm5196, %v5151
      %5202 = vst.msk [vmem:[%s170 + $0x17] sm:$0xff] %vm376, %v5152
      %5203 = vst.msk [vmem:[%s170 + $0x1f] sm:$0x1] %vm5199, %v5153
      %5204 = vst.msk [vmem:[%s170 + $0x1f] sm:$0xfe] %vm5196, %v5154
      %5205 = vst.msk [vmem:[%s170 + $0x27] sm:$0xff] %vm376, %v5155
      %5206 = vst.msk [vmem:[%s170 + $0x2f] sm:$0x1] %vm5199, %v5156
      %5207 = vst.msk [vmem:[%s170 + $0x2f] sm:$0xfe] %vm5196, %v5157
      %5208 = vst.msk [vmem:[%s170 + $0x37] sm:$0xff] %vm376, %v5158
      %5209 = vst.msk [vmem:[%s170 + $0x3f] sm:$0x1] %vm5199, %v5159
      %5210 = vst.msk [vmem:[%s170 + $0x3f] sm:$0xfe] %vm5196, %v5160
      %5211 = vst.msk [vmem:[%s170 + $0x47] sm:$0xff] %vm376, %v5161
      %5212 = vst.msk [vmem:[%s170 + $0x4f] sm:$0x1] %vm5199, %v5162
      %5213 = vst.msk [vmem:[%s170 + $0x4f] sm:$0xfe] %vm5196, %v5163
      %5214 = vst.msk [vmem:[%s170 + $0x57] sm:$0xff] %vm376, %v5164
      %5215 = vst.msk [vmem:[%s170 + $0x5f] sm:$0x1] %vm5199, %v5165
      %5216 = vst.msk [vmem:[%s170 + $0x5f] sm:$0xfe] %vm5196, %v5166
      %5217 = vst.msk [vmem:[%s170 + $0x67] sm:$0xff] %vm376, %v5167
      %5218 = vst.msk [vmem:[%s170 + $0x6f] sm:$0x1] %vm5199, %v5168
      %5219 = vst.msk [vmem:[%s170 + $0x6f] sm:$0xfe] %vm5196, %v5169
      %5220 = vst.msk [vmem:[%s170 + $0x77] sm:$0xff] %vm376, %v5170
      %5221 = vst.msk [vmem:[%s170 + $0x7f] sm:$0x1] %vm5199, %v5171
      %5222 = vst.msk [vmem:[%s170 + $0x7f] sm:$0xfe] %vm5196, %v5172
      %5223 = vst.msk [vmem:[%s170 + $0x87] sm:$0xff] %vm376, %v5173
      %5224 = vst.msk [vmem:[%s170 + $0x8f] sm:$0x1] %vm5199, %v5174
      %5225 = vst.msk [vmem:[%s170 + $0x8f] sm:$0xfe] %vm5196, %v5175
      %5226 = vst.msk [vmem:[%s170 + $0x97] sm:$0xff] %vm376, %v5176
      %5227 = vst.msk [vmem:[%s170 + $0x9f] sm:$0x1] %vm5199, %v5177
      %5228 = vst.msk [vmem:[%s170 + $0x9f] sm:$0xfe] %vm5196, %v5178
      %5229 = vst.msk [vmem:[%s170 + $0xa7] sm:$0xff] %vm376, %v5179
      %5230 = vst.msk [vmem:[%s170 + $0xaf] sm:$0x1] %vm5199, %v5180
      %5231 = vst.msk [vmem:[%s170 + $0xaf] sm:$0xfe] %vm5196, %v5181
      %5232 = vst.msk [vmem:[%s170 + $0xb7] sm:$0xff] %vm376, %v5182
      %5233 = vst.msk [vmem:[%s170 + $0xbf] sm:$0x1] %vm5199, %v5183
      %5234 = vst.msk [vmem:[%s170 + $0xbf] sm:$0xfe] %vm5196, %v5184
      %5235 = vst.msk [vmem:[%s170 + $0xc7] sm:$0xff] %vm376, %v5185
      %5236 = vst.msk [vmem:[%s170 + $0xcf] sm:$0x1] %vm5199, %v5186
      %5237 = vst.msk [vmem:[%s170 + $0xcf] sm:$0xfe] %vm5196, %v5187
      %5238 = vst.msk [vmem:[%s170 + $0xd7] sm:$0xff] %vm376, %v5188
      %5239 = vst.msk [vmem:[%s170 + $0xdf] sm:$0x1] %vm5199, %v5189
      %5240 = vst.msk [vmem:[%s170 + $0xdf] sm:$0xfe] %vm5196, %v5190
      %5241 = vst.msk [vmem:[%s170 + $0xe7] sm:$0xff] %vm376, %v5191
      %5242 = vst.msk [vmem:[%s170 + $0xef] sm:$0x1] %vm5199, %v5192
      %5243 = vst.msk [vmem:[%s170 + $0xef] sm:$0xfe] %vm5196, %v5193
      %5244 = vst.msk [vmem:[%s170 + $0xf7] sm:$0xff] %vm376, %v5194
      %5245 = vst.msk [vmem:[%s170 + $0xff] sm:$0x1] %vm5199, %v5195
      %p5246 = scmp.lt.s32.totalorder %s14, 1
      %s5247 = scalar_select %p5246, %s14, 1
      %s5248 = smul.addr %s5247, 32
      %s5249 = smul.addr %s5248, 8
      %s5250 = scalar_lea.vmem %s3, %s5249
      // Predicated region
      $region33: #{tpu_custom_call.1} parent=31 // pred_check
        %p5251 = pneg %p100
      $region34: #{tpu_custom_call.1} parent=31 // pred_check_branch
        %5253 = sbr.rel (%p5251) target = $region36
      $region35: #{tpu_custom_call.1} parent=31 // pred_region
        _
      $region36: #{tpu_custom_call.1} parent=31 // pred_fallthru
        _
    $region32: #{tpu_custom_call.1} parent=5 // pred_fallthru
      _
    %p5254 = scmp.le.s32.totalorder 2, %s9
    // Predicated region
    $region37: #{tpu_custom_call.1} parent=5 // pred_check
      %p5255 = pneg %p5254
    $region38: #{tpu_custom_call.1} parent=5 // pred_check_branch
      %5257 = sbr.rel (%p5255) target = $region40
    $region39: #{tpu_custom_call.1} parent=5 // pred_region
      %s5258 = ssub.s32 %s9, 2
      // Predicated region
      $region41: #{tpu_custom_call.1} parent=39 // pred_check
        %p5259 = pneg %p106
      $region42: #{tpu_custom_call.1} parent=39 // pred_check_branch
        %5261 = sbr.rel (%p5259) target = $region44
      $region43: #{tpu_custom_call.1} parent=39 // pred_region
        %p5262 = scmp.lt.s32.totalorder %s15, 1
        %s5263 = scalar_select %p5262, %s15, 1
        %s5264 = smul.addr %s5263, 32
        %s5265 = smul.addr %s5264, 8
        %s5266 = scalar_lea.vmem %s3, %s5265
      $region44: #{tpu_custom_call.1} parent=39 // pred_fallthru
        _
    $region40: #{tpu_custom_call.1} parent=5 // pred_fallthru
      _
  $region6: #{tpu_custom_call.1} parent=0 // loop_footer
    %s13 = sadd.s32 1, %s9
  $region7: #{tpu_custom_call.1} parent=0 // loop_footer_branch
    %8 = sbr.rel target = $region3
  $region8: #{tpu_custom_call.1} parent=0 // loop_exit
    _

</llo_original>
